<compile_context>
chip_gen: v7x
topology: tpu7x:2x2x1
jax: 0.10.0
libtpu: 0.0.40
codegen_flags: <defaults>
</compile_context>

<pallas_src>
import math
import functools

import jax
import jax.numpy as jnp
from jax import lax
from jax.experimental import pallas as pl
from jax.experimental.pallas import tpu as pltpu


# Raised scoped-VMEM cap: safe on v5e/v6e (128 MiB physical) and v7x (64 MiB).
_VMEM_LIMIT = 48 * 1024 * 1024


def _pick_tile(dim, target, align):
    """Largest multiple of `align` that divides `dim` and is <= target, else `dim`."""
    if dim <= target:
        return dim
    t = (target // align) * align
    while t >= align:
        if dim % t == 0:
            return t
        t -= align
    return dim


# ----------------------------- tiled linear: y = x @ W + b -----------------------------

def _linear_kernel(x_ref, w_ref, b_ref, o_ref, acc_ref, *, compute_dtype):
    k = pl.program_id(2)

    @pl.when(k == 0)
    def _init():
        acc_ref[...] = jnp.zeros_like(acc_ref)

    acc_ref[...] += jnp.dot(
        x_ref[...].astype(compute_dtype),
        w_ref[...].astype(compute_dtype),
        preferred_element_type=jnp.float32,
    )

    @pl.when(k == pl.num_programs(2) - 1)
    def _finalize():
        o_ref[...] = (acc_ref[...] + b_ref[...]).astype(o_ref.dtype)


def linear(x2d, w, b, *, block_m=256, block_n=256, block_k=512,
           compute_dtype=jnp.float32):
    """x2d: (M, K), w: (K, N), b: (N,) -> (M, N) f32."""
    M, K = x2d.shape
    K2, N = w.shape
    assert K == K2 and b.shape == (N,)

    tm = _pick_tile(M, block_m, 8)
    tn = _pick_tile(N, block_n, 128)
    tk = _pick_tile(K, block_k, 128)
    grid = (M // tm, N // tn, K // tk)

    kernel = functools.partial(_linear_kernel, compute_dtype=compute_dtype)
    return pl.pallas_call(
        kernel,
        out_shape=jax.ShapeDtypeStruct((M, N), jnp.float32),
        grid_spec=pltpu.PrefetchScalarGridSpec(
            num_scalar_prefetch=0,
            grid=grid,
            in_specs=[
                pl.BlockSpec((tm, tk), lambda i, j, k: (i, k)),
                pl.BlockSpec((tk, tn), lambda i, j, k: (k, j)),
                pl.BlockSpec((1, tn), lambda i, j, k: (0, j)),
            ],
            out_specs=pl.BlockSpec((tm, tn), lambda i, j, k: (i, j)),
            scratch_shapes=[pltpu.VMEM((tm, tn), jnp.float32)],
        ),
        compiler_params=pltpu.CompilerParams(
            dimension_semantics=("parallel", "parallel", "arbitrary"),
            vmem_limit_bytes=_VMEM_LIMIT,
        ),
        cost_estimate=pl.CostEstimate(
            flops=2 * M * N * K,
            transcendentals=0,
            bytes_accessed=4 * (M * K + K * N + M * N + N),
        ),
    )(x2d, w, b.reshape(1, N))


# ----------------------------- flash attention with fused RoPE -----------------------------

def _rope(x, cos, sin, rotary_dim):
    """Rotate the first `rotary_dim` features.  x: (H, T, D); cos/sin: (T, rotary_dim//2)."""
    if rotary_dim == 0:
        return x
    half = rotary_dim // 2
    x1 = x[:, :, :half]
    x2 = x[:, :, half:rotary_dim]
    c = cos[None, :, :]
    s = sin[None, :, :]
    pieces = [x1 * c - x2 * s, x1 * s + x2 * c]
    if rotary_dim < x.shape[-1]:
        pieces.append(x[:, :, rotary_dim:])
    return jnp.concatenate(pieces, axis=-1)


def _flash_attn_kernel(q_ref, k_ref, v_ref, cq_ref, sq_ref, ck_ref, sk_ref,
                       o_ref, qrot_ref, m_ref, l_ref, acc_ref,
                       *, scale, rotary_dim, block_q, block_k, compute_dtype):
    qi = pl.program_id(1)
    ki = pl.program_id(2)

    @pl.when(ki == 0)
    def _init():
        # RoPE + softmax scale applied to the q tile once per q block (re-used
        # across every kv step).  Scaling q, not K, keeps the VPU work O(tq*D).
        qrot_ref[...] = _rope(q_ref[0], cq_ref[...], sq_ref[...], rotary_dim) * scale
        m_ref[...] = jnp.full(m_ref.shape, -jnp.inf, dtype=jnp.float32)
        l_ref[...] = jnp.zeros_like(l_ref)
        acc_ref[...] = jnp.zeros_like(acc_ref)

    def update(apply_mask):
        q = qrot_ref[...]                                              # (H, tq, D)
        k = _rope(k_ref[0], ck_ref[...], sk_ref[...], rotary_dim)      # (H, tk, D)
        v = v_ref[0]                                                   # (H, tk, D)

        # Batched matmul contracting the last dims (dot_general; no transposed-K copy).
        s = jnp.einsum("hqd,hkd->hqk",
                       q.astype(compute_dtype), k.astype(compute_dtype),
                       preferred_element_type=jnp.float32)             # (H, tq, tk)

        if apply_mask:  # only the diagonal block needs the causal mask
            rows = qi * block_q + lax.broadcasted_iota(jnp.int32, (block_q, block_k), 0)
            cols = ki * block_k + lax.broadcasted_iota(jnp.int32, (block_q, block_k), 1)
            s = s + jnp.where(cols > rows,
                              jnp.float32(-10000.0), jnp.float32(0.0))[None]

        m_prev = m_ref[...]
        m_new = jnp.maximum(m_prev, jnp.max(s, axis=-1, keepdims=True))
        alpha = jnp.exp(m_prev - m_new)
        p = jnp.exp(s - m_new)
        l_ref[...] = alpha * l_ref[...] + jnp.sum(p, axis=-1, keepdims=True)
        acc_ref[...] = alpha * acc_ref[...] + jnp.einsum(
            "hqk,hkd->hqd", p.astype(compute_dtype), v.astype(compute_dtype),
            preferred_element_type=jnp.float32)                        # (H, tq, D)
        m_ref[...] = m_new

    # Strictly-below-diagonal kv blocks: unmasked update.
    @pl.when(ki < qi)
    def _off_diag():
        update(apply_mask=False)

    # Diagonal block: masked update, then finalize.  It is the last kv block that
    # contributes to this q block; fully-masked blocks (ki > qi) are skipped
    # entirely (no compute, and their DMA is elided by the clamped index maps).
    @pl.when(ki == qi)
    def _diag():
        update(apply_mask=True)
        inv_l = pl.reciprocal(l_ref[...], approx=True)      # EUP slot (cheap)
        inv_l = inv_l * (2.0 - l_ref[...] * inv_l)          # one Newton step -> ~exact
        out = acc_ref[...] * inv_l                          # (H, tq, D)
        n_head = out.shape[0]
        # Lane-dense (tq, H*D) output slab: unmasked stores and no
        # (B,H,S,D)->(B,S,H*D) HBM round trip before out_proj.
        o_ref[0] = jnp.concatenate([out[h] for h in range(n_head)], axis=-1)


def flash_attention(q, k, v, cos, sin, *, rotary_dim,
                    block_q=256, block_k=256, compute_dtype=jnp.float32):
    """Causal MHA with fused RoPE.  q,k,v: (B, H, S, D) f32 -> (B, S, H*D) f32."""
    B, H, S, D = q.shape
    blk = min(_pick_tile(S, block_q, 8), _pick_tile(S, block_k, 8))
    tq = tk = blk                      # square tiles -> exact causal block skipping
    assert S % tq == 0
    half = cos.shape[1]
    scale = 1.0 / math.sqrt(D)
    grid = (B, S // tq, S // tk)       # kv axis last ("arbitrary" reduction axis)

    kernel = functools.partial(
        _flash_attn_kernel, scale=scale, rotary_dim=rotary_dim,
        block_q=tq, block_k=tk, compute_dtype=compute_dtype)

    # kv index maps clamp to the q block: fully-masked steps re-use the diagonal
    # block index, so Pallas skips their HBM->VMEM DMA entirely.
    kv_idx = lambda b, qi, ki: (b, 0, jnp.minimum(ki, qi), 0)
    kv_cs_idx = lambda b, qi, ki: (jnp.minimum(ki, qi), 0)

    return pl.pallas_call(
        kernel,
        out_shape=jax.ShapeDtypeStruct((B, S, H * D), jnp.float32),
        grid_spec=pltpu.PrefetchScalarGridSpec(
            num_scalar_prefetch=0,
            grid=grid,
            in_specs=[
                pl.BlockSpec((1, H, tq, D), lambda b, qi, ki: (b, 0, qi, 0)),
                pl.BlockSpec((1, H, tk, D), kv_idx),
                pl.BlockSpec((1, H, tk, D), kv_idx),
                pl.BlockSpec((tq, half), lambda b, qi, ki: (qi, 0)),
                pl.BlockSpec((tq, half), lambda b, qi, ki: (qi, 0)),
                pl.BlockSpec((tk, half), kv_cs_idx),
                pl.BlockSpec((tk, half), kv_cs_idx),
            ],
            out_specs=pl.BlockSpec((1, tq, H * D), lambda b, qi, ki: (b, qi, 0)),
            scratch_shapes=[
                pltpu.VMEM((H, tq, D), jnp.float32),   # rotated + scaled q tile
                pltpu.VMEM((H, tq, 1), jnp.float32),   # running max m
                pltpu.VMEM((H, tq, 1), jnp.float32),   # running sum l
                pltpu.VMEM((H, tq, D), jnp.float32),   # output accumulator
            ],
        ),
        compiler_params=pltpu.CompilerParams(
            dimension_semantics=("parallel", "parallel", "arbitrary"),
            vmem_limit_bytes=_VMEM_LIMIT,
        ),
        cost_estimate=pl.CostEstimate(
            flops=2 * B * H * S * S * D,             # ~causal half of both matmuls
            transcendentals=B * H * S * S // 2,
            bytes_accessed=4 * (3 * B * H * S * D + B * S * H * D + 4 * S * half),
        ),
    )(q, k, v, cos, sin, cos, sin)


# ----------------------------- RoPE table + MHA forward -----------------------------

def rope_cos_sin(seqlen, rotary_dim, base=10000.0):
    if rotary_dim == 0:
        return (jnp.ones((seqlen, 1), jnp.float32),
                jnp.zeros((seqlen, 1), jnp.float32))
    inv_freq = 1.0 / (base ** (jnp.arange(0, rotary_dim, 2, dtype=jnp.float32) / rotary_dim))
    t = jnp.arange(seqlen, dtype=jnp.float32)
    freqs = jnp.outer(t, inv_freq)                   # (S, rotary_dim // 2)
    return jnp.cos(freqs), jnp.sin(freqs)


def mha_forward(x, params, *, n_head, head_dim, rotary_dim, compute_dtype=jnp.float32):
    """Self-attention path of MHA.forward (no KV cache / padding mask, n_head == n_head_kv).

    On v6e/v7x pass compute_dtype=jnp.bfloat16 to feed the MXU at full rate
    (f32 accumulation is kept via preferred_element_type); keep f32 elementwise math.
    """
    B, S, E = x.shape
    qkv = linear(x.reshape(B * S, E), params["wqkv_w"], params["wqkv_b"],
                 compute_dtype=compute_dtype)
    qkv = qkv.reshape(B, S, 3, n_head, head_dim)

    # Head-major layout for the attention kernel (single fused XLA transpose).
    # RoPE and the back-transpose to the lane-dense (B, S, H*D) slab happen
    # inside the Pallas kernel, so there is no extra HBM round trip for either.
    q = jnp.transpose(qkv[:, :, 0], (0, 2, 1, 3))    # (B, H, S, D)
    k = jnp.transpose(qkv[:, :, 1], (0, 2, 1, 3))
    v = jnp.transpose(qkv[:, :, 2], (0, 2, 1, 3))

    cos, sin = rope_cos_sin(S, rotary_dim)
    ctx = flash_attention(q, k, v, cos, sin, rotary_dim=rotary_dim,
                          compute_dtype=compute_dtype)         # (B, S, H*D)

    out = linear(ctx.reshape(B * S, n_head * head_dim),
                 params["out_w"], params["out_b"], compute_dtype=compute_dtype)
    return out.reshape(B, S, E)


# ----------------------------- pure-JAX reference -----------------------------

def _apply_rotary_ref(x, cos, sin, rotary_dim):
    if rotary_dim == 0:
        return x
    x_rot, x_pass = x[..., :rotary_dim], x[..., rotary_dim:]
    x1, x2 = x_rot[..., :rotary_dim // 2], x_rot[..., rotary_dim // 2:]
    c = cos[None, :, None, :]
    s = sin[None, :, None, :]
    x_rot = jnp.concatenate([x1 * c - x2 * s, x1 * s + x2 * c], axis=-1)
    return jnp.concatenate([x_rot, x_pass], axis=-1)


def mha_reference(x, params, *, n_head, head_dim, rotary_dim):
    B, S, E = x.shape
    qkv = x.reshape(B * S, E) @ params["wqkv_w"] + params["wqkv_b"]
    qkv = qkv.reshape(B, S, 3, n_head, head_dim)
    cos, sin = rope_cos_sin(S, rotary_dim)
    q = _apply_rotary_ref(qkv[:, :, 0], cos, sin, rotary_dim)
    k = _apply_rotary_ref(qkv[:, :, 1], cos, sin, rotary_dim)
    v = qkv[:, :, 2]
    scale = 1.0 / math.sqrt(head_dim)
    scores = jnp.einsum("bthd,bshd->bhts", q, k * scale)
    mask = jnp.triu(jnp.full((S, S), -10000.0, dtype=jnp.float32), 1)
    scores = scores + mask
    attn = jax.nn.softmax(scores, axis=-1)
    o = jnp.einsum("bhts,bshd->bthd", attn, v).reshape(B * S, n_head * head_dim)
    out = o @ params["out_w"] + params["out_b"]
    return out.reshape(B, S, E)


# ----------------------------- main -----------------------------

if __name__ == "__main__":
    # Small config consistent with the module: n_embd=32, n_head=n_head_kv=4,
    # head_dim=8, rotary_dim=4, batch=2, seq=8.
    B, S, E = 2, 8, 32
    n_head, head_dim, rotary_dim = 4, 8, 4
    op_size = head_dim * (n_head + 2 * n_head)   # n_head == n_head_kv -> 3*E

    key = jax.random.PRNGKey(0)
    k_x, k_w1, k_b1, k_w2, k_b2 = jax.random.split(key, 5)

    x = jax.random.normal(k_x, (B, S, E), dtype=jnp.float32)
    params = {
        # Stored as (in, out) so the kernel computes x @ W + b (== nn.Linear with W^T).
        "wqkv_w": 0.02 * jax.random.normal(k_w1, (E, op_size), dtype=jnp.float32),
        "wqkv_b": 0.02 * jax.random.normal(k_b1, (op_size,), dtype=jnp.float32),
        "out_w": 0.02 * jax.random.normal(k_w2, (E, E), dtype=jnp.float32),
        "out_b": 0.02 * jax.random.normal(k_b2, (E,), dtype=jnp.float32),
    }

    fwd = jax.jit(functools.partial(mha_forward, n_head=n_head, head_dim=head_dim,
                                    rotary_dim=rotary_dim))
    out = jax.block_until_ready(fwd(x, params))

    ref = mha_reference(x, params, n_head=n_head, head_dim=head_dim, rotary_dim=rotary_dim)
    assert out.shape == (B, S, E)
    # Slightly loose tolerance: flash-style accumulation order, q-side scaling and
    # the approx(+Newton) reciprocal differ from the plain f32 reference at ~1e-5.
    assert jnp.allclose(out, ref, rtol=2e-3, atol=2e-4), "mismatch vs reference"

    print("KERNEL_OK")
</pallas_src>

<mosaic_0001>
module attributes {stable_mosaic.version = 11 : i64} {
  func.func @_linear_kernel(%arg0: i32, %arg1: i32, %arg2: i32, %arg3: memref<16x32xf32, #tpu.memory_space<vmem>>, %arg4: memref<32x96xf32, #tpu.memory_space<vmem>>, %arg5: memref<1x96xf32, #tpu.memory_space<vmem>>, %arg6: memref<16x96xf32, #tpu.memory_space<vmem>>, %arg7: memref<16x96xf32, #tpu.memory_space<vmem>>) attributes {dimension_semantics = [#tpu.dimension_semantics<parallel>, #tpu.dimension_semantics<parallel>, #tpu.dimension_semantics<arbitrary>], iteration_bounds = array<i64: 1, 1, 1>, scalar_prefetch = 0 : i64, scratch_operands = 1 : i64, tpu.core_type = #tpu.core_type<tc>, window_params = [{transform_indices = @transform_0, window_bounds = array<i64: 16, 32>}, {transform_indices = @transform_1, window_bounds = array<i64: 32, 96>}, {transform_indices = @transform_2, window_bounds = array<i64: 1, 96>}, {transform_indices = @transform_3, window_bounds = array<i64: 16, 96>}]} {
    %c0_i32 = arith.constant 0 : i32
    %0 = arith.cmpi eq, %arg2, %c0_i32 : i32
    %1 = arith.extui %0 : i1 to i32
    %c0_i32_0 = arith.constant 0 : i32
    %2 = arith.cmpi ne, %1, %c0_i32_0 : i32
    scf.if %2 {
      %cst_10 = arith.constant 0.000000e+00 : f32
      %12 = vector.broadcast %cst_10 : f32 to vector<16x96xf32>
      %c0_11 = arith.constant 0 : index
      %c0_12 = arith.constant 0 : index
      %13 = vector.load %arg7[%c0_11, %c0_12] : memref<16x96xf32, #tpu.memory_space<vmem>>, vector<16x96xf32>
      tpu.vector_store %arg7[%c0_11, %c0_12], %12 {strides = array<i32>} : memref<16x96xf32, #tpu.memory_space<vmem>>, vector<16x96xf32>,
    } else {
    }
    %c0 = arith.constant 0 : index
    %c0_1 = arith.constant 0 : index
    %3 = vector.load %arg7[%c0, %c0_1] : memref<16x96xf32, #tpu.memory_space<vmem>>, vector<16x96xf32>
    %c0_2 = arith.constant 0 : index
    %c0_3 = arith.constant 0 : index
    %4 = vector.load %arg3[%c0_2, %c0_3] : memref<16x32xf32, #tpu.memory_space<vmem>>, vector<16x32xf32>
    %c0_4 = arith.constant 0 : index
    %c0_5 = arith.constant 0 : index
    %5 = vector.load %arg4[%c0_4, %c0_5] : memref<32x96xf32, #tpu.memory_space<vmem>>, vector<32x96xf32>
    %cst = arith.constant dense<0.000000e+00> : vector<16x96xf32>
    %6 = tpu.matmul %4, %5, %cst {dimension_numbers = #tpu.dot_dimension_numbers<[1], [0], [0], [1], [0, 0, 1, 1], [], []>} : vector<16x32xf32>, vector<32x96xf32>, vector<16x96xf32> -> vector<16x96xf32>
    %7 = arith.addf %3, %6 : vector<16x96xf32>
    %c0_6 = arith.constant 0 : index
    %c0_7 = arith.constant 0 : index
    %8 = vector.load %arg7[%c0_6, %c0_7] : memref<16x96xf32, #tpu.memory_space<vmem>>, vector<16x96xf32>
    tpu.vector_store %arg7[%c0_6, %c0_7], %7 {strides = array<i32>} : memref<16x96xf32, #tpu.memory_space<vmem>>, vector<16x96xf32>,
    %c0_i32_8 = arith.constant 0 : i32
    %9 = arith.cmpi eq, %arg2, %c0_i32_8 : i32
    %10 = arith.extui %9 : i1 to i32
    %c0_i32_9 = arith.constant 0 : i32
    %11 = arith.cmpi ne, %10, %c0_i32_9 : i32
    scf.if %11 {
      %c0_10 = arith.constant 0 : index
      %c0_11 = arith.constant 0 : index
      %12 = vector.load %arg7[%c0_10, %c0_11] : memref<16x96xf32, #tpu.memory_space<vmem>>, vector<16x96xf32>
      %c0_12 = arith.constant 0 : index
      %c0_13 = arith.constant 0 : index
      %13 = vector.load %arg5[%c0_12, %c0_13] : memref<1x96xf32, #tpu.memory_space<vmem>>, vector<1x96xf32>
      %14 = vector.broadcast %13 : vector<1x96xf32> to vector<16x96xf32>
      %15 = arith.addf %12, %14 : vector<16x96xf32>
      %c0_14 = arith.constant 0 : index
      %c0_15 = arith.constant 0 : index
      %16 = vector.load %arg6[%c0_14, %c0_15] : memref<16x96xf32, #tpu.memory_space<vmem>>, vector<16x96xf32>
      tpu.vector_store %arg6[%c0_14, %c0_15], %15 {strides = array<i32>} : memref<16x96xf32, #tpu.memory_space<vmem>>, vector<16x96xf32>,
    } else {
    }
    return
  }
  func.func @transform_0(%arg0: i32, %arg1: i32, %arg2: i32) -> (i32, i32) {
    %c0_i32 = arith.constant 0 : i32
    return %arg0, %arg2 : i32, i32
  }
  func.func @transform_1(%arg0: i32, %arg1: i32, %arg2: i32) -> (i32, i32) {
    %c0_i32 = arith.constant 0 : i32
    return %arg2, %arg1 : i32, i32
  }
  func.func @transform_2(%arg0: i32, %arg1: i32, %arg2: i32) -> (i32, i32) {
    %c0_i32 = arith.constant 0 : i32
    %c0_i32_0 = arith.constant 0 : i32
    return %c0_i32, %arg1 : i32, i32
  }
  func.func @transform_3(%arg0: i32, %arg1: i32, %arg2: i32) -> (i32, i32) {
    %c0_i32 = arith.constant 0 : i32
    return %arg0, %arg1 : i32, i32
  }
}

module attributes {stable_mosaic.version = 11 : i64} {
  func.func @_linear_kernel(%arg0: i32, %arg1: i32, %arg2: i32, %arg3: memref<16x32xf32, #tpu.memory_space<vmem>>, %arg4: memref<32x32xf32, #tpu.memory_space<vmem>>, %arg5: memref<1x32xf32, #tpu.memory_space<vmem>>, %arg6: memref<16x32xf32, #tpu.memory_space<vmem>>, %arg7: memref<16x32xf32, #tpu.memory_space<vmem>>) attributes {dimension_semantics = [#tpu.dimension_semantics<parallel>, #tpu.dimension_semantics<parallel>, #tpu.dimension_semantics<arbitrary>], iteration_bounds = array<i64: 1, 1, 1>, scalar_prefetch = 0 : i64, scratch_operands = 1 : i64, tpu.core_type = #tpu.core_type<tc>, window_params = [{transform_indices = @transform_0, window_bounds = array<i64: 16, 32>}, {transform_indices = @transform_1, window_bounds = array<i64: 32, 32>}, {transform_indices = @transform_2, window_bounds = array<i64: 1, 32>}, {transform_indices = @transform_3, window_bounds = array<i64: 16, 32>}]} {
    %c0_i32 = arith.constant 0 : i32
    %0 = arith.cmpi eq, %arg2, %c0_i32 : i32
    %1 = arith.extui %0 : i1 to i32
    %c0_i32_0 = arith.constant 0 : i32
    %2 = arith.cmpi ne, %1, %c0_i32_0 : i32
    scf.if %2 {
      %cst_10 = arith.constant 0.000000e+00 : f32
      %12 = vector.broadcast %cst_10 : f32 to vector<16x32xf32>
      %c0_11 = arith.constant 0 : index
      %c0_12 = arith.constant 0 : index
      %13 = vector.load %arg7[%c0_11, %c0_12] : memref<16x32xf32, #tpu.memory_space<vmem>>, vector<16x32xf32>
      tpu.vector_store %arg7[%c0_11, %c0_12], %12 {strides = array<i32>} : memref<16x32xf32, #tpu.memory_space<vmem>>, vector<16x32xf32>,
    } else {
    }
    %c0 = arith.constant 0 : index
    %c0_1 = arith.constant 0 : index
    %3 = vector.load %arg7[%c0, %c0_1] : memref<16x32xf32, #tpu.memory_space<vmem>>, vector<16x32xf32>
    %c0_2 = arith.constant 0 : index
    %c0_3 = arith.constant 0 : index
    %4 = vector.load %arg3[%c0_2, %c0_3] : memref<16x32xf32, #tpu.memory_space<vmem>>, vector<16x32xf32>
    %c0_4 = arith.constant 0 : index
    %c0_5 = arith.constant 0 : index
    %5 = vector.load %arg4[%c0_4, %c0_5] : memref<32x32xf32, #tpu.memory_space<vmem>>, vector<32x32xf32>
    %cst = arith.constant dense<0.000000e+00> : vector<16x32xf32>
    %6 = tpu.matmul %4, %5, %cst {dimension_numbers = #tpu.dot_dimension_numbers<[1], [0], [0], [1], [0, 0, 1, 1], [], []>} : vector<16x32xf32>, vector<32x32xf32>, vector<16x32xf32> -> vector<16x32xf32>
    %7 = arith.addf %3, %6 : vector<16x32xf32>
    %c0_6 = arith.constant 0 : index
    %c0_7 = arith.constant 0 : index
    %8 = vector.load %arg7[%c0_6, %c0_7] : memref<16x32xf32, #tpu.memory_space<vmem>>, vector<16x32xf32>
    tpu.vector_store %arg7[%c0_6, %c0_7], %7 {strides = array<i32>} : memref<16x32xf32, #tpu.memory_space<vmem>>, vector<16x32xf32>,
    %c0_i32_8 = arith.constant 0 : i32
    %9 = arith.cmpi eq, %arg2, %c0_i32_8 : i32
    %10 = arith.extui %9 : i1 to i32
    %c0_i32_9 = arith.constant 0 : i32
    %11 = arith.cmpi ne, %10, %c0_i32_9 : i32
    scf.if %11 {
      %c0_10 = arith.constant 0 : index
      %c0_11 = arith.constant 0 : index
      %12 = vector.load %arg7[%c0_10, %c0_11] : memref<16x32xf32, #tpu.memory_space<vmem>>, vector<16x32xf32>
      %c0_12 = arith.constant 0 : index
      %c0_13 = arith.constant 0 : index
      %13 = vector.load %arg5[%c0_12, %c0_13] : memref<1x32xf32, #tpu.memory_space<vmem>>, vector<1x32xf32>
      %14 = vector.broadcast %13 : vector<1x32xf32> to vector<16x32xf32>
      %15 = arith.addf %12, %14 : vector<16x32xf32>
      %c0_14 = arith.constant 0 : index
      %c0_15 = arith.constant 0 : index
      %16 = vector.load %arg6[%c0_14, %c0_15] : memref<16x32xf32, #tpu.memory_space<vmem>>, vector<16x32xf32>
      tpu.vector_store %arg6[%c0_14, %c0_15], %15 {strides = array<i32>} : memref<16x32xf32, #tpu.memory_space<vmem>>, vector<16x32xf32>,
    } else {
    }
    return
  }
  func.func @transform_0(%arg0: i32, %arg1: i32, %arg2: i32) -> (i32, i32) {
    %c0_i32 = arith.constant 0 : i32
    return %arg0, %arg2 : i32, i32
  }
  func.func @transform_1(%arg0: i32, %arg1: i32, %arg2: i32) -> (i32, i32) {
    %c0_i32 = arith.constant 0 : i32
    return %arg2, %arg1 : i32, i32
  }
  func.func @transform_2(%arg0: i32, %arg1: i32, %arg2: i32) -> (i32, i32) {
    %c0_i32 = arith.constant 0 : i32
    %c0_i32_0 = arith.constant 0 : i32
    return %c0_i32, %arg1 : i32, i32
  }
  func.func @transform_3(%arg0: i32, %arg1: i32, %arg2: i32) -> (i32, i32) {
    %c0_i32 = arith.constant 0 : i32
    return %arg0, %arg1 : i32, i32
  }
}

module attributes {stable_mosaic.version = 11 : i64} {
  func.func @_flash_attn_kernel(%arg0: i32, %arg1: i32, %arg2: i32, %arg3: memref<1x4x8x8xf32, #tpu.memory_space<vmem>>, %arg4: memref<1x4x8x8xf32, #tpu.memory_space<vmem>>, %arg5: memref<1x4x8x8xf32, #tpu.memory_space<vmem>>, %arg6: memref<8x2xf32, #tpu.memory_space<vmem>>, %arg7: memref<8x2xf32, #tpu.memory_space<vmem>>, %arg8: memref<8x2xf32, #tpu.memory_space<vmem>>, %arg9: memref<8x2xf32, #tpu.memory_space<vmem>>, %arg10: memref<1x8x32xf32, #tpu.memory_space<vmem>>, %arg11: memref<4x8x8xf32, #tpu.memory_space<vmem>>, %arg12: memref<4x8x1xf32, #tpu.memory_space<vmem>>, %arg13: memref<4x8x1xf32, #tpu.memory_space<vmem>>, %arg14: memref<4x8x8xf32, #tpu.memory_space<vmem>>) attributes {dimension_semantics = [#tpu.dimension_semantics<parallel>, #tpu.dimension_semantics<parallel>, #tpu.dimension_semantics<arbitrary>], iteration_bounds = array<i64: 2, 1, 1>, scalar_prefetch = 0 : i64, scratch_operands = 4 : i64, tpu.core_type = #tpu.core_type<tc>, window_params = [{transform_indices = @transform_0, window_bounds = array<i64: 1, 4, 8, 8>}, {transform_indices = @transform_1, window_bounds = array<i64: 1, 4, 8, 8>}, {transform_indices = @transform_2, window_bounds = array<i64: 1, 4, 8, 8>}, {transform_indices = @transform_3, window_bounds = array<i64: 8, 2>}, {transform_indices = @transform_4, window_bounds = array<i64: 8, 2>}, {transform_indices = @transform_5, window_bounds = array<i64: 8, 2>}, {transform_indices = @transform_6, window_bounds = array<i64: 8, 2>}, {transform_indices = @transform_7, window_bounds = array<i64: 1, 8, 32>}]} {
    %c0_i32 = arith.constant 0 : i32
    %0 = arith.cmpi eq, %arg2, %c0_i32 : i32
    %1 = arith.extui %0 : i1 to i32
    %c0_i32_0 = arith.constant 0 : i32
    %2 = arith.cmpi ne, %1, %c0_i32_0 : i32
    scf.if %2 {
      %c0 = arith.constant 0 : index
      %c0_3 = arith.constant 0 : index
      %c0_4 = arith.constant 0 : index
      %c0_5 = arith.constant 0 : index
      %9 = vector.load %arg3[%c0, %c0_3, %c0_4, %c0_5] : memref<1x4x8x8xf32, #tpu.memory_space<vmem>>, vector<1x4x8x8xf32>
      %10 = vector.shape_cast %9 : vector<1x4x8x8xf32> to vector<4x8x8xf32>
      %c0_6 = arith.constant 0 : index
      %c0_7 = arith.constant 0 : index
      %11 = vector.load %arg6[%c0_6, %c0_7] : memref<8x2xf32, #tpu.memory_space<vmem>>, vector<8x2xf32>
      %c0_8 = arith.constant 0 : index
      %c0_9 = arith.constant 0 : index
      %12 = vector.load %arg7[%c0_8, %c0_9] : memref<8x2xf32, #tpu.memory_space<vmem>>, vector<8x2xf32>
      %13 = vector.extract_strided_slice %10 {offsets = [0, 0, 0], sizes = [4, 8, 2], strides = [1, 1, 1]} : vector<4x8x8xf32> to vector<4x8x2xf32>
      %14 = vector.extract_strided_slice %10 {offsets = [0, 0, 2], sizes = [4, 8, 2], strides = [1, 1, 1]} : vector<4x8x8xf32> to vector<4x8x2xf32>
      %15 = vector.shape_cast %11 : vector<8x2xf32> to vector<1x8x2xf32>
      %16 = vector.shape_cast %12 : vector<8x2xf32> to vector<1x8x2xf32>
      %17 = vector.broadcast %15 : vector<1x8x2xf32> to vector<4x8x2xf32>
      %18 = arith.mulf %13, %17 : vector<4x8x2xf32>
      %19 = vector.broadcast %16 : vector<1x8x2xf32> to vector<4x8x2xf32>
      %20 = arith.mulf %14, %19 : vector<4x8x2xf32>
      %21 = arith.subf %18, %20 : vector<4x8x2xf32>
      %22 = vector.broadcast %16 : vector<1x8x2xf32> to vector<4x8x2xf32>
      %23 = arith.mulf %13, %22 : vector<4x8x2xf32>
      %24 = vector.broadcast %15 : vector<1x8x2xf32> to vector<4x8x2xf32>
      %25 = arith.mulf %14, %24 : vector<4x8x2xf32>
      %26 = arith.addf %23, %25 : vector<4x8x2xf32>
      %27 = vector.extract_strided_slice %10 {offsets = [0, 0, 4], sizes = [4, 8, 4], strides = [1, 1, 1]} : vector<4x8x8xf32> to vector<4x8x4xf32>
      %28 = tpu.concatenate %21, %26, %27 in 2 : vector<4x8x2xf32>, vector<4x8x2xf32>, vector<4x8x4xf32> -> vector<4x8x8xf32>
      %cst = arith.constant 0.353553385 : f32
      %29 = vector.broadcast %cst : f32 to vector<4x8x8xf32>
      %30 = arith.mulf %28, %29 : vector<4x8x8xf32>
      %c0_10 = arith.constant 0 : index
      %c0_11 = arith.constant 0 : index
      %c0_12 = arith.constant 0 : index
      %31 = vector.load %arg11[%c0_10, %c0_11, %c0_12] : memref<4x8x8xf32, #tpu.memory_space<vmem>>, vector<4x8x8xf32>
      tpu.vector_store %arg11[%c0_10, %c0_11, %c0_12], %30 {strides = array<i32>} : memref<4x8x8xf32, #tpu.memory_space<vmem>>, vector<4x8x8xf32>,
      %cst_13 = arith.constant 0xFF800000 : f32
      %32 = vector.broadcast %cst_13 : f32 to vector<4x8x1xf32>
      %c0_14 = arith.constant 0 : index
      %c0_15 = arith.constant 0 : index
      %c0_16 = arith.constant 0 : index
      %33 = vector.load %arg12[%c0_14, %c0_15, %c0_16] : memref<4x8x1xf32, #tpu.memory_space<vmem>>, vector<4x8x1xf32>
      tpu.vector_store %arg12[%c0_14, %c0_15, %c0_16], %32 {strides = array<i32>} : memref<4x8x1xf32, #tpu.memory_space<vmem>>, vector<4x8x1xf32>,
      %cst_17 = arith.constant 0.000000e+00 : f32
      %34 = vector.broadcast %cst_17 : f32 to vector<4x8x1xf32>
      %c0_18 = arith.constant 0 : index
      %c0_19 = arith.constant 0 : index
      %c0_20 = arith.constant 0 : index
      %35 = vector.load %arg13[%c0_18, %c0_19, %c0_20] : memref<4x8x1xf32, #tpu.memory_space<vmem>>, vector<4x8x1xf32>
      tpu.vector_store %arg13[%c0_18, %c0_19, %c0_20], %34 {strides = array<i32>} : memref<4x8x1xf32, #tpu.memory_space<vmem>>, vector<4x8x1xf32>,
      %cst_21 = arith.constant 0.000000e+00 : f32
      %36 = vector.broadcast %cst_21 : f32 to vector<4x8x8xf32>
      %c0_22 = arith.constant 0 : index
      %c0_23 = arith.constant 0 : index
      %c0_24 = arith.constant 0 : index
      %37 = vector.load %arg14[%c0_22, %c0_23, %c0_24] : memref<4x8x8xf32, #tpu.memory_space<vmem>>, vector<4x8x8xf32>
      tpu.vector_store %arg14[%c0_22, %c0_23, %c0_24], %36 {strides = array<i32>} : memref<4x8x8xf32, #tpu.memory_space<vmem>>, vector<4x8x8xf32>,
    } else {
    }
    %3 = arith.cmpi slt, %arg2, %arg1 : i32
    %4 = arith.extui %3 : i1 to i32
    %c0_i32_1 = arith.constant 0 : i32
    %5 = arith.cmpi ne, %4, %c0_i32_1 : i32
    scf.if %5 {
      %c0 = arith.constant 0 : index
      %c0_3 = arith.constant 0 : index
      %c0_4 = arith.constant 0 : index
      %9 = vector.load %arg11[%c0, %c0_3, %c0_4] : memref<4x8x8xf32, #tpu.memory_space<vmem>>, vector<4x8x8xf32>
      %c0_5 = arith.constant 0 : index
      %c0_6 = arith.constant 0 : index
      %c0_7 = arith.constant 0 : index
      %c0_8 = arith.constant 0 : index
      %10 = vector.load %arg4[%c0_5, %c0_6, %c0_7, %c0_8] : memref<1x4x8x8xf32, #tpu.memory_space<vmem>>, vector<1x4x8x8xf32>
      %11 = vector.shape_cast %10 : vector<1x4x8x8xf32> to vector<4x8x8xf32>
      %c0_9 = arith.constant 0 : index
      %c0_10 = arith.constant 0 : index
      %12 = vector.load %arg8[%c0_9, %c0_10] : memref<8x2xf32, #tpu.memory_space<vmem>>, vector<8x2xf32>
      %c0_11 = arith.constant 0 : index
      %c0_12 = arith.constant 0 : index
      %13 = vector.load %arg9[%c0_11, %c0_12] : memref<8x2xf32, #tpu.memory_space<vmem>>, vector<8x2xf32>
      %14 = vector.extract_strided_slice %11 {offsets = [0, 0, 0], sizes = [4, 8, 2], strides = [1, 1, 1]} : vector<4x8x8xf32> to vector<4x8x2xf32>
      %15 = vector.extract_strided_slice %11 {offsets = [0, 0, 2], sizes = [4, 8, 2], strides = [1, 1, 1]} : vector<4x8x8xf32> to vector<4x8x2xf32>
      %16 = vector.shape_cast %12 : vector<8x2xf32> to vector<1x8x2xf32>
      %17 = vector.shape_cast %13 : vector<8x2xf32> to vector<1x8x2xf32>
      %18 = vector.broadcast %16 : vector<1x8x2xf32> to vector<4x8x2xf32>
      %19 = arith.mulf %14, %18 : vector<4x8x2xf32>
      %20 = vector.broadcast %17 : vector<1x8x2xf32> to vector<4x8x2xf32>
      %21 = arith.mulf %15, %20 : vector<4x8x2xf32>
      %22 = arith.subf %19, %21 : vector<4x8x2xf32>
      %23 = vector.broadcast %17 : vector<1x8x2xf32> to vector<4x8x2xf32>
      %24 = arith.mulf %14, %23 : vector<4x8x2xf32>
      %25 = vector.broadcast %16 : vector<1x8x2xf32> to vector<4x8x2xf32>
      %26 = arith.mulf %15, %25 : vector<4x8x2xf32>
      %27 = arith.addf %24, %26 : vector<4x8x2xf32>
      %28 = vector.extract_strided_slice %11 {offsets = [0, 0, 4], sizes = [4, 8, 4], strides = [1, 1, 1]} : vector<4x8x8xf32> to vector<4x8x4xf32>
      %29 = tpu.concatenate %22, %27, %28 in 2 : vector<4x8x2xf32>, vector<4x8x2xf32>, vector<4x8x4xf32> -> vector<4x8x8xf32>
      %c0_13 = arith.constant 0 : index
      %c0_14 = arith.constant 0 : index
      %c0_15 = arith.constant 0 : index
      %c0_16 = arith.constant 0 : index
      %30 = vector.load %arg5[%c0_13, %c0_14, %c0_15, %c0_16] : memref<1x4x8x8xf32, #tpu.memory_space<vmem>>, vector<1x4x8x8xf32>
      %31 = vector.shape_cast %30 : vector<1x4x8x8xf32> to vector<4x8x8xf32>
      "tpu.trace_start"() <{level = 10 : i32, message = "hqd,hkd->hqk"}> : () -> ()
      %cst = arith.constant dense<0.000000e+00> : vector<4x8x8xf32>
      %32 = tpu.matmul %9, %29, %cst {dimension_numbers = #tpu.dot_dimension_numbers<[2], [2], [1], [1], [0, 0, 0, 1, 1, 1], [0], [0]>} : vector<4x8x8xf32>, vector<4x8x8xf32>, vector<4x8x8xf32> -> vector<4x8x8xf32>
      "tpu.trace_stop"() : () -> ()
      %c0_17 = arith.constant 0 : index
      %c0_18 = arith.constant 0 : index
      %c0_19 = arith.constant 0 : index
      %33 = vector.load %arg12[%c0_17, %c0_18, %c0_19] : memref<4x8x1xf32, #tpu.memory_space<vmem>>, vector<4x8x1xf32>
      %cst_20 = arith.constant dense<0xFF800000> : vector<4x8xf32>
      %34 = vector.multi_reduction <maximumf>, %32, %cst_20 [2] : vector<4x8x8xf32> to vector<4x8xf32>
      %35 = vector.shape_cast %34 : vector<4x8xf32> to vector<4x8x1xf32>
      %36 = arith.maximumf %33, %35 : vector<4x8x1xf32>
      %37 = arith.subf %33, %36 : vector<4x8x1xf32>
      %38 = math.exp %37 : vector<4x8x1xf32>
      %39 = vector.broadcast %36 : vector<4x8x1xf32> to vector<4x8x8xf32>
      %40 = arith.subf %32, %39 : vector<4x8x8xf32>
      %41 = math.exp %40 : vector<4x8x8xf32>
      %c0_21 = arith.constant 0 : index
      %c0_22 = arith.constant 0 : index
      %c0_23 = arith.constant 0 : index
      %42 = vector.load %arg13[%c0_21, %c0_22, %c0_23] : memref<4x8x1xf32, #tpu.memory_space<vmem>>, vector<4x8x1xf32>
      %43 = arith.mulf %38, %42 : vector<4x8x1xf32>
      %cst_24 = arith.constant dense<0.000000e+00> : vector<4x8xf32>
      %44 = vector.multi_reduction <add>, %41, %cst_24 [2] : vector<4x8x8xf32> to vector<4x8xf32>
      %45 = vector.shape_cast %44 : vector<4x8xf32> to vector<4x8x1xf32>
      %46 = arith.addf %43, %45 : vector<4x8x1xf32>
      %c0_25 = arith.constant 0 : index
      %c0_26 = arith.constant 0 : index
      %c0_27 = arith.constant 0 : index
      %47 = vector.load %arg13[%c0_25, %c0_26, %c0_27] : memref<4x8x1xf32, #tpu.memory_space<vmem>>, vector<4x8x1xf32>
      tpu.vector_store %arg13[%c0_25, %c0_26, %c0_27], %46 {strides = array<i32>} : memref<4x8x1xf32, #tpu.memory_space<vmem>>, vector<4x8x1xf32>,
      %c0_28 = arith.constant 0 : index
      %c0_29 = arith.constant 0 : index
      %c0_30 = arith.constant 0 : index
      %48 = vector.load %arg14[%c0_28, %c0_29, %c0_30] : memref<4x8x8xf32, #tpu.memory_space<vmem>>, vector<4x8x8xf32>
      %49 = vector.broadcast %38 : vector<4x8x1xf32> to vector<4x8x8xf32>
      %50 = arith.mulf %49, %48 : vector<4x8x8xf32>
      "tpu.trace_start"() <{level = 10 : i32, message = "hqk,hkd->hqd"}> : () -> ()
      %cst_31 = arith.constant dense<0.000000e+00> : vector<4x8x8xf32>
      %51 = tpu.matmul %41, %31, %cst_31 {dimension_numbers = #tpu.dot_dimension_numbers<[2], [1], [1], [2], [0, 0, 0, 1, 1, 2], [0], [0]>} : vector<4x8x8xf32>, vector<4x8x8xf32>, vector<4x8x8xf32> -> vector<4x8x8xf32>
      "tpu.trace_stop"() : () -> ()
      %52 = arith.addf %50, %51 : vector<4x8x8xf32>
      %c0_32 = arith.constant 0 : index
      %c0_33 = arith.constant 0 : index
      %c0_34 = arith.constant 0 : index
      %53 = vector.load %arg14[%c0_32, %c0_33, %c0_34] : memref<4x8x8xf32, #tpu.memory_space<vmem>>, vector<4x8x8xf32>
      tpu.vector_store %arg14[%c0_32, %c0_33, %c0_34], %52 {strides = array<i32>} : memref<4x8x8xf32, #tpu.memory_space<vmem>>, vector<4x8x8xf32>,
      %c0_35 = arith.constant 0 : index
      %c0_36 = arith.constant 0 : index
      %c0_37 = arith.constant 0 : index
      %54 = vector.load %arg12[%c0_35, %c0_36, %c0_37] : memref<4x8x1xf32, #tpu.memory_space<vmem>>, vector<4x8x1xf32>
      tpu.vector_store %arg12[%c0_35, %c0_36, %c0_37], %36 {strides = array<i32>} : memref<4x8x1xf32, #tpu.memory_space<vmem>>, vector<4x8x1xf32>,
    } else {
    }
    %6 = arith.cmpi eq, %arg2, %arg1 : i32
    %7 = arith.extui %6 : i1 to i32
    %c0_i32_2 = arith.constant 0 : i32
    %8 = arith.cmpi ne, %7, %c0_i32_2 : i32
    scf.if %8 {
      %c0 = arith.constant 0 : index
      %c0_3 = arith.constant 0 : index
      %c0_4 = arith.constant 0 : index
      %9 = vector.load %arg11[%c0, %c0_3, %c0_4] : memref<4x8x8xf32, #tpu.memory_space<vmem>>, vector<4x8x8xf32>
      %c0_5 = arith.constant 0 : index
      %c0_6 = arith.constant 0 : index
      %c0_7 = arith.constant 0 : index
      %c0_8 = arith.constant 0 : index
      %10 = vector.load %arg4[%c0_5, %c0_6, %c0_7, %c0_8] : memref<1x4x8x8xf32, #tpu.memory_space<vmem>>, vector<1x4x8x8xf32>
      %11 = vector.shape_cast %10 : vector<1x4x8x8xf32> to vector<4x8x8xf32>
      %c0_9 = arith.constant 0 : index
      %c0_10 = arith.constant 0 : index
      %12 = vector.load %arg8[%c0_9, %c0_10] : memref<8x2xf32, #tpu.memory_space<vmem>>, vector<8x2xf32>
      %c0_11 = arith.constant 0 : index
      %c0_12 = arith.constant 0 : index
      %13 = vector.load %arg9[%c0_11, %c0_12] : memref<8x2xf32, #tpu.memory_space<vmem>>, vector<8x2xf32>
      %14 = vector.extract_strided_slice %11 {offsets = [0, 0, 0], sizes = [4, 8, 2], strides = [1, 1, 1]} : vector<4x8x8xf32> to vector<4x8x2xf32>
      %15 = vector.extract_strided_slice %11 {offsets = [0, 0, 2], sizes = [4, 8, 2], strides = [1, 1, 1]} : vector<4x8x8xf32> to vector<4x8x2xf32>
      %16 = vector.shape_cast %12 : vector<8x2xf32> to vector<1x8x2xf32>
      %17 = vector.shape_cast %13 : vector<8x2xf32> to vector<1x8x2xf32>
      %18 = vector.broadcast %16 : vector<1x8x2xf32> to vector<4x8x2xf32>
      %19 = arith.mulf %14, %18 : vector<4x8x2xf32>
      %20 = vector.broadcast %17 : vector<1x8x2xf32> to vector<4x8x2xf32>
      %21 = arith.mulf %15, %20 : vector<4x8x2xf32>
      %22 = arith.subf %19, %21 : vector<4x8x2xf32>
      %23 = vector.broadcast %17 : vector<1x8x2xf32> to vector<4x8x2xf32>
      %24 = arith.mulf %14, %23 : vector<4x8x2xf32>
      %25 = vector.broadcast %16 : vector<1x8x2xf32> to vector<4x8x2xf32>
      %26 = arith.mulf %15, %25 : vector<4x8x2xf32>
      %27 = arith.addf %24, %26 : vector<4x8x2xf32>
      %28 = vector.extract_strided_slice %11 {offsets = [0, 0, 4], sizes = [4, 8, 4], strides = [1, 1, 1]} : vector<4x8x8xf32> to vector<4x8x4xf32>
      %29 = tpu.concatenate %22, %27, %28 in 2 : vector<4x8x2xf32>, vector<4x8x2xf32>, vector<4x8x4xf32> -> vector<4x8x8xf32>
      %c0_13 = arith.constant 0 : index
      %c0_14 = arith.constant 0 : index
      %c0_15 = arith.constant 0 : index
      %c0_16 = arith.constant 0 : index
      %30 = vector.load %arg5[%c0_13, %c0_14, %c0_15, %c0_16] : memref<1x4x8x8xf32, #tpu.memory_space<vmem>>, vector<1x4x8x8xf32>
      %31 = vector.shape_cast %30 : vector<1x4x8x8xf32> to vector<4x8x8xf32>
      "tpu.trace_start"() <{level = 10 : i32, message = "hqd,hkd->hqk"}> : () -> ()
      %cst = arith.constant dense<0.000000e+00> : vector<4x8x8xf32>
      %32 = tpu.matmul %9, %29, %cst {dimension_numbers = #tpu.dot_dimension_numbers<[2], [2], [1], [1], [0, 0, 0, 1, 1, 1], [0], [0]>} : vector<4x8x8xf32>, vector<4x8x8xf32>, vector<4x8x8xf32> -> vector<4x8x8xf32>
      "tpu.trace_stop"() : () -> ()
      %c8_i32 = arith.constant 8 : i32
      %33 = arith.muli %arg1, %c8_i32 : i32
      %34 = tpu.iota {dimensions = array<i32: 0>} : vector<8x8xi32>
      %35 = vector.broadcast %33 : i32 to vector<8x8xi32>
      %36 = arith.addi %35, %34 : vector<8x8xi32>
      %c8_i32_17 = arith.constant 8 : i32
      %37 = arith.muli %arg2, %c8_i32_17 : i32
      %38 = tpu.iota {dimensions = array<i32: 1>} : vector<8x8xi32>
      %39 = vector.broadcast %37 : i32 to vector<8x8xi32>
      %40 = arith.addi %39, %38 : vector<8x8xi32>
      %41 = arith.cmpi sgt, %40, %36 : vector<8x8xi32>
      %cst_18 = arith.constant -1.000000e+04 : f32
      %cst_19 = arith.constant 0.000000e+00 : f32
      %42 = vector.broadcast %cst_18 : f32 to vector<8x8xf32>
      %43 = vector.broadcast %cst_19 : f32 to vector<8x8xf32>
      %44 = arith.select %41, %42, %43 : vector<8x8xi1>, vector<8x8xf32>
      %45 = vector.shape_cast %44 : vector<8x8xf32> to vector<1x8x8xf32>
      %46 = vector.broadcast %45 : vector<1x8x8xf32> to vector<4x8x8xf32>
      %47 = arith.addf %32, %46 : vector<4x8x8xf32>
      %c0_20 = arith.constant 0 : index
      %c0_21 = arith.constant 0 : index
      %c0_22 = arith.constant 0 : index
      %48 = vector.load %arg12[%c0_20, %c0_21, %c0_22] : memref<4x8x1xf32, #tpu.memory_space<vmem>>, vector<4x8x1xf32>
      %cst_23 = arith.constant dense<0xFF800000> : vector<4x8xf32>
      %49 = vector.multi_reduction <maximumf>, %47, %cst_23 [2] : vector<4x8x8xf32> to vector<4x8xf32>
      %50 = vector.shape_cast %49 : vector<4x8xf32> to vector<4x8x1xf32>
      %51 = arith.maximumf %48, %50 : vector<4x8x1xf32>
      %52 = arith.subf %48, %51 : vector<4x8x1xf32>
      %53 = math.exp %52 : vector<4x8x1xf32>
      %54 = vector.broadcast %51 : vector<4x8x1xf32> to vector<4x8x8xf32>
      %55 = arith.subf %47, %54 : vector<4x8x8xf32>
      %56 = math.exp %55 : vector<4x8x8xf32>
      %c0_24 = arith.constant 0 : index
      %c0_25 = arith.constant 0 : index
      %c0_26 = arith.constant 0 : index
      %57 = vector.load %arg13[%c0_24, %c0_25, %c0_26] : memref<4x8x1xf32, #tpu.memory_space<vmem>>, vector<4x8x1xf32>
      %58 = arith.mulf %53, %57 : vector<4x8x1xf32>
      %cst_27 = arith.constant dense<0.000000e+00> : vector<4x8xf32>
      %59 = vector.multi_reduction <add>, %56, %cst_27 [2] : vector<4x8x8xf32> to vector<4x8xf32>
      %60 = vector.shape_cast %59 : vector<4x8xf32> to vector<4x8x1xf32>
      %61 = arith.addf %58, %60 : vector<4x8x1xf32>
      %c0_28 = arith.constant 0 : index
      %c0_29 = arith.constant 0 : index
      %c0_30 = arith.constant 0 : index
      %62 = vector.load %arg13[%c0_28, %c0_29, %c0_30] : memref<4x8x1xf32, #tpu.memory_space<vmem>>, vector<4x8x1xf32>
      tpu.vector_store %arg13[%c0_28, %c0_29, %c0_30], %61 {strides = array<i32>} : memref<4x8x1xf32, #tpu.memory_space<vmem>>, vector<4x8x1xf32>,
      %c0_31 = arith.constant 0 : index
      %c0_32 = arith.constant 0 : index
      %c0_33 = arith.constant 0 : index
      %63 = vector.load %arg14[%c0_31, %c0_32, %c0_33] : memref<4x8x8xf32, #tpu.memory_space<vmem>>, vector<4x8x8xf32>
      %64 = vector.broadcast %53 : vector<4x8x1xf32> to vector<4x8x8xf32>
      %65 = arith.mulf %64, %63 : vector<4x8x8xf32>
      "tpu.trace_start"() <{level = 10 : i32, message = "hqk,hkd->hqd"}> : () -> ()
      %cst_34 = arith.constant dense<0.000000e+00> : vector<4x8x8xf32>
      %66 = tpu.matmul %56, %31, %cst_34 {dimension_numbers = #tpu.dot_dimension_numbers<[2], [1], [1], [2], [0, 0, 0, 1, 1, 2], [0], [0]>} : vector<4x8x8xf32>, vector<4x8x8xf32>, vector<4x8x8xf32> -> vector<4x8x8xf32>
      "tpu.trace_stop"() : () -> ()
      %67 = arith.addf %65, %66 : vector<4x8x8xf32>
      %c0_35 = arith.constant 0 : index
      %c0_36 = arith.constant 0 : index
      %c0_37 = arith.constant 0 : index
      %68 = vector.load %arg14[%c0_35, %c0_36, %c0_37] : memref<4x8x8xf32, #tpu.memory_space<vmem>>, vector<4x8x8xf32>
      tpu.vector_store %arg14[%c0_35, %c0_36, %c0_37], %67 {strides = array<i32>} : memref<4x8x8xf32, #tpu.memory_space<vmem>>, vector<4x8x8xf32>,
      %c0_38 = arith.constant 0 : index
      %c0_39 = arith.constant 0 : index
      %c0_40 = arith.constant 0 : index
      %69 = vector.load %arg12[%c0_38, %c0_39, %c0_40] : memref<4x8x1xf32, #tpu.memory_space<vmem>>, vector<4x8x1xf32>
      tpu.vector_store %arg12[%c0_38, %c0_39, %c0_40], %51 {strides = array<i32>} : memref<4x8x1xf32, #tpu.memory_space<vmem>>, vector<4x8x1xf32>,
      %c0_41 = arith.constant 0 : index
      %c0_42 = arith.constant 0 : index
      %c0_43 = arith.constant 0 : index
      %70 = vector.load %arg13[%c0_41, %c0_42, %c0_43] : memref<4x8x1xf32, #tpu.memory_space<vmem>>, vector<4x8x1xf32>
      %71 = tpu.reciprocal %70 {approx = true} : vector<4x8x1xf32> -> vector<4x8x1xf32>
      %c0_44 = arith.constant 0 : index
      %c0_45 = arith.constant 0 : index
      %c0_46 = arith.constant 0 : index
      %72 = vector.load %arg13[%c0_44, %c0_45, %c0_46] : memref<4x8x1xf32, #tpu.memory_space<vmem>>, vector<4x8x1xf32>
      %73 = arith.mulf %72, %71 : vector<4x8x1xf32>
      %cst_47 = arith.constant 2.000000e+00 : f32
      %74 = vector.broadcast %cst_47 : f32 to vector<4x8x1xf32>
      %75 = arith.subf %74, %73 : vector<4x8x1xf32>
      %76 = arith.mulf %71, %75 : vector<4x8x1xf32>
      %c0_48 = arith.constant 0 : index
      %c0_49 = arith.constant 0 : index
      %c0_50 = arith.constant 0 : index
      %77 = vector.load %arg14[%c0_48, %c0_49, %c0_50] : memref<4x8x8xf32, #tpu.memory_space<vmem>>, vector<4x8x8xf32>
      %78 = vector.broadcast %76 : vector<4x8x1xf32> to vector<4x8x8xf32>
      %79 = arith.mulf %77, %78 : vector<4x8x8xf32>
      %80 = vector.extract_strided_slice %79 {offsets = [0, 0, 0], sizes = [1, 8, 8], strides = [1, 1, 1]} : vector<4x8x8xf32> to vector<1x8x8xf32>
      %81 = vector.shape_cast %80 : vector<1x8x8xf32> to vector<8x8xf32>
      %82 = vector.extract_strided_slice %79 {offsets = [1, 0, 0], sizes = [1, 8, 8], strides = [1, 1, 1]} : vector<4x8x8xf32> to vector<1x8x8xf32>
      %83 = vector.shape_cast %82 : vector<1x8x8xf32> to vector<8x8xf32>
      %84 = vector.extract_strided_slice %79 {offsets = [2, 0, 0], sizes = [1, 8, 8], strides = [1, 1, 1]} : vector<4x8x8xf32> to vector<1x8x8xf32>
      %85 = vector.shape_cast %84 : vector<1x8x8xf32> to vector<8x8xf32>
      %86 = vector.extract_strided_slice %79 {offsets = [3, 0, 0], sizes = [1, 8, 8], strides = [1, 1, 1]} : vector<4x8x8xf32> to vector<1x8x8xf32>
      %87 = vector.shape_cast %86 : vector<1x8x8xf32> to vector<8x8xf32>
      %88 = tpu.concatenate %81, %83, %85, %87 in 1 : vector<8x8xf32>, vector<8x8xf32>, vector<8x8xf32>, vector<8x8xf32> -> vector<8x32xf32>
      %c0_51 = arith.constant 0 : index
      %c0_52 = arith.constant 0 : index
      %c0_53 = arith.constant 0 : index
      %89 = vector.load %arg10[%c0_51, %c0_52, %c0_53] : memref<1x8x32xf32, #tpu.memory_space<vmem>>, vector<1x8x32xf32>
      %90 = vector.shape_cast %89 : vector<1x8x32xf32> to vector<8x32xf32>
      %91 = vector.shape_cast %88 : vector<8x32xf32> to vector<1x8x32xf32>
      tpu.vector_store %arg10[%c0_51, %c0_52, %c0_53], %91 {strides = array<i32>} : memref<1x8x32xf32, #tpu.memory_space<vmem>>, vector<1x8x32xf32>,
    } else {
    }
    return
  }
  func.func @transform_0(%arg0: i32, %arg1: i32, %arg2: i32) -> (i32, i32, i32, i32) {
    %c0_i32 = arith.constant 0 : i32
    %c0_i32_0 = arith.constant 0 : i32
    %c0_i32_1 = arith.constant 0 : i32
    return %arg0, %c0_i32, %arg1, %c0_i32_0 : i32, i32, i32, i32
  }
  func.func @transform_1(%arg0: i32, %arg1: i32, %arg2: i32) -> (i32, i32, i32, i32) {
    %0 = arith.minsi %arg2, %arg1 : i32
    %c0_i32 = arith.constant 0 : i32
    %c0_i32_0 = arith.constant 0 : i32
    %c0_i32_1 = arith.constant 0 : i32
    return %arg0, %c0_i32, %0, %c0_i32_0 : i32, i32, i32, i32
  }
  func.func @transform_2(%arg0: i32, %arg1: i32, %arg2: i32) -> (i32, i32, i32, i32) {
    %0 = arith.minsi %arg2, %arg1 : i32
    %c0_i32 = arith.constant 0 : i32
    %c0_i32_0 = arith.constant 0 : i32
    %c0_i32_1 = arith.constant 0 : i32
    return %arg0, %c0_i32, %0, %c0_i32_0 : i32, i32, i32, i32
  }
  func.func @transform_3(%arg0: i32, %arg1: i32, %arg2: i32) -> (i32, i32) {
    %c0_i32 = arith.constant 0 : i32
    %c0_i32_0 = arith.constant 0 : i32
    return %arg1, %c0_i32 : i32, i32
  }
  func.func @transform_4(%arg0: i32, %arg1: i32, %arg2: i32) -> (i32, i32) {
    %c0_i32 = arith.constant 0 : i32
    %c0_i32_0 = arith.constant 0 : i32
    return %arg1, %c0_i32 : i32, i32
  }
  func.func @transform_5(%arg0: i32, %arg1: i32, %arg2: i32) -> (i32, i32) {
    %0 = arith.minsi %arg2, %arg1 : i32
    %c0_i32 = arith.constant 0 : i32
    %c0_i32_0 = arith.constant 0 : i32
    return %0, %c0_i32 : i32, i32
  }
  func.func @transform_6(%arg0: i32, %arg1: i32, %arg2: i32) -> (i32, i32) {
    %0 = arith.minsi %arg2, %arg1 : i32
    %c0_i32 = arith.constant 0 : i32
    %c0_i32_0 = arith.constant 0 : i32
    return %0, %c0_i32 : i32, i32
  }
  func.func @transform_7(%arg0: i32, %arg1: i32, %arg2: i32) -> (i32, i32, i32) {
    %c0_i32 = arith.constant 0 : i32
    %c0_i32_0 = arith.constant 0 : i32
    return %arg0, %arg1, %c0_i32 : i32, i32, i32
  }
}

</mosaic_0001>

<llo_original>
// kernel: mha_forward.3
$region0: #{mha_forward.3}
  #allocation0 [shape = 'u32[]', space=smem, size = 0x4, offset = 0x4, fixed_abs, tag = 'smem constant byte address 0x4 - core index']
  #allocation1 [shape = 'u32[144,128]{1,0:T(1,128)}', space=vmem, size = 0x12000, scoped, tag = 'internal scratch']
  #allocation2 [shape = 'f32[16,96]{1,0:T(8,128)}', space=vmem, size = 0x2000, scoped, tag = 'scratch operand']
  %s0 = inlined_call_operand.vmem [shape: f32[16,32], index: 0, kind: input, shape index: {}]
  %s1 = inlined_call_operand.hbm [shape: f32[32,96], index: 1, kind: input, shape index: {}]
  %s2 = inlined_call_operand.vmem [shape: f32[1,96], index: 2, kind: input, shape index: {}]
  %s3 = inlined_call_operand.vmem [shape: f32[16,96], index: 3, kind: output, shape index: {}]
  %s4 = sld [smem:[#allocation0]]
  $region34: #{mha_forward.3} parent=0
    _
  %s6 = ssub.s32 1, %s4
  %s7 = scalar_select 0, %s6, %s4
  $region1: #{mha_forward.3} parent=0
    #allocation3 [shape = 'u8[16384]{0}', space=vmem, size = 0x4000, scoped, tag = 'input window, operand 1, single buffered']
    #allocation4 [shape = 's32[1]{0}', space=sflag, size = 0x4, scoped, tag = 'scoped memory for mha_forward.3']
    %8 = vsyncpa [#allocation4], 0
    // Predicated region
    $region2: #{mha_forward.3} parent=1 // pred_check
      _
    $region3: #{mha_forward.3} parent=1 // pred_check_branch
      %10 = sbr.rel (0) target = $region5
    $region4: #{mha_forward.3} parent=1 // pred_region
      _
    $region5: #{mha_forward.3} parent=1 // pred_fallthru
      _
    // Predicated region
    $region6: #{mha_forward.3} parent=1 // pred_check
      _
    $region7: #{mha_forward.3} parent=1 // pred_check_branch
      %12 = sbr.rel (0) target = $region9
    $region8: #{mha_forward.3} parent=1 // pred_region
      %s14 = ssub.s32 512, 512
      %15 = vsyncadd [#allocation4], %s14
      %s16 = sshll.u32 [#allocation3], 4
      %s17 = int_to_ptr.vmem [resolvable:$true] %s16
      %22 = dma.hbm_to_vmem [thread:$0]  %s1, 512, %s17, [#allocation4], 128, 128, 8
    $region9: #{mha_forward.3} parent=1 // pred_fallthru
      _
    // Predicated region
    $region10: #{mha_forward.3} parent=1 // pred_check
      _
    $region11: #{mha_forward.3} parent=1 // pred_check_branch
      %24 = sbr.rel (0) target = $region13
    $region12: #{mha_forward.3} parent=1 // pred_region
      _
    $region13: #{mha_forward.3} parent=1 // pred_fallthru
      _
    // Predicated region
    $region14: #{mha_forward.3} parent=1 // pred_check
      _
    $region15: #{mha_forward.3} parent=1 // pred_check_branch
      %26 = sbr.rel (0) target = $region17
    $region16: #{mha_forward.3} parent=1 // pred_region
      %27 = dma.done [#allocation4], 512
    $region17: #{mha_forward.3} parent=1 // pred_fallthru
      _
    %p28 = scmp.eq.s32.totalorder 0, 0
    // Predicated region
    $region18: #{mha_forward.3} parent=1 // pred_check
      %p29 = pneg %p28
    $region19: #{mha_forward.3} parent=1 // pred_check_branch
      %31 = sbr.rel (%p29) target = $region21
    $region20: #{mha_forward.3} parent=1 // pred_region
      %vm32 = vcmask 785408
      %33 = vst.msk [vmem:[#allocation2] sm:$0xff] %vm32, 0.0
      %34 = vst.msk [vmem:[#allocation2 + $0x8] sm:$0xff] %vm32, 0.0
    $region21: #{mha_forward.3} parent=1 // pred_fallthru
      _
    %v35 = vld [vmem:[#allocation2] sm:$0xff]
    %v36 = vld [vmem:[#allocation2 + $0x8] sm:$0xff]
    %v37 = vld [vmem:[%s0] sm:$0xff]
    %v38 = vld [vmem:[%s0 + $0x8] sm:$0xff]
    %v39 = vld [vmem:[#allocation3] sm:$0xff]
    %v40 = vld [vmem:[#allocation3 + $0x8] sm:$0xff]
    %v41 = vld [vmem:[#allocation3 + $0x10] sm:$0xff]
    %v42 = vld [vmem:[#allocation3 + $0x18] sm:$0xff]
    %vm43 = vcmask 261120
    %v45 = vsel %vm43, %v37, 0
    %v48 = vsel %vm43, %v38, 0
    %50 = vmatprep.subr.mxu0 0.0
    %51 = vmatpush1.msra.mxu0 %v39
    %52 = vmatprep.subr.mxu0 0.0
    %53 = vmatpush1.msra.mxu0 %v40
    %54 = vmatprep.subr.mxu0 0.0
    %55 = vmatpush1.msra.mxu0 %v41
    %56 = vmatprep.subr.mxu0 0.0
    %57 = vmatpush1.msra.mxu0 %v42
    %58 = vmatprep.subr.mxu0 0.0
    %59 = vmatpush1.msra.mxu0 0.0
    %60 = vmatprep.subr.mxu0 0.0
    %61 = vmatpush1.msra.mxu0 0.0
    %62 = vmatprep.subr.mxu0 0.0
    %63 = vmatpush1.msra.mxu0 0.0
    %64 = vmatprep.subr.mxu0 0.0
    %65 = vmatpush1.msra.mxu0 0.0
    %66 = vmatprep.subr.mxu0 0.0
    %67 = vmatpush1.msra.mxu0 0.0
    %68 = vmatprep.subr.mxu0 0.0
    %69 = vmatpush1.msra.mxu0 0.0
    %70 = vmatprep.subr.mxu0 0.0
    %71 = vmatpush1.msra.mxu0 0.0
    %72 = vmatprep.subr.mxu0 0.0
    %73 = vmatpush1.msra.mxu0 0.0
    %74 = vmatprep.subr.mxu0 0.0
    %75 = vmatpush1.msra.mxu0 0.0
    %76 = vmatprep.subr.mxu0 0.0
    %77 = vmatpush1.msra.mxu0 0.0
    %78 = vmatprep.subr.mxu0 0.0
    %79 = vmatpush1.msra.mxu0 0.0
    %80 = vmatprep.subr.mxu0 0.0
    %81 = vmatpush1.msra.mxu0 0.0
    %82 = vmatprep.subr.mxu0 0.0
    %83 = vmatpush1.msra.mxu0 0.0
    %84 = vmatprep.subr.mxu0 0.0
    %85 = vmatpush1.msra.mxu0 0.0
    %86 = vmatprep.subr.mxu0 0.0
    %87 = vmatpush1.msra.mxu0 0.0
    %88 = vmatprep.subr.mxu0 0.0
    %89 = vmatpush1.msra.mxu0 0.0
    %90 = vmatprep.subr.mxu0 0.0
    %91 = vmatpush1.msra.mxu0 0.0
    %92 = vmatprep.subr.mxu0 0.0
    %93 = vmatpush1.msra.mxu0 0.0
    %94 = vmatprep.subr.mxu0 0.0
    %95 = vmatpush1.msra.mxu0 0.0
    %96 = vmatprep.subr.mxu0 0.0
    %97 = vmatpush1.msra.mxu0 0.0
    %98 = vmatprep.subr.mxu0 0.0
    %99 = vmatpush1.msra.mxu0 0.0
    %100 = vmatprep.subr.mxu0 0.0
    %101 = vmatpush1.msra.mxu0 0.0
    %102 = vmatprep.subr.mxu0 0.0
    %103 = vmatpush1.msra.mxu0 0.0
    %104 = vmatprep.subr.mxu0 0.0
    %105 = vmatpush1.msra.mxu0 0.0
    %106 = vmatprep.subr.mxu0 0.0
    %107 = vmatpush1.msra.mxu0 0.0
    %108 = vmatprep.subr.mxu0 0.0
    %109 = vmatpush1.msra.mxu0 0.0
    %110 = vmatprep.subr.mxu0 0.0
    %111 = vmatpush1.msra.mxu0 0.0
    %112 = vmatprep.subr.mxu0 0.0
    %113 = vmatpush1.msra.mxu0 0.0
    %114 = vmatprep.mubr.f32.mxu0 0.0
    %115 = vmatmul.mubr.f32.gmra.mrb[0].mxu0 %v45
    %v116 = vpop.f32.mrb[0].mxu0
    %v117 = vadd.f32 0.0, %v116
    %v118 = vpop.f32.mrb[0].mxu0
    %119 = vmatprep.mubr.f32.mxu0 0.0
    %120 = vmatmul.mubr.f32.gmra.mrb[0].mxu0 %v48
    %v121 = vpop.f32.mrb[0].mxu0
    %v122 = vadd.f32 0.0, %v121
    %v123 = vpop.f32.mrb[0].mxu0
    %124 = vdwg.mxu0
    %v125 = vadd.f32 %v35, %v117
    %v126 = vadd.f32 %v36, %v122
    %vm127 = vcmask 785408
    %128 = vst.msk [vmem:[#allocation2] sm:$0xff] %vm127, %v125
    %129 = vst.msk [vmem:[#allocation2 + $0x8] sm:$0xff] %vm127, %v126
    // Predicated region
    $region22: #{mha_forward.3} parent=1 // pred_check
      %p130 = pneg %p28
    $region23: #{mha_forward.3} parent=1 // pred_check_branch
      %132 = sbr.rel (%p130) target = $region25
    $region24: #{mha_forward.3} parent=1 // pred_region
      %v133 = vld [vmem:[#allocation2] sm:$0xff]
      %v134 = vld [vmem:[#allocation2 + $0x8] sm:$0xff]
      %v135 = vld [vmem:[%s2] sm:$0x1]
      %v137 = vlaneseq
      %v138 = vshrl.u32 %v137, 7
      %v139 = vsub.s32 0, %v138
      %v140 = vrot.slane %v135, %v139
      %v142 = vadd.f32 %v133, %v140
      %v143 = vadd.f32 %v134, %v140
      %144 = vst.msk [vmem:[%s3] sm:$0xff] %vm127, %v142
      %145 = vst.msk [vmem:[%s3 + $0x8] sm:$0xff] %vm127, %v143
    $region25: #{mha_forward.3} parent=1 // pred_fallthru
      _
    // Predicated region
    $region26: #{mha_forward.3} parent=1 // pred_check
      _
    $region27: #{mha_forward.3} parent=1 // pred_check_branch
      %147 = sbr.rel (0) target = $region29
    $region28: #{mha_forward.3} parent=1 // pred_region
      _
    $region29: #{mha_forward.3} parent=1 // pred_fallthru
      _
    // Predicated region
    $region30: #{mha_forward.3} parent=1 // pred_check
      _
    $region31: #{mha_forward.3} parent=1 // pred_check_branch
      %149 = sbr.rel (0) target = $region33
    $region32: #{mha_forward.3} parent=1 // pred_region
      _
    $region33: #{mha_forward.3} parent=1 // pred_fallthru
      _
    %150 = vsyncpa [#allocation4], 1

// kernel: mha_forward.5
$region0: #{mha_forward.5}
  #allocation0 [shape = 'u32[]', space=smem, size = 0x4, offset = 0x4, fixed_abs, tag = 'smem constant byte address 0x4 - core index']
  #allocation1 [shape = 'u32[144,128]{1,0:T(1,128)}', space=vmem, size = 0x12000, scoped, tag = 'internal scratch']
  #allocation2 [shape = 'f32[16,32]{1,0:T(8,128)}', space=vmem, size = 0x2000, scoped, tag = 'scratch operand']
  %s0 = inlined_call_operand.vmem [shape: f32[16,32], index: 0, kind: input, shape index: {}]
  %s1 = inlined_call_operand.vmem [shape: f32[32,32], index: 1, kind: input, shape index: {}]
  %s2 = inlined_call_operand.vmem [shape: f32[1,32], index: 2, kind: input, shape index: {}]
  %s3 = inlined_call_operand.hbm [shape: f32[16,32], index: 3, kind: output, shape index: {}]
  %s4 = sld [smem:[#allocation0]]
  $region30: #{mha_forward.5} parent=0
    _
  %s6 = ssub.s32 1, %s4
  %s7 = scalar_select 0, %s6, %s4
  $region1: #{mha_forward.5} parent=0
    #allocation3 [shape = 'u8[8192]{0}', space=vmem, size = 0x2000, scoped, tag = 'output window, operand 0, single buffered']
    #allocation4 [shape = 's32[1]{0}', space=sflag, size = 0x4, scoped, tag = 'scoped memory for mha_forward.5']
    %8 = vsyncpa [#allocation4], 0
    // Predicated region
    $region2: #{mha_forward.5} parent=1 // pred_check
      _
    $region3: #{mha_forward.5} parent=1 // pred_check_branch
      %10 = sbr.rel (0) target = $region5
    $region4: #{mha_forward.5} parent=1 // pred_region
      _
    $region5: #{mha_forward.5} parent=1 // pred_fallthru
      _
    // Predicated region
    $region6: #{mha_forward.5} parent=1 // pred_check
      _
    $region7: #{mha_forward.5} parent=1 // pred_check_branch
      %12 = sbr.rel (0) target = $region9
    $region8: #{mha_forward.5} parent=1 // pred_region
      _
    $region9: #{mha_forward.5} parent=1 // pred_fallthru
      _
    // Predicated region
    $region10: #{mha_forward.5} parent=1 // pred_check
      _
    $region11: #{mha_forward.5} parent=1 // pred_check_branch
      %14 = sbr.rel (0) target = $region13
    $region12: #{mha_forward.5} parent=1 // pred_region
      _
    $region13: #{mha_forward.5} parent=1 // pred_fallthru
      _
    %p15 = scmp.eq.s32.totalorder 0, 0
    // Predicated region
    $region14: #{mha_forward.5} parent=1 // pred_check
      %p16 = pneg %p15
    $region15: #{mha_forward.5} parent=1 // pred_check_branch
      %18 = sbr.rel (%p16) target = $region17
    $region16: #{mha_forward.5} parent=1 // pred_region
      %vm19 = vcmask 261120
      %20 = vst.msk [vmem:[#allocation2] sm:$0xff] %vm19, 0.0
      %21 = vst.msk [vmem:[#allocation2 + $0x8] sm:$0xff] %vm19, 0.0
    $region17: #{mha_forward.5} parent=1 // pred_fallthru
      _
    %v22 = vld [vmem:[#allocation2] sm:$0xff]
    %v23 = vld [vmem:[#allocation2 + $0x8] sm:$0xff]
    %v24 = vld [vmem:[%s0] sm:$0xff]
    %v25 = vld [vmem:[%s0 + $0x8] sm:$0xff]
    %v26 = vld [vmem:[%s1] sm:$0xff]
    %v27 = vld [vmem:[%s1 + $0x8] sm:$0xff]
    %v28 = vld [vmem:[%s1 + $0x10] sm:$0xff]
    %v29 = vld [vmem:[%s1 + $0x18] sm:$0xff]
    %vm30 = vcmask 261120
    %v32 = vsel %vm30, %v24, 0
    %v35 = vsel %vm30, %v25, 0
    %37 = vmatprep.subr.mxu0 0.0
    %38 = vmatpush1.msra.mxu0 %v26
    %39 = vmatprep.subr.mxu0 0.0
    %40 = vmatpush1.msra.mxu0 %v27
    %41 = vmatprep.subr.mxu0 0.0
    %42 = vmatpush1.msra.mxu0 %v28
    %43 = vmatprep.subr.mxu0 0.0
    %44 = vmatpush1.msra.mxu0 %v29
    %45 = vmatprep.subr.mxu0 0.0
    %46 = vmatpush1.msra.mxu0 0.0
    %47 = vmatprep.subr.mxu0 0.0
    %48 = vmatpush1.msra.mxu0 0.0
    %49 = vmatprep.subr.mxu0 0.0
    %50 = vmatpush1.msra.mxu0 0.0
    %51 = vmatprep.subr.mxu0 0.0
    %52 = vmatpush1.msra.mxu0 0.0
    %53 = vmatprep.subr.mxu0 0.0
    %54 = vmatpush1.msra.mxu0 0.0
    %55 = vmatprep.subr.mxu0 0.0
    %56 = vmatpush1.msra.mxu0 0.0
    %57 = vmatprep.subr.mxu0 0.0
    %58 = vmatpush1.msra.mxu0 0.0
    %59 = vmatprep.subr.mxu0 0.0
    %60 = vmatpush1.msra.mxu0 0.0
    %61 = vmatprep.subr.mxu0 0.0
    %62 = vmatpush1.msra.mxu0 0.0
    %63 = vmatprep.subr.mxu0 0.0
    %64 = vmatpush1.msra.mxu0 0.0
    %65 = vmatprep.subr.mxu0 0.0
    %66 = vmatpush1.msra.mxu0 0.0
    %67 = vmatprep.subr.mxu0 0.0
    %68 = vmatpush1.msra.mxu0 0.0
    %69 = vmatprep.subr.mxu0 0.0
    %70 = vmatpush1.msra.mxu0 0.0
    %71 = vmatprep.subr.mxu0 0.0
    %72 = vmatpush1.msra.mxu0 0.0
    %73 = vmatprep.subr.mxu0 0.0
    %74 = vmatpush1.msra.mxu0 0.0
    %75 = vmatprep.subr.mxu0 0.0
    %76 = vmatpush1.msra.mxu0 0.0
    %77 = vmatprep.subr.mxu0 0.0
    %78 = vmatpush1.msra.mxu0 0.0
    %79 = vmatprep.subr.mxu0 0.0
    %80 = vmatpush1.msra.mxu0 0.0
    %81 = vmatprep.subr.mxu0 0.0
    %82 = vmatpush1.msra.mxu0 0.0
    %83 = vmatprep.subr.mxu0 0.0
    %84 = vmatpush1.msra.mxu0 0.0
    %85 = vmatprep.subr.mxu0 0.0
    %86 = vmatpush1.msra.mxu0 0.0
    %87 = vmatprep.subr.mxu0 0.0
    %88 = vmatpush1.msra.mxu0 0.0
    %89 = vmatprep.subr.mxu0 0.0
    %90 = vmatpush1.msra.mxu0 0.0
    %91 = vmatprep.subr.mxu0 0.0
    %92 = vmatpush1.msra.mxu0 0.0
    %93 = vmatprep.subr.mxu0 0.0
    %94 = vmatpush1.msra.mxu0 0.0
    %95 = vmatprep.subr.mxu0 0.0
    %96 = vmatpush1.msra.mxu0 0.0
    %97 = vmatprep.subr.mxu0 0.0
    %98 = vmatpush1.msra.mxu0 0.0
    %99 = vmatprep.subr.mxu0 0.0
    %100 = vmatpush1.msra.mxu0 0.0
    %101 = vmatprep.mubr.f32.mxu0 0.0
    %102 = vmatmul.mubr.f32.gmra.mrb[0].mxu0 %v32
    %v103 = vpop.f32.mrb[0].mxu0
    %v104 = vadd.f32 0.0, %v103
    %v105 = vpop.f32.mrb[0].mxu0
    %106 = vmatprep.mubr.f32.mxu0 0.0
    %107 = vmatmul.mubr.f32.gmra.mrb[0].mxu0 %v35
    %v108 = vpop.f32.mrb[0].mxu0
    %v109 = vadd.f32 0.0, %v108
    %v110 = vpop.f32.mrb[0].mxu0
    %111 = vdwg.mxu0
    %v112 = vadd.f32 %v22, %v104
    %v113 = vadd.f32 %v23, %v109
    %114 = vst.msk [vmem:[#allocation2] sm:$0xff] %vm30, %v112
    %115 = vst.msk [vmem:[#allocation2 + $0x8] sm:$0xff] %vm30, %v113
    // Predicated region
    $region18: #{mha_forward.5} parent=1 // pred_check
      %p116 = pneg %p15
    $region19: #{mha_forward.5} parent=1 // pred_check_branch
      %118 = sbr.rel (%p116) target = $region21
    $region20: #{mha_forward.5} parent=1 // pred_region
      %v119 = vld [vmem:[#allocation2] sm:$0xff]
      %v120 = vld [vmem:[#allocation2 + $0x8] sm:$0xff]
      %v121 = vld [vmem:[%s2] sm:$0x1]
      %v123 = vlaneseq
      %v124 = vshrl.u32 %v123, 7
      %v125 = vsub.s32 0, %v124
      %v126 = vrot.slane %v121, %v125
      %v128 = vadd.f32 %v119, %v126
      %v129 = vadd.f32 %v120, %v126
      %130 = vst.msk [vmem:[#allocation3] sm:$0xff] %vm30, %v128
      %131 = vst.msk [vmem:[#allocation3 + $0x8] sm:$0xff] %vm30, %v129
    $region21: #{mha_forward.5} parent=1 // pred_fallthru
      _
    // Predicated region
    $region22: #{mha_forward.5} parent=1 // pred_check
      _
    $region23: #{mha_forward.5} parent=1 // pred_check_branch
      %133 = sbr.rel (0) target = $region25
    $region24: #{mha_forward.5} parent=1 // pred_region
      %s135 = ssub.s32 256, 256
      %136 = vsyncadd [#allocation4], %s135
      %s137 = sshll.u32 [#allocation3], 4
      %s138 = int_to_ptr.vmem [resolvable:$true] %s137
      %143 = dma.vmem_to_hbm [thread:$0]  %s138, 256, %s3, [#allocation4], 128, 128, 8
    $region25: #{mha_forward.5} parent=1 // pred_fallthru
      _
    // Predicated region
    $region26: #{mha_forward.5} parent=1 // pred_check
      _
    $region27: #{mha_forward.5} parent=1 // pred_check_branch
      %145 = sbr.rel (0) target = $region29
    $region28: #{mha_forward.5} parent=1 // pred_region
      %146 = dma.done [#allocation4], 256
    $region29: #{mha_forward.5} parent=1 // pred_fallthru
      _
    %147 = vsyncpa [#allocation4], 1

// kernel: mha_forward.4
$region0: #{mha_forward.4}
  #allocation0 [shape = 'u32[]', space=smem, size = 0x4, offset = 0x4, fixed_abs, tag = 'smem constant byte address 0x4 - core index']
  #allocation1 [shape = 'u32[144,128]{1,0:T(1,128)}', space=vmem, size = 0x12000, scoped, tag = 'internal scratch']
  #allocation2 [shape = 'f32[4,8,8]{2,1,0:T(8,128)}', space=vmem, size = 0x4000, scoped, tag = 'scratch operand']
  #allocation3 [shape = 'f32[4,8,1]{2,1,0:T(8,128)}', space=vmem, size = 0x4000, scoped, tag = 'scratch operand']
  #allocation4 [shape = 'f32[4,8,1]{2,1,0:T(8,128)}', space=vmem, size = 0x4000, scoped, tag = 'scratch operand']
  #allocation5 [shape = 'f32[4,8,8]{2,1,0:T(8,128)}', space=vmem, size = 0x4000, scoped, tag = 'scratch operand']
  %s0 = inlined_call_operand.vmem [shape: f32[2,4,8,8], index: 0, kind: input, shape index: {}]
  %s1 = inlined_call_operand.vmem [shape: f32[2,4,8,8], index: 1, kind: input, shape index: {}]
  %s2 = inlined_call_operand.vmem [shape: f32[2,4,8,8], index: 2, kind: input, shape index: {}]
  %s3 = inlined_call_operand.vmem [shape: f32[8,2], index: 3, kind: input, shape index: {}, may-alias: {3,5}]
  %s4 = inlined_call_operand.vmem [shape: f32[8,2], index: 4, kind: input, shape index: {}, may-alias: {4,6}]
  %s5 = inlined_call_operand.vmem [shape: f32[8,2], index: 5, kind: input, shape index: {}, may-alias: {3,5}]
  %s6 = inlined_call_operand.vmem [shape: f32[8,2], index: 6, kind: input, shape index: {}, may-alias: {4,6}]
  %s7 = inlined_call_operand.vmem [shape: f32[2,8,32], index: 7, kind: output, shape index: {}]
  %s8 = sld [smem:[#allocation0]]
  $region73: #{mha_forward.4} parent=0
    _
  %s10 = ssub.s32 1, %s8
  %s11 = scalar_select 0, %s10, %s8
  loop: start=0, step=1, limit=4
  $region2: #{mha_forward.4} parent=0 // loop_pre_header
    _
  $region3: #{mha_forward.4} parent=0 // loop_header
    %s13 = sphi 0, %s17
    %p14 = scmp.ge.s32.totalorder %s13, 4
    %s20 = sphi 0, %s39
    %s21 = sphi 0, %s35
    %s22 = sphi 0, %s31
    %s23 = sphi 0, %s20
    %s24 = sphi 0, %s21
    %s25 = sphi 0, %s22
    %s26 = sphi 0, %s23
    %s27 = sphi 0, %s24
    %s28 = sphi 0, %s25
    %s44 = sphi 0, %s46
    %s47 = sphi 0, %s44
    %s48 = sphi 0, %s47
    %s64 = sphi 0, %s48
    %s76 = sphi 0, %s78
    %s79 = sphi 0, %s76
    %s80 = sphi 0, %s79
    %s96 = sphi 0, %s80
    %s108 = sphi 0, %s110
    %s111 = sphi 0, %s108
    %s112 = sphi 0, %s111
    %s128 = sphi 0, %s112
    %s134 = sphi 0, %s136
    %s137 = sphi 0, %s134
    %s138 = sphi 0, %s137
    %s154 = sphi 0, %s138
    %s160 = sphi 0, %s162
    %s163 = sphi 0, %s160
    %s164 = sphi 0, %s163
    %s180 = sphi 0, %s164
    %s190 = sphi 0, %s192
    %s193 = sphi 0, %s190
    %s194 = sphi 0, %s193
    %s210 = sphi 0, %s194
    %s220 = sphi 0, %s222
    %s223 = sphi 0, %s220
    %s224 = sphi 0, %s223
    %s240 = sphi 0, %s224
    %s248 = sphi 0, %s250
    %s251 = sphi 0, %s248
    %s252 = sphi 0, %s251
    %s268 = sphi 0, %s252
  $region4: #{mha_forward.4} parent=0 // loop_header_branch
    %16 = sbr.rel (%p14) target = $region8
  $region5: #{mha_forward.4} parent=0 // loop_body
    %s18 = ssub.s32 %s13, 1
    %s19 = ssub.s32 %s13, 2
    %s29 = sadd.s32 1, %s22
    %p30 = scmp.ge.s32.totalorder %s29, 1
    %s31 = scalar_select %p30, 0, %s29
    %s32 = sadd.s32 1, %s21
    %s33 = scalar_select %p30, %s32, %s21
    %p34 = scmp.ge.s32.totalorder %s33, 1
    %s35 = scalar_select %p34, 0, %s33
    %s36 = sadd.s32 1, %s20
    %s37 = scalar_select %p34, %s36, %s20
    %p38 = scmp.ge.s32.totalorder %s37, 2
    %s39 = scalar_select %p38, 0, %s37
    %s40 = ssub.s32 %s20, %s39
    %s41 = ssub.s32 %s21, %s35
    %s42 = sor.u32 %s40, %s41
    %p43 = scmp.eq.s32.totalorder %s42, 0
    %s45 = sadd.s32 %s44, 1
    %s46 = scalar_select %p43, %s44, %s45
    %p49 = pneg %p43
    %p50 = scmp.eq.s32.totalorder %s13, 1
    %p51 = por %p49, %p50
    %p52 = scmp.ne.s32.totalorder %s44, %s47
    %p53 = scmp.eq.s32.totalorder %s13, 0
    %p54 = por %p52, %p53
    %p55 = scmp.ne.s32.totalorder %s44, %s47
    %p56 = scmp.eq.s32.totalorder %s18, 1
    %p57 = por %p55, %p56
    %p58 = scmp.ne.s32.totalorder %s47, %s48
    %p59 = scmp.eq.s32.totalorder %s18, 0
    %p60 = por %p58, %p59
    %p61 = scmp.ne.s32.totalorder %s47, %s48
    %p62 = scmp.eq.s32.totalorder %s19, 1
    %p63 = por %p61, %p62
    %p65 = scmp.ne.s32.totalorder %s48, %s64
    %p66 = scmp.eq.s32.totalorder %s19, 0
    %p67 = por %p65, %p66
    %p68 = scmp.lt.s32.totalorder %s22, %s21
    %s69 = scalar_select %p68, %s22, %s21
    %p70 = scmp.lt.s32.totalorder %s31, %s35
    %s71 = scalar_select %p70, %s31, %s35
    %s72 = ssub.s32 %s20, %s39
    %s73 = ssub.s32 %s69, %s71
    %s74 = sor.u32 %s72, %s73
    %p75 = scmp.eq.s32.totalorder %s74, 0
    %s77 = sadd.s32 %s76, 1
    %s78 = scalar_select %p75, %s76, %s77
    %p81 = pneg %p75
    %p82 = scmp.eq.s32.totalorder %s13, 1
    %p83 = por %p81, %p82
    %p84 = scmp.ne.s32.totalorder %s76, %s79
    %p85 = scmp.eq.s32.totalorder %s13, 0
    %p86 = por %p84, %p85
    %p87 = scmp.ne.s32.totalorder %s76, %s79
    %p88 = scmp.eq.s32.totalorder %s18, 1
    %p89 = por %p87, %p88
    %p90 = scmp.ne.s32.totalorder %s79, %s80
    %p91 = scmp.eq.s32.totalorder %s18, 0
    %p92 = por %p90, %p91
    %p93 = scmp.ne.s32.totalorder %s79, %s80
    %p94 = scmp.eq.s32.totalorder %s19, 1
    %p95 = por %p93, %p94
    %p97 = scmp.ne.s32.totalorder %s80, %s96
    %p98 = scmp.eq.s32.totalorder %s19, 0
    %p99 = por %p97, %p98
    %p100 = scmp.lt.s32.totalorder %s22, %s21
    %s101 = scalar_select %p100, %s22, %s21
    %p102 = scmp.lt.s32.totalorder %s31, %s35
    %s103 = scalar_select %p102, %s31, %s35
    %s104 = ssub.s32 %s20, %s39
    %s105 = ssub.s32 %s101, %s103
    %s106 = sor.u32 %s104, %s105
    %p107 = scmp.eq.s32.totalorder %s106, 0
    %s109 = sadd.s32 %s108, 1
    %s110 = scalar_select %p107, %s108, %s109
    %p113 = pneg %p107
    %p114 = scmp.eq.s32.totalorder %s13, 1
    %p115 = por %p113, %p114
    %p116 = scmp.ne.s32.totalorder %s108, %s111
    %p117 = scmp.eq.s32.totalorder %s13, 0
    %p118 = por %p116, %p117
    %p119 = scmp.ne.s32.totalorder %s108, %s111
    %p120 = scmp.eq.s32.totalorder %s18, 1
    %p121 = por %p119, %p120
    %p122 = scmp.ne.s32.totalorder %s111, %s112
    %p123 = scmp.eq.s32.totalorder %s18, 0
    %p124 = por %p122, %p123
    %p125 = scmp.ne.s32.totalorder %s111, %s112
    %p126 = scmp.eq.s32.totalorder %s19, 1
    %p127 = por %p125, %p126
    %p129 = scmp.ne.s32.totalorder %s112, %s128
    %p130 = scmp.eq.s32.totalorder %s19, 0
    %p131 = por %p129, %p130
    %s132 = ssub.s32 %s21, %s35
    %p133 = scmp.eq.s32.totalorder %s132, 0
    %s135 = sadd.s32 %s134, 1
    %s136 = scalar_select %p133, %s134, %s135
    %p139 = pneg %p133
    %p140 = scmp.eq.s32.totalorder %s13, 1
    %p141 = por %p139, %p140
    %p142 = scmp.ne.s32.totalorder %s134, %s137
    %p143 = scmp.eq.s32.totalorder %s13, 0
    %p144 = por %p142, %p143
    %p145 = scmp.ne.s32.totalorder %s134, %s137
    %p146 = scmp.eq.s32.totalorder %s18, 1
    %p147 = por %p145, %p146
    %p148 = scmp.ne.s32.totalorder %s137, %s138
    %p149 = scmp.eq.s32.totalorder %s18, 0
    %p150 = por %p148, %p149
    %p151 = scmp.ne.s32.totalorder %s137, %s138
    %p152 = scmp.eq.s32.totalorder %s19, 1
    %p153 = por %p151, %p152
    %p155 = scmp.ne.s32.totalorder %s138, %s154
    %p156 = scmp.eq.s32.totalorder %s19, 0
    %p157 = por %p155, %p156
    %s158 = ssub.s32 %s21, %s35
    %p159 = scmp.eq.s32.totalorder %s158, 0
    %s161 = sadd.s32 %s160, 1
    %s162 = scalar_select %p159, %s160, %s161
    %p165 = pneg %p159
    %p166 = scmp.eq.s32.totalorder %s13, 1
    %p167 = por %p165, %p166
    %p168 = scmp.ne.s32.totalorder %s160, %s163
    %p169 = scmp.eq.s32.totalorder %s13, 0
    %p170 = por %p168, %p169
    %p171 = scmp.ne.s32.totalorder %s160, %s163
    %p172 = scmp.eq.s32.totalorder %s18, 1
    %p173 = por %p171, %p172
    %p174 = scmp.ne.s32.totalorder %s163, %s164
    %p175 = scmp.eq.s32.totalorder %s18, 0
    %p176 = por %p174, %p175
    %p177 = scmp.ne.s32.totalorder %s163, %s164
    %p178 = scmp.eq.s32.totalorder %s19, 1
    %p179 = por %p177, %p178
    %p181 = scmp.ne.s32.totalorder %s164, %s180
    %p182 = scmp.eq.s32.totalorder %s19, 0
    %p183 = por %p181, %p182
    %p184 = scmp.lt.s32.totalorder %s22, %s21
    %s185 = scalar_select %p184, %s22, %s21
    %p186 = scmp.lt.s32.totalorder %s31, %s35
    %s187 = scalar_select %p186, %s31, %s35
    %s188 = ssub.s32 %s185, %s187
    %p189 = scmp.eq.s32.totalorder %s188, 0
    %s191 = sadd.s32 %s190, 1
    %s192 = scalar_select %p189, %s190, %s191
    %p195 = pneg %p189
    %p196 = scmp.eq.s32.totalorder %s13, 1
    %p197 = por %p195, %p196
    %p198 = scmp.ne.s32.totalorder %s190, %s193
    %p199 = scmp.eq.s32.totalorder %s13, 0
    %p200 = por %p198, %p199
    %p201 = scmp.ne.s32.totalorder %s190, %s193
    %p202 = scmp.eq.s32.totalorder %s18, 1
    %p203 = por %p201, %p202
    %p204 = scmp.ne.s32.totalorder %s193, %s194
    %p205 = scmp.eq.s32.totalorder %s18, 0
    %p206 = por %p204, %p205
    %p207 = scmp.ne.s32.totalorder %s193, %s194
    %p208 = scmp.eq.s32.totalorder %s19, 1
    %p209 = por %p207, %p208
    %p211 = scmp.ne.s32.totalorder %s194, %s210
    %p212 = scmp.eq.s32.totalorder %s19, 0
    %p213 = por %p211, %p212
    %p214 = scmp.lt.s32.totalorder %s22, %s21
    %s215 = scalar_select %p214, %s22, %s21
    %p216 = scmp.lt.s32.totalorder %s31, %s35
    %s217 = scalar_select %p216, %s31, %s35
    %s218 = ssub.s32 %s215, %s217
    %p219 = scmp.eq.s32.totalorder %s218, 0
    %s221 = sadd.s32 %s220, 1
    %s222 = scalar_select %p219, %s220, %s221
    %p225 = pneg %p219
    %p226 = scmp.eq.s32.totalorder %s13, 1
    %p227 = por %p225, %p226
    %p228 = scmp.ne.s32.totalorder %s220, %s223
    %p229 = scmp.eq.s32.totalorder %s13, 0
    %p230 = por %p228, %p229
    %p231 = scmp.ne.s32.totalorder %s220, %s223
    %p232 = scmp.eq.s32.totalorder %s18, 1
    %p233 = por %p231, %p232
    %p234 = scmp.ne.s32.totalorder %s223, %s224
    %p235 = scmp.eq.s32.totalorder %s18, 0
    %p236 = por %p234, %p235
    %p237 = scmp.ne.s32.totalorder %s223, %s224
    %p238 = scmp.eq.s32.totalorder %s19, 1
    %p239 = por %p237, %p238
    %p241 = scmp.ne.s32.totalorder %s224, %s240
    %p242 = scmp.eq.s32.totalorder %s19, 0
    %p243 = por %p241, %p242
    %s244 = ssub.s32 %s20, %s39
    %s245 = ssub.s32 %s21, %s35
    %s246 = sor.u32 %s244, %s245
    %p247 = scmp.eq.s32.totalorder %s246, 0
    %s249 = sadd.s32 %s248, 1
    %s250 = scalar_select %p247, %s248, %s249
    %p253 = pneg %p247
    %p254 = scmp.eq.s32.totalorder %s13, 1
    %p255 = por %p253, %p254
    %p256 = scmp.ne.s32.totalorder %s248, %s251
    %p257 = scmp.eq.s32.totalorder %s13, 0
    %p258 = por %p256, %p257
    %p259 = scmp.ne.s32.totalorder %s248, %s251
    %p260 = scmp.eq.s32.totalorder %s18, 1
    %p261 = por %p259, %p260
    %p262 = scmp.ne.s32.totalorder %s251, %s252
    %p263 = scmp.eq.s32.totalorder %s18, 0
    %p264 = por %p262, %p263
    %p265 = scmp.ne.s32.totalorder %s251, %s252
    %p266 = scmp.eq.s32.totalorder %s19, 1
    %p267 = por %p265, %p266
    %p269 = scmp.ne.s32.totalorder %s252, %s268
    %p270 = scmp.eq.s32.totalorder %s19, 0
    %p271 = por %p269, %p270
    %p272 = scmp.le.s32.totalorder 1, %s13
    %p273 = scmp.lt.s32.totalorder %s13, 3
    %p274 = pnand %p272, %p273
    %p275 = pneg %p274
    // Predicated region
    $region9: #{mha_forward.4} parent=5 // pred_check
      _
    $region10: #{mha_forward.4} parent=5 // pred_check_branch
      %277 = sbr.rel (%p274) target = $region12
    $region11: #{mha_forward.4} parent=5 // pred_region
      %s278 = ssub.s32 %s13, 1
      // Predicated region
      $region13: #{mha_forward.4} parent=11 // pred_check
        %p279 = pneg %p150
      $region14: #{mha_forward.4} parent=11 // pred_check_branch
        %281 = sbr.rel (%p279) target = $region16
      $region15: #{mha_forward.4} parent=11 // pred_region
        %p282 = scmp.lt.s32.totalorder %s24, 0
        %s283 = scalar_select %p282, %s24, 0
        %s284 = smul.addr %s283, 8
        %s285 = scalar_lea.vmem %s3, %s284
      $region16: #{mha_forward.4} parent=11 // pred_fallthru
        _
      // Predicated region
      $region17: #{mha_forward.4} parent=11 // pred_check
        %p286 = pneg %p176
      $region18: #{mha_forward.4} parent=11 // pred_check_branch
        %288 = sbr.rel (%p286) target = $region20
      $region19: #{mha_forward.4} parent=11 // pred_region
        %p289 = scmp.lt.s32.totalorder %s24, 0
        %s290 = scalar_select %p289, %s24, 0
        %s291 = smul.addr %s290, 8
        %s292 = scalar_lea.vmem %s4, %s291
      $region20: #{mha_forward.4} parent=11 // pred_fallthru
        _
      // Predicated region
      $region21: #{mha_forward.4} parent=11 // pred_check
        %p293 = pneg %p206
      $region22: #{mha_forward.4} parent=11 // pred_check_branch
        %295 = sbr.rel (%p293) target = $region24
      $region23: #{mha_forward.4} parent=11 // pred_region
        %p296 = scmp.lt.s32.totalorder %s25, %s24
        %s297 = scalar_select %p296, %s25, %s24
        %p298 = scmp.lt.s32.totalorder %s297, 0
        %s299 = scalar_select %p298, %s297, 0
        %s300 = smul.addr %s299, 8
        %s301 = scalar_lea.vmem %s5, %s300
        %p302 = scmp.lt.s32.totalorder %s25, %s24
        %s303 = scalar_select %p302, %s25, %s24
      $region24: #{mha_forward.4} parent=11 // pred_fallthru
        _
      // Predicated region
      $region25: #{mha_forward.4} parent=11 // pred_check
        %p304 = pneg %p236
      $region26: #{mha_forward.4} parent=11 // pred_check_branch
        %306 = sbr.rel (%p304) target = $region28
      $region27: #{mha_forward.4} parent=11 // pred_region
        %p307 = scmp.lt.s32.totalorder %s25, %s24
        %s308 = scalar_select %p307, %s25, %s24
        %p309 = scmp.lt.s32.totalorder %s308, 0
        %s310 = scalar_select %p309, %s308, 0
        %s311 = smul.addr %s310, 8
        %s312 = scalar_lea.vmem %s6, %s311
        %p313 = scmp.lt.s32.totalorder %s25, %s24
        %s314 = scalar_select %p313, %s25, %s24
      $region28: #{mha_forward.4} parent=11 // pred_fallthru
        _
    $region12: #{mha_forward.4} parent=5 // pred_fallthru
      _
    %p315 = scmp.lt.s32.totalorder %s13, 2
    // Predicated region
    $region29: #{mha_forward.4} parent=5 // pred_check
      %p316 = pneg %p315
    $region30: #{mha_forward.4} parent=5 // pred_check_branch
      %318 = sbr.rel (%p316) target = $region32
    $region31: #{mha_forward.4} parent=5 // pred_region
      // Predicated region
      $region33: #{mha_forward.4} parent=31 // pred_check
        %p319 = pneg %p54
      $region34: #{mha_forward.4} parent=31 // pred_check_branch
        %321 = sbr.rel (%p319) target = $region36
      $region35: #{mha_forward.4} parent=31 // pred_region
        %p322 = scmp.lt.s32.totalorder %s20, 1
        %s323 = scalar_select %p322, %s20, 1
        %p324 = scmp.lt.s32.totalorder %s21, 0
        %s325 = scalar_select %p324, %s21, 0
        %s326 = smul.addr %s323, 4
        %s327 = sadd.s32 %s325, %s326
        %s328 = smul.addr %s327, 8
        %s329 = scalar_lea.vmem %s0, %s328
      $region36: #{mha_forward.4} parent=31 // pred_fallthru
        _
      // Predicated region
      $region37: #{mha_forward.4} parent=31 // pred_check
        %p330 = pneg %p86
      $region38: #{mha_forward.4} parent=31 // pred_check_branch
        %332 = sbr.rel (%p330) target = $region40
      $region39: #{mha_forward.4} parent=31 // pred_region
        %p333 = scmp.lt.s32.totalorder %s22, %s21
        %s334 = scalar_select %p333, %s22, %s21
        %p335 = scmp.lt.s32.totalorder %s20, 1
        %s336 = scalar_select %p335, %s20, 1
        %p337 = scmp.lt.s32.totalorder %s334, 0
        %s338 = scalar_select %p337, %s334, 0
        %s339 = smul.addr %s336, 4
        %s340 = sadd.s32 %s338, %s339
        %s341 = smul.addr %s340, 8
        %s342 = scalar_lea.vmem %s1, %s341
        %p343 = scmp.lt.s32.totalorder %s22, %s21
        %s344 = scalar_select %p343, %s22, %s21
      $region40: #{mha_forward.4} parent=31 // pred_fallthru
        _
      // Predicated region
      $region41: #{mha_forward.4} parent=31 // pred_check
        %p345 = pneg %p118
      $region42: #{mha_forward.4} parent=31 // pred_check_branch
        %347 = sbr.rel (%p345) target = $region44
      $region43: #{mha_forward.4} parent=31 // pred_region
        %p348 = scmp.lt.s32.totalorder %s22, %s21
        %s349 = scalar_select %p348, %s22, %s21
        %p350 = scmp.lt.s32.totalorder %s20, 1
        %s351 = scalar_select %p350, %s20, 1
        %p352 = scmp.lt.s32.totalorder %s349, 0
        %s353 = scalar_select %p352, %s349, 0
        %s354 = smul.addr %s351, 4
        %s355 = sadd.s32 %s353, %s354
        %s356 = smul.addr %s355, 8
        %s357 = scalar_lea.vmem %s2, %s356
        %p358 = scmp.lt.s32.totalorder %s22, %s21
        %s359 = scalar_select %p358, %s22, %s21
      $region44: #{mha_forward.4} parent=31 // pred_fallthru
        _
    $region32: #{mha_forward.4} parent=5 // pred_fallthru
      _
    %p360 = scmp.le.s32.totalorder 1, %s13
    %p361 = scmp.lt.s32.totalorder %s13, 3
    %p362 = pnand %p360, %p361
    %p363 = pneg %p362
    // Predicated region
    $region45: #{mha_forward.4} parent=5 // pred_check
      _
    $region46: #{mha_forward.4} parent=5 // pred_check_branch
      %365 = sbr.rel (%p362) target = $region48
    $region47: #{mha_forward.4} parent=5 // pred_region
      %s366 = ssub.s32 %s13, 1
      %p367 = scmp.lt.s32.totalorder %s23, 1
      %s368 = scalar_select %p367, %s23, 1
      %p369 = scmp.lt.s32.totalorder %s24, 0
      %s370 = scalar_select %p369, %s24, 0
      %s371 = smul.addr %s368, 4
      %s372 = sadd.s32 %s370, %s371
      %s373 = smul.addr %s372, 8
      %s374 = scalar_lea.vmem %s0, %s373
      %p375 = pneg %p60
      %p376 = pneg %p57
      %p377 = scmp.lt.s32.totalorder %s25, %s24
      %s378 = scalar_select %p377, %s25, %s24
      %p379 = scmp.lt.s32.totalorder %s23, 1
      %s380 = scalar_select %p379, %s23, 1
      %p381 = scmp.lt.s32.totalorder %s378, 0
      %s382 = scalar_select %p381, %s378, 0
      %s383 = smul.addr %s380, 4
      %s384 = sadd.s32 %s382, %s383
      %s385 = smul.addr %s384, 8
      %s386 = scalar_lea.vmem %s1, %s385
      %p387 = pneg %p92
      %p388 = pneg %p89
      %p389 = scmp.lt.s32.totalorder %s25, %s24
      %s390 = scalar_select %p389, %s25, %s24
      %p391 = scmp.lt.s32.totalorder %s23, 1
      %s392 = scalar_select %p391, %s23, 1
      %p393 = scmp.lt.s32.totalorder %s390, 0
      %s394 = scalar_select %p393, %s390, 0
      %s395 = smul.addr %s392, 4
      %s396 = sadd.s32 %s394, %s395
      %s397 = smul.addr %s396, 8
      %s398 = scalar_lea.vmem %s2, %s397
      %p399 = pneg %p124
      %p400 = pneg %p121
      %p401 = scmp.lt.s32.totalorder %s24, 0
      %s402 = scalar_select %p401, %s24, 0
      %s403 = smul.addr %s402, 8
      %s404 = scalar_lea.vmem %s3, %s403
      %p405 = pneg %p150
      %p406 = pneg %p147
      %p407 = scmp.lt.s32.totalorder %s24, 0
      %s408 = scalar_select %p407, %s24, 0
      %s409 = smul.addr %s408, 8
      %s410 = scalar_lea.vmem %s4, %s409
      %p411 = pneg %p176
      %p412 = pneg %p173
      %p413 = scmp.lt.s32.totalorder %s25, %s24
      %s414 = scalar_select %p413, %s25, %s24
      %p415 = scmp.lt.s32.totalorder %s414, 0
      %s416 = scalar_select %p415, %s414, 0
      %s417 = smul.addr %s416, 8
      %s418 = scalar_lea.vmem %s5, %s417
      %p419 = pneg %p206
      %p420 = pneg %p203
      %p421 = scmp.lt.s32.totalorder %s25, %s24
      %s422 = scalar_select %p421, %s25, %s24
      %p423 = scmp.lt.s32.totalorder %s422, 0
      %s424 = scalar_select %p423, %s422, 0
      %s425 = smul.addr %s424, 8
      %s426 = scalar_lea.vmem %s6, %s425
      %p427 = pneg %p236
      %p428 = pneg %p233
      %p429 = pneg %p264
      %p430 = pneg %p261
      %p431 = scmp.lt.s32.totalorder %s23, 1
      %s432 = scalar_select %p431, %s23, 1
      %p433 = scmp.lt.s32.totalorder %s24, 0
      %s434 = scalar_select %p433, %s24, 0
      %s435 = sadd.s32 %s434, %s432
      %s436 = smul.addr %s435, 8
      %s437 = scalar_lea.vmem %s7, %s436
      %p438 = scmp.lt.s32.totalorder %s23, 1
      %s439 = scalar_select %p438, %s23, 1
      %p440 = scmp.lt.s32.totalorder %s24, 0
      %s441 = scalar_select %p440, %s24, 0
      %s442 = smul.addr %s439, 4
      %s443 = sadd.s32 %s441, %s442
      %s444 = smul.addr %s443, 8
      %s445 = scalar_lea.vmem %s0, %s444
      %p446 = scmp.lt.s32.totalorder %s25, %s24
      %s447 = scalar_select %p446, %s25, %s24
      %p448 = scmp.lt.s32.totalorder %s23, 1
      %s449 = scalar_select %p448, %s23, 1
      %p450 = scmp.lt.s32.totalorder %s447, 0
      %s451 = scalar_select %p450, %s447, 0
      %s452 = smul.addr %s449, 4
      %s453 = sadd.s32 %s451, %s452
      %s454 = smul.addr %s453, 8
      %s455 = scalar_lea.vmem %s1, %s454
      %p456 = scmp.lt.s32.totalorder %s25, %s24
      %s457 = scalar_select %p456, %s25, %s24
      %p458 = scmp.lt.s32.totalorder %s25, %s24
      %s459 = scalar_select %p458, %s25, %s24
      %p460 = scmp.lt.s32.totalorder %s23, 1
      %s461 = scalar_select %p460, %s23, 1
      %p462 = scmp.lt.s32.totalorder %s459, 0
      %s463 = scalar_select %p462, %s459, 0
      %s464 = smul.addr %s461, 4
      %s465 = sadd.s32 %s463, %s464
      %s466 = smul.addr %s465, 8
      %s467 = scalar_lea.vmem %s2, %s466
      %p468 = scmp.lt.s32.totalorder %s25, %s24
      %s469 = scalar_select %p468, %s25, %s24
      %p470 = scmp.lt.s32.totalorder %s24, 0
      %s471 = scalar_select %p470, %s24, 0
      %s472 = smul.addr %s471, 8
      %s473 = scalar_lea.vmem %s3, %s472
      %p474 = scmp.lt.s32.totalorder %s24, 0
      %s475 = scalar_select %p474, %s24, 0
      %s476 = smul.addr %s475, 8
      %s477 = scalar_lea.vmem %s4, %s476
      %p478 = scmp.lt.s32.totalorder %s25, %s24
      %s479 = scalar_select %p478, %s25, %s24
      %p480 = scmp.lt.s32.totalorder %s479, 0
      %s481 = scalar_select %p480, %s479, 0
      %s482 = smul.addr %s481, 8
      %s483 = scalar_lea.vmem %s5, %s482
      %p484 = scmp.lt.s32.totalorder %s25, %s24
      %s485 = scalar_select %p484, %s25, %s24
      %p486 = scmp.lt.s32.totalorder %s25, %s24
      %s487 = scalar_select %p486, %s25, %s24
      %p488 = scmp.lt.s32.totalorder %s487, 0
      %s489 = scalar_select %p488, %s487, 0
      %s490 = smul.addr %s489, 8
      %s491 = scalar_lea.vmem %s6, %s490
      %p492 = scmp.lt.s32.totalorder %s25, %s24
      %s493 = scalar_select %p492, %s25, %s24
      %p494 = scmp.lt.s32.totalorder %s23, 1
      %s495 = scalar_select %p494, %s23, 1
      %p496 = scmp.lt.s32.totalorder %s24, 0
      %s497 = scalar_select %p496, %s24, 0
      %s498 = sadd.s32 %s497, %s495
      %s499 = smul.addr %s498, 8
      %s500 = scalar_lea.vmem %s7, %s499
      %p501 = scmp.eq.s32.totalorder %s25, 0
      // Predicated region
      $region49: #{mha_forward.4} parent=47 // pred_check
        %p502 = pneg %p501
      $region50: #{mha_forward.4} parent=47 // pred_check_branch
        %504 = sbr.rel (%p502) target = $region52
      $region51: #{mha_forward.4} parent=47 // pred_region
        %v505 = vld [vmem:[%s445] sm:$0xff]
        %v506 = vld [vmem:[%s445 + $0x8] sm:$0xff]
        %v507 = vld [vmem:[%s445 + $0x10] sm:$0xff]
        %v508 = vld [vmem:[%s445 + $0x18] sm:$0xff]
        %v509 = vld [vmem:[%s473] sm:$0xff]
        %v510 = vld [vmem:[%s477] sm:$0xff]
        %v511 = vmul.f32 %v505, %v509
        %v512 = vmul.f32 %v506, %v509
        %v513 = vmul.f32 %v507, %v509
        %v514 = vmul.f32 %v508, %v509
        %516 = vrot.lane.b32.xlu0 %v510, 2
        %v517 = vpop.permute.xlu0 %516
        %v519 = vmul.f32 %v505, %v517
        %v520 = vmul.f32 %v506, %v517
        %v521 = vmul.f32 %v507, %v517
        %v522 = vmul.f32 %v508, %v517
        %527 = vrot.lane.b32.xlu0 %v519, 126
        %v528 = vpop.permute.xlu0 %527
        %529 = vrot.lane.b32.xlu0 %v520, 126
        %v530 = vpop.permute.xlu0 %529
        %531 = vrot.lane.b32.xlu0 %v521, 126
        %v532 = vpop.permute.xlu0 %531
        %533 = vrot.lane.b32.xlu0 %v522, 126
        %v534 = vpop.permute.xlu0 %533
        %v539 = vsub.f32 %v511, %v528
        %v540 = vsub.f32 %v512, %v530
        %v541 = vsub.f32 %v513, %v532
        %v542 = vsub.f32 %v514, %v534
        %v543 = vmul.f32 %v505, %v510
        %v544 = vmul.f32 %v506, %v510
        %v545 = vmul.f32 %v507, %v510
        %v546 = vmul.f32 %v508, %v510
        %548 = vrot.lane.b32.xlu0 %v509, 2
        %v549 = vpop.permute.xlu0 %548
        %v551 = vmul.f32 %v505, %v549
        %v552 = vmul.f32 %v506, %v549
        %v553 = vmul.f32 %v507, %v549
        %v554 = vmul.f32 %v508, %v549
        %559 = vrot.lane.b32.xlu0 %v551, 126
        %v560 = vpop.permute.xlu0 %559
        %561 = vrot.lane.b32.xlu0 %v552, 126
        %v562 = vpop.permute.xlu0 %561
        %563 = vrot.lane.b32.xlu0 %v553, 126
        %v564 = vpop.permute.xlu0 %563
        %565 = vrot.lane.b32.xlu0 %v554, 126
        %v566 = vpop.permute.xlu0 %565
        %v571 = vadd.f32 %v543, %v560
        %v572 = vadd.f32 %v544, %v562
        %v573 = vadd.f32 %v545, %v564
        %v574 = vadd.f32 %v546, %v566
        %579 = vrot.lane.b32.xlu0 %v571, 2
        %v580 = vpop.permute.xlu0 %579
        %581 = vrot.lane.b32.xlu0 %v572, 2
        %v582 = vpop.permute.xlu0 %581
        %583 = vrot.lane.b32.xlu0 %v573, 2
        %v584 = vpop.permute.xlu0 %583
        %585 = vrot.lane.b32.xlu0 %v574, 2
        %v586 = vpop.permute.xlu0 %585
        %vm591 = vcmask 15360
        %v592 = vsel %vm591, %v539, %v580
        %v593 = vsel %vm591, %v540, %v582
        %v594 = vsel %vm591, %v541, %v584
        %v595 = vsel %vm591, %v542, %v586
        %vm596 = vcmask 31744
        %v597 = vsel %vm596, %v592, %v505
        %v598 = vsel %vm596, %v593, %v506
        %v599 = vsel %vm596, %v594, %v507
        %v600 = vsel %vm596, %v595, %v508
        %v601 = vmul.f32 %v597, 0.35355338
        %v602 = vmul.f32 %v598, 0.35355338
        %v603 = vmul.f32 %v599, 0.35355338
        %v604 = vmul.f32 %v600, 0.35355338
        %vm605 = vcmask 64512
        %606 = vst.msk [vmem:[#allocation2] sm:$0xff] %vm605, %v601
        %607 = vst.msk [vmem:[#allocation2 + $0x8] sm:$0xff] %vm605, %v602
        %608 = vst.msk [vmem:[#allocation2 + $0x10] sm:$0xff] %vm605, %v603
        %609 = vst.msk [vmem:[#allocation2 + $0x18] sm:$0xff] %vm605, %v604
        %vm610 = vcmask 7168
        %611 = vst.msk [vmem:[#allocation3] sm:$0xff] %vm610, -inf
        %612 = vst.msk [vmem:[#allocation3 + $0x8] sm:$0xff] %vm610, -inf
        %613 = vst.msk [vmem:[#allocation3 + $0x10] sm:$0xff] %vm610, -inf
        %614 = vst.msk [vmem:[#allocation3 + $0x18] sm:$0xff] %vm610, -inf
        %615 = vst.msk [vmem:[#allocation4] sm:$0xff] %vm610, 0.0
        %616 = vst.msk [vmem:[#allocation4 + $0x8] sm:$0xff] %vm610, 0.0
        %617 = vst.msk [vmem:[#allocation4 + $0x10] sm:$0xff] %vm610, 0.0
        %618 = vst.msk [vmem:[#allocation4 + $0x18] sm:$0xff] %vm610, 0.0
        %619 = vst.msk [vmem:[#allocation5] sm:$0xff] %vm605, 0.0
        %620 = vst.msk [vmem:[#allocation5 + $0x8] sm:$0xff] %vm605, 0.0
        %621 = vst.msk [vmem:[#allocation5 + $0x10] sm:$0xff] %vm605, 0.0
        %622 = vst.msk [vmem:[#allocation5 + $0x18] sm:$0xff] %vm605, 0.0
      $region52: #{mha_forward.4} parent=47 // pred_fallthru
        _
      %p623 = scmp.lt.s32.totalorder %s25, %s24
      // Predicated region
      $region53: #{mha_forward.4} parent=47 // pred_check
        %p624 = pneg %p623
      $region54: #{mha_forward.4} parent=47 // pred_check_branch
        %626 = sbr.rel (%p624) target = $region56
      $region55: #{mha_forward.4} parent=47 // pred_region
        %v627 = vld [vmem:[#allocation2] sm:$0xff]
        %v628 = vld [vmem:[#allocation2 + $0x8] sm:$0xff]
        %v629 = vld [vmem:[#allocation2 + $0x10] sm:$0xff]
        %v630 = vld [vmem:[#allocation2 + $0x18] sm:$0xff]
        %v631 = vld [vmem:[%s455] sm:$0xff]
        %v632 = vld [vmem:[%s455 + $0x8] sm:$0xff]
        %v633 = vld [vmem:[%s455 + $0x10] sm:$0xff]
        %v634 = vld [vmem:[%s455 + $0x18] sm:$0xff]
        %v635 = vld [vmem:[%s483] sm:$0xff]
        %v636 = vld [vmem:[%s491] sm:$0xff]
        %v637 = vmul.f32 %v631, %v635
        %v638 = vmul.f32 %v632, %v635
        %v639 = vmul.f32 %v633, %v635
        %v640 = vmul.f32 %v634, %v635
        %642 = vrot.lane.b32.xlu0 %v636, 2
        %v643 = vpop.permute.xlu0 %642
        %v645 = vmul.f32 %v631, %v643
        %v646 = vmul.f32 %v632, %v643
        %v647 = vmul.f32 %v633, %v643
        %v648 = vmul.f32 %v634, %v643
        %653 = vrot.lane.b32.xlu0 %v645, 126
        %v654 = vpop.permute.xlu0 %653
        %655 = vrot.lane.b32.xlu0 %v646, 126
        %v656 = vpop.permute.xlu0 %655
        %657 = vrot.lane.b32.xlu0 %v647, 126
        %v658 = vpop.permute.xlu0 %657
        %659 = vrot.lane.b32.xlu0 %v648, 126
        %v660 = vpop.permute.xlu0 %659
        %v665 = vsub.f32 %v637, %v654
        %v666 = vsub.f32 %v638, %v656
        %v667 = vsub.f32 %v639, %v658
        %v668 = vsub.f32 %v640, %v660
        %v669 = vmul.f32 %v631, %v636
        %v670 = vmul.f32 %v632, %v636
        %v671 = vmul.f32 %v633, %v636
        %v672 = vmul.f32 %v634, %v636
        %674 = vrot.lane.b32.xlu0 %v635, 2
        %v675 = vpop.permute.xlu0 %674
        %v677 = vmul.f32 %v631, %v675
        %v678 = vmul.f32 %v632, %v675
        %v679 = vmul.f32 %v633, %v675
        %v680 = vmul.f32 %v634, %v675
        %685 = vrot.lane.b32.xlu0 %v677, 126
        %v686 = vpop.permute.xlu0 %685
        %687 = vrot.lane.b32.xlu0 %v678, 126
        %v688 = vpop.permute.xlu0 %687
        %689 = vrot.lane.b32.xlu0 %v679, 126
        %v690 = vpop.permute.xlu0 %689
        %691 = vrot.lane.b32.xlu0 %v680, 126
        %v692 = vpop.permute.xlu0 %691
        %v697 = vadd.f32 %v669, %v686
        %v698 = vadd.f32 %v670, %v688
        %v699 = vadd.f32 %v671, %v690
        %v700 = vadd.f32 %v672, %v692
        %705 = vrot.lane.b32.xlu0 %v697, 2
        %v706 = vpop.permute.xlu0 %705
        %707 = vrot.lane.b32.xlu0 %v698, 2
        %v708 = vpop.permute.xlu0 %707
        %709 = vrot.lane.b32.xlu0 %v699, 2
        %v710 = vpop.permute.xlu0 %709
        %711 = vrot.lane.b32.xlu0 %v700, 2
        %v712 = vpop.permute.xlu0 %711
        %vm717 = vcmask 15360
        %v718 = vsel %vm717, %v665, %v706
        %v719 = vsel %vm717, %v666, %v708
        %v720 = vsel %vm717, %v667, %v710
        %v721 = vsel %vm717, %v668, %v712
        %vm722 = vcmask 31744
        %v723 = vsel %vm722, %v718, %v631
        %v724 = vsel %vm722, %v719, %v632
        %v725 = vsel %vm722, %v720, %v633
        %v726 = vsel %vm722, %v721, %v634
        %v727 = vld [vmem:[%s467] sm:$0xff]
        %v728 = vld [vmem:[%s467 + $0x8] sm:$0xff]
        %v729 = vld [vmem:[%s467 + $0x10] sm:$0xff]
        %v730 = vld [vmem:[%s467 + $0x18] sm:$0xff]
        %vm731 = vcmask 64512
        %v733 = vsel %vm731, %v627, 0
        %v736 = vsel %vm731, %v723, 0
        %738 = vmatprep.subr.mxu0 0.0
        %739 = vmatpush1.xpose.msra.mxu0 %v736
        %740 = vmatprep.subr.mxu0 0.0
        %741 = vmatpush1.xpose.msra.mxu0 0.0
        %742 = vmatprep.subr.mxu0 0.0
        %743 = vmatpush1.xpose.msra.mxu0 0.0
        %744 = vmatprep.subr.mxu0 0.0
        %745 = vmatpush1.xpose.msra.mxu0 0.0
        %746 = vmatprep.subr.mxu0 0.0
        %747 = vmatpush1.xpose.msra.mxu0 0.0
        %748 = vmatprep.subr.mxu0 0.0
        %749 = vmatpush1.xpose.msra.mxu0 0.0
        %750 = vmatprep.subr.mxu0 0.0
        %751 = vmatpush1.xpose.msra.mxu0 0.0
        %752 = vmatprep.subr.mxu0 0.0
        %753 = vmatpush1.xpose.msra.mxu0 0.0
        %754 = vmatprep.subr.mxu0 0.0
        %755 = vmatpush1.xpose.msra.mxu0 0.0
        %756 = vmatprep.subr.mxu0 0.0
        %757 = vmatpush1.xpose.msra.mxu0 0.0
        %758 = vmatprep.subr.mxu0 0.0
        %759 = vmatpush1.xpose.msra.mxu0 0.0
        %760 = vmatprep.subr.mxu0 0.0
        %761 = vmatpush1.xpose.msra.mxu0 0.0
        %762 = vmatprep.subr.mxu0 0.0
        %763 = vmatpush1.xpose.msra.mxu0 0.0
        %764 = vmatprep.subr.mxu0 0.0
        %765 = vmatpush1.xpose.msra.mxu0 0.0
        %766 = vmatprep.subr.mxu0 0.0
        %767 = vmatpush1.xpose.msra.mxu0 0.0
        %768 = vmatprep.subr.mxu0 0.0
        %769 = vmatpush1.xpose.msra.mxu0 0.0
        %770 = vmatprep.subr.mxu0 0.0
        %771 = vmatpush1.xpose.msra.mxu0 0.0
        %772 = vmatprep.subr.mxu0 0.0
        %773 = vmatpush1.xpose.msra.mxu0 0.0
        %774 = vmatprep.subr.mxu0 0.0
        %775 = vmatpush1.xpose.msra.mxu0 0.0
        %776 = vmatprep.subr.mxu0 0.0
        %777 = vmatpush1.xpose.msra.mxu0 0.0
        %778 = vmatprep.subr.mxu0 0.0
        %779 = vmatpush1.xpose.msra.mxu0 0.0
        %780 = vmatprep.subr.mxu0 0.0
        %781 = vmatpush1.xpose.msra.mxu0 0.0
        %782 = vmatprep.subr.mxu0 0.0
        %783 = vmatpush1.xpose.msra.mxu0 0.0
        %784 = vmatprep.subr.mxu0 0.0
        %785 = vmatpush1.xpose.msra.mxu0 0.0
        %786 = vmatprep.subr.mxu0 0.0
        %787 = vmatpush1.xpose.msra.mxu0 0.0
        %788 = vmatprep.subr.mxu0 0.0
        %789 = vmatpush1.xpose.msra.mxu0 0.0
        %790 = vmatprep.subr.mxu0 0.0
        %791 = vmatpush1.xpose.msra.mxu0 0.0
        %792 = vmatprep.subr.mxu0 0.0
        %793 = vmatpush1.xpose.msra.mxu0 0.0
        %794 = vmatprep.subr.mxu0 0.0
        %795 = vmatpush1.xpose.msra.mxu0 0.0
        %796 = vmatprep.subr.mxu0 0.0
        %797 = vmatpush1.xpose.msra.mxu0 0.0
        %798 = vmatprep.subr.mxu0 0.0
        %799 = vmatpush1.xpose.msra.mxu0 0.0
        %800 = vmatprep.subr.mxu0 0.0
        %801 = vmatpush1.xpose.msra.mxu0 0.0
        %802 = vmatprep.mubr.f32.mxu0 0.0
        %803 = vmatmul.mubr.f32.gmra.mrb[0].mxu0 %v733
        %v804 = vpop.f32.mrb[0].mxu0
        %v805 = vadd.f32 0.0, %v804
        %v806 = vpop.f32.mrb[0].mxu0
        %807 = vdwg.mxu0
        %v809 = vsel %vm731, %v628, 0
        %v812 = vsel %vm731, %v724, 0
        %814 = vmatprep.subr.mxu0 0.0
        %815 = vmatpush1.xpose.msra.mxu0 %v812
        %816 = vmatprep.subr.mxu0 0.0
        %817 = vmatpush1.xpose.msra.mxu0 0.0
        %818 = vmatprep.subr.mxu0 0.0
        %819 = vmatpush1.xpose.msra.mxu0 0.0
        %820 = vmatprep.subr.mxu0 0.0
        %821 = vmatpush1.xpose.msra.mxu0 0.0
        %822 = vmatprep.subr.mxu0 0.0
        %823 = vmatpush1.xpose.msra.mxu0 0.0
        %824 = vmatprep.subr.mxu0 0.0
        %825 = vmatpush1.xpose.msra.mxu0 0.0
        %826 = vmatprep.subr.mxu0 0.0
        %827 = vmatpush1.xpose.msra.mxu0 0.0
        %828 = vmatprep.subr.mxu0 0.0
        %829 = vmatpush1.xpose.msra.mxu0 0.0
        %830 = vmatprep.subr.mxu0 0.0
        %831 = vmatpush1.xpose.msra.mxu0 0.0
        %832 = vmatprep.subr.mxu0 0.0
        %833 = vmatpush1.xpose.msra.mxu0 0.0
        %834 = vmatprep.subr.mxu0 0.0
        %835 = vmatpush1.xpose.msra.mxu0 0.0
        %836 = vmatprep.subr.mxu0 0.0
        %837 = vmatpush1.xpose.msra.mxu0 0.0
        %838 = vmatprep.subr.mxu0 0.0
        %839 = vmatpush1.xpose.msra.mxu0 0.0
        %840 = vmatprep.subr.mxu0 0.0
        %841 = vmatpush1.xpose.msra.mxu0 0.0
        %842 = vmatprep.subr.mxu0 0.0
        %843 = vmatpush1.xpose.msra.mxu0 0.0
        %844 = vmatprep.subr.mxu0 0.0
        %845 = vmatpush1.xpose.msra.mxu0 0.0
        %846 = vmatprep.subr.mxu0 0.0
        %847 = vmatpush1.xpose.msra.mxu0 0.0
        %848 = vmatprep.subr.mxu0 0.0
        %849 = vmatpush1.xpose.msra.mxu0 0.0
        %850 = vmatprep.subr.mxu0 0.0
        %851 = vmatpush1.xpose.msra.mxu0 0.0
        %852 = vmatprep.subr.mxu0 0.0
        %853 = vmatpush1.xpose.msra.mxu0 0.0
        %854 = vmatprep.subr.mxu0 0.0
        %855 = vmatpush1.xpose.msra.mxu0 0.0
        %856 = vmatprep.subr.mxu0 0.0
        %857 = vmatpush1.xpose.msra.mxu0 0.0
        %858 = vmatprep.subr.mxu0 0.0
        %859 = vmatpush1.xpose.msra.mxu0 0.0
        %860 = vmatprep.subr.mxu0 0.0
        %861 = vmatpush1.xpose.msra.mxu0 0.0
        %862 = vmatprep.subr.mxu0 0.0
        %863 = vmatpush1.xpose.msra.mxu0 0.0
        %864 = vmatprep.subr.mxu0 0.0
        %865 = vmatpush1.xpose.msra.mxu0 0.0
        %866 = vmatprep.subr.mxu0 0.0
        %867 = vmatpush1.xpose.msra.mxu0 0.0
        %868 = vmatprep.subr.mxu0 0.0
        %869 = vmatpush1.xpose.msra.mxu0 0.0
        %870 = vmatprep.subr.mxu0 0.0
        %871 = vmatpush1.xpose.msra.mxu0 0.0
        %872 = vmatprep.subr.mxu0 0.0
        %873 = vmatpush1.xpose.msra.mxu0 0.0
        %874 = vmatprep.subr.mxu0 0.0
        %875 = vmatpush1.xpose.msra.mxu0 0.0
        %876 = vmatprep.subr.mxu0 0.0
        %877 = vmatpush1.xpose.msra.mxu0 0.0
        %878 = vmatprep.mubr.f32.mxu0 0.0
        %879 = vmatmul.mubr.f32.gmra.mrb[0].mxu0 %v809
        %v880 = vpop.f32.mrb[0].mxu0
        %v881 = vadd.f32 0.0, %v880
        %v882 = vpop.f32.mrb[0].mxu0
        %883 = vdwg.mxu0
        %v885 = vsel %vm731, %v629, 0
        %v888 = vsel %vm731, %v725, 0
        %890 = vmatprep.subr.mxu0 0.0
        %891 = vmatpush1.xpose.msra.mxu0 %v888
        %892 = vmatprep.subr.mxu0 0.0
        %893 = vmatpush1.xpose.msra.mxu0 0.0
        %894 = vmatprep.subr.mxu0 0.0
        %895 = vmatpush1.xpose.msra.mxu0 0.0
        %896 = vmatprep.subr.mxu0 0.0
        %897 = vmatpush1.xpose.msra.mxu0 0.0
        %898 = vmatprep.subr.mxu0 0.0
        %899 = vmatpush1.xpose.msra.mxu0 0.0
        %900 = vmatprep.subr.mxu0 0.0
        %901 = vmatpush1.xpose.msra.mxu0 0.0
        %902 = vmatprep.subr.mxu0 0.0
        %903 = vmatpush1.xpose.msra.mxu0 0.0
        %904 = vmatprep.subr.mxu0 0.0
        %905 = vmatpush1.xpose.msra.mxu0 0.0
        %906 = vmatprep.subr.mxu0 0.0
        %907 = vmatpush1.xpose.msra.mxu0 0.0
        %908 = vmatprep.subr.mxu0 0.0
        %909 = vmatpush1.xpose.msra.mxu0 0.0
        %910 = vmatprep.subr.mxu0 0.0
        %911 = vmatpush1.xpose.msra.mxu0 0.0
        %912 = vmatprep.subr.mxu0 0.0
        %913 = vmatpush1.xpose.msra.mxu0 0.0
        %914 = vmatprep.subr.mxu0 0.0
        %915 = vmatpush1.xpose.msra.mxu0 0.0
        %916 = vmatprep.subr.mxu0 0.0
        %917 = vmatpush1.xpose.msra.mxu0 0.0
        %918 = vmatprep.subr.mxu0 0.0
        %919 = vmatpush1.xpose.msra.mxu0 0.0
        %920 = vmatprep.subr.mxu0 0.0
        %921 = vmatpush1.xpose.msra.mxu0 0.0
        %922 = vmatprep.subr.mxu0 0.0
        %923 = vmatpush1.xpose.msra.mxu0 0.0
        %924 = vmatprep.subr.mxu0 0.0
        %925 = vmatpush1.xpose.msra.mxu0 0.0
        %926 = vmatprep.subr.mxu0 0.0
        %927 = vmatpush1.xpose.msra.mxu0 0.0
        %928 = vmatprep.subr.mxu0 0.0
        %929 = vmatpush1.xpose.msra.mxu0 0.0
        %930 = vmatprep.subr.mxu0 0.0
        %931 = vmatpush1.xpose.msra.mxu0 0.0
        %932 = vmatprep.subr.mxu0 0.0
        %933 = vmatpush1.xpose.msra.mxu0 0.0
        %934 = vmatprep.subr.mxu0 0.0
        %935 = vmatpush1.xpose.msra.mxu0 0.0
        %936 = vmatprep.subr.mxu0 0.0
        %937 = vmatpush1.xpose.msra.mxu0 0.0
        %938 = vmatprep.subr.mxu0 0.0
        %939 = vmatpush1.xpose.msra.mxu0 0.0
        %940 = vmatprep.subr.mxu0 0.0
        %941 = vmatpush1.xpose.msra.mxu0 0.0
        %942 = vmatprep.subr.mxu0 0.0
        %943 = vmatpush1.xpose.msra.mxu0 0.0
        %944 = vmatprep.subr.mxu0 0.0
        %945 = vmatpush1.xpose.msra.mxu0 0.0
        %946 = vmatprep.subr.mxu0 0.0
        %947 = vmatpush1.xpose.msra.mxu0 0.0
        %948 = vmatprep.subr.mxu0 0.0
        %949 = vmatpush1.xpose.msra.mxu0 0.0
        %950 = vmatprep.subr.mxu0 0.0
        %951 = vmatpush1.xpose.msra.mxu0 0.0
        %952 = vmatprep.subr.mxu0 0.0
        %953 = vmatpush1.xpose.msra.mxu0 0.0
        %954 = vmatprep.mubr.f32.mxu0 0.0
        %955 = vmatmul.mubr.f32.gmra.mrb[0].mxu0 %v885
        %v956 = vpop.f32.mrb[0].mxu0
        %v957 = vadd.f32 0.0, %v956
        %v958 = vpop.f32.mrb[0].mxu0
        %959 = vdwg.mxu0
        %v961 = vsel %vm731, %v630, 0
        %v964 = vsel %vm731, %v726, 0
        %966 = vmatprep.subr.mxu0 0.0
        %967 = vmatpush1.xpose.msra.mxu0 %v964
        %968 = vmatprep.subr.mxu0 0.0
        %969 = vmatpush1.xpose.msra.mxu0 0.0
        %970 = vmatprep.subr.mxu0 0.0
        %971 = vmatpush1.xpose.msra.mxu0 0.0
        %972 = vmatprep.subr.mxu0 0.0
        %973 = vmatpush1.xpose.msra.mxu0 0.0
        %974 = vmatprep.subr.mxu0 0.0
        %975 = vmatpush1.xpose.msra.mxu0 0.0
        %976 = vmatprep.subr.mxu0 0.0
        %977 = vmatpush1.xpose.msra.mxu0 0.0
        %978 = vmatprep.subr.mxu0 0.0
        %979 = vmatpush1.xpose.msra.mxu0 0.0
        %980 = vmatprep.subr.mxu0 0.0
        %981 = vmatpush1.xpose.msra.mxu0 0.0
        %982 = vmatprep.subr.mxu0 0.0
        %983 = vmatpush1.xpose.msra.mxu0 0.0
        %984 = vmatprep.subr.mxu0 0.0
        %985 = vmatpush1.xpose.msra.mxu0 0.0
        %986 = vmatprep.subr.mxu0 0.0
        %987 = vmatpush1.xpose.msra.mxu0 0.0
        %988 = vmatprep.subr.mxu0 0.0
        %989 = vmatpush1.xpose.msra.mxu0 0.0
        %990 = vmatprep.subr.mxu0 0.0
        %991 = vmatpush1.xpose.msra.mxu0 0.0
        %992 = vmatprep.subr.mxu0 0.0
        %993 = vmatpush1.xpose.msra.mxu0 0.0
        %994 = vmatprep.subr.mxu0 0.0
        %995 = vmatpush1.xpose.msra.mxu0 0.0
        %996 = vmatprep.subr.mxu0 0.0
        %997 = vmatpush1.xpose.msra.mxu0 0.0
        %998 = vmatprep.subr.mxu0 0.0
        %999 = vmatpush1.xpose.msra.mxu0 0.0
        %1000 = vmatprep.subr.mxu0 0.0
        %1001 = vmatpush1.xpose.msra.mxu0 0.0
        %1002 = vmatprep.subr.mxu0 0.0
        %1003 = vmatpush1.xpose.msra.mxu0 0.0
        %1004 = vmatprep.subr.mxu0 0.0
        %1005 = vmatpush1.xpose.msra.mxu0 0.0
        %1006 = vmatprep.subr.mxu0 0.0
        %1007 = vmatpush1.xpose.msra.mxu0 0.0
        %1008 = vmatprep.subr.mxu0 0.0
        %1009 = vmatpush1.xpose.msra.mxu0 0.0
        %1010 = vmatprep.subr.mxu0 0.0
        %1011 = vmatpush1.xpose.msra.mxu0 0.0
        %1012 = vmatprep.subr.mxu0 0.0
        %1013 = vmatpush1.xpose.msra.mxu0 0.0
        %1014 = vmatprep.subr.mxu0 0.0
        %1015 = vmatpush1.xpose.msra.mxu0 0.0
        %1016 = vmatprep.subr.mxu0 0.0
        %1017 = vmatpush1.xpose.msra.mxu0 0.0
        %1018 = vmatprep.subr.mxu0 0.0
        %1019 = vmatpush1.xpose.msra.mxu0 0.0
        %1020 = vmatprep.subr.mxu0 0.0
        %1021 = vmatpush1.xpose.msra.mxu0 0.0
        %1022 = vmatprep.subr.mxu0 0.0
        %1023 = vmatpush1.xpose.msra.mxu0 0.0
        %1024 = vmatprep.subr.mxu0 0.0
        %1025 = vmatpush1.xpose.msra.mxu0 0.0
        %1026 = vmatprep.subr.mxu0 0.0
        %1027 = vmatpush1.xpose.msra.mxu0 0.0
        %1028 = vmatprep.subr.mxu0 0.0
        %1029 = vmatpush1.xpose.msra.mxu0 0.0
        %1030 = vmatprep.mubr.f32.mxu0 0.0
        %1031 = vmatmul.mubr.f32.gmra.mrb[0].mxu0 %v961
        %v1032 = vpop.f32.mrb[0].mxu0
        %v1033 = vadd.f32 0.0, %v1032
        %v1034 = vpop.f32.mrb[0].mxu0
        %1035 = vdwg.mxu0
        %v1036 = vld [vmem:[#allocation3] sm:$0xff]
        %v1037 = vld [vmem:[#allocation3 + $0x8] sm:$0xff]
        %v1038 = vld [vmem:[#allocation3 + $0x10] sm:$0xff]
        %v1039 = vld [vmem:[#allocation3 + $0x18] sm:$0xff]
        %v1040 = vsel %vm731, %v805, -inf
        %1041 = vmax.xlane.f32.xlu0 %v1040
        %v1042 = vpop.xlane.xlu0 %1041
        %v1043 = vsel %vm731, %v881, -inf
        %1044 = vmax.xlane.f32.xlu0 %v1043
        %v1045 = vpop.xlane.xlu0 %1044
        %v1046 = vsel %vm731, %v957, -inf
        %1047 = vmax.xlane.f32.xlu0 %v1046
        %v1048 = vpop.xlane.xlu0 %1047
        %v1049 = vsel %vm731, %v1033, -inf
        %1050 = vmax.xlane.f32.xlu0 %v1049
        %v1051 = vpop.xlane.xlu0 %1050
        %v1052 = vmax.f32 %v1036, %v1042
        %v1053 = vmax.f32 %v1037, %v1045
        %v1054 = vmax.f32 %v1038, %v1048
        %v1055 = vmax.f32 %v1039, %v1051
        %v1056 = vsub.f32 %v1036, %v1052
        %v1057 = vsub.f32 %v1037, %v1053
        %v1058 = vsub.f32 %v1038, %v1054
        %v1059 = vsub.f32 %v1039, %v1055
        %v1060 = vmul.f32 %v1056, 1.442695
        %v1061 = vpow.pop %v1060
        %v1062 = vmul.f32 %v1057, 1.442695
        %v1063 = vpow.pop %v1062
        %v1064 = vmul.f32 %v1058, 1.442695
        %v1065 = vpow.pop %v1064
        %v1066 = vmul.f32 %v1059, 1.442695
        %v1067 = vpow.pop %v1066
        %1069 = vset.pattern.permute.xlu0 0
        %1070 = vperm.xlu0 %1069, %v1052
        %v1071 = vpop.permute.xlu0 %1070
        %1074 = vset.pattern.permute.xlu0 0
        %1075 = vperm.xlu0 %1074, %v1053
        %v1076 = vpop.permute.xlu0 %1075
        %1079 = vset.pattern.permute.xlu0 0
        %1080 = vperm.xlu0 %1079, %v1054
        %v1081 = vpop.permute.xlu0 %1080
        %1084 = vset.pattern.permute.xlu0 0
        %1085 = vperm.xlu0 %1084, %v1055
        %v1086 = vpop.permute.xlu0 %1085
        %v1088 = vsub.f32 %v805, %v1071
        %v1089 = vsub.f32 %v881, %v1076
        %v1090 = vsub.f32 %v957, %v1081
        %v1091 = vsub.f32 %v1033, %v1086
        %v1092 = vmul.f32 %v1088, 1.442695
        %v1093 = vpow.pop %v1092
        %v1094 = vmul.f32 %v1089, 1.442695
        %v1095 = vpow.pop %v1094
        %v1096 = vmul.f32 %v1090, 1.442695
        %v1097 = vpow.pop %v1096
        %v1098 = vmul.f32 %v1091, 1.442695
        %v1099 = vpow.pop %v1098
        %v1100 = vld [vmem:[#allocation4] sm:$0xff]
        %v1101 = vld [vmem:[#allocation4 + $0x8] sm:$0xff]
        %v1102 = vld [vmem:[#allocation4 + $0x10] sm:$0xff]
        %v1103 = vld [vmem:[#allocation4 + $0x18] sm:$0xff]
        %v1104 = vmul.f32 %v1061, %v1100
        %v1105 = vmul.f32 %v1063, %v1101
        %v1106 = vmul.f32 %v1065, %v1102
        %v1107 = vmul.f32 %v1067, %v1103
        %v1108 = vsel %vm731, %v1093, 0.0
        %1109 = vadd.xlane.f32.xlu0 %v1108
        %v1110 = vpop.xlane.xlu0 %1109
        %v1111 = vsel %vm731, %v1095, 0.0
        %1112 = vadd.xlane.f32.xlu0 %v1111
        %v1113 = vpop.xlane.xlu0 %1112
        %v1114 = vsel %vm731, %v1097, 0.0
        %1115 = vadd.xlane.f32.xlu0 %v1114
        %v1116 = vpop.xlane.xlu0 %1115
        %v1117 = vsel %vm731, %v1099, 0.0
        %1118 = vadd.xlane.f32.xlu0 %v1117
        %v1119 = vpop.xlane.xlu0 %1118
        %v1120 = vadd.f32 %v1104, %v1110
        %v1121 = vadd.f32 %v1105, %v1113
        %v1122 = vadd.f32 %v1106, %v1116
        %v1123 = vadd.f32 %v1107, %v1119
        %vm1124 = vcmask 7168
        %1125 = vst.msk [vmem:[#allocation4] sm:$0xff] %vm1124, %v1120
        %1126 = vst.msk [vmem:[#allocation4 + $0x8] sm:$0xff] %vm1124, %v1121
        %1127 = vst.msk [vmem:[#allocation4 + $0x10] sm:$0xff] %vm1124, %v1122
        %1128 = vst.msk [vmem:[#allocation4 + $0x18] sm:$0xff] %vm1124, %v1123
        %v1129 = vld [vmem:[#allocation5] sm:$0xff]
        %v1130 = vld [vmem:[#allocation5 + $0x8] sm:$0xff]
        %v1131 = vld [vmem:[#allocation5 + $0x10] sm:$0xff]
        %v1132 = vld [vmem:[#allocation5 + $0x18] sm:$0xff]
        %1134 = vset.pattern.permute.xlu0 0
        %1135 = vperm.xlu0 %1134, %v1061
        %v1136 = vpop.permute.xlu0 %1135
        %1139 = vset.pattern.permute.xlu0 0
        %1140 = vperm.xlu0 %1139, %v1063
        %v1141 = vpop.permute.xlu0 %1140
        %1144 = vset.pattern.permute.xlu0 0
        %1145 = vperm.xlu0 %1144, %v1065
        %v1146 = vpop.permute.xlu0 %1145
        %1149 = vset.pattern.permute.xlu0 0
        %1150 = vperm.xlu0 %1149, %v1067
        %v1151 = vpop.permute.xlu0 %1150
        %v1153 = vmul.f32 %v1136, %v1129
        %v1154 = vmul.f32 %v1141, %v1130
        %v1155 = vmul.f32 %v1146, %v1131
        %v1156 = vmul.f32 %v1151, %v1132
        %v1158 = vsel %vm731, %v1093, 0
        %1160 = vmatprep.subr.mxu0 0.0
        %1161 = vmatpush1.msra.mxu0 %v727
        %1162 = vmatprep.subr.mxu0 0.0
        %1163 = vmatpush1.msra.mxu0 0.0
        %1164 = vmatprep.subr.mxu0 0.0
        %1165 = vmatpush1.msra.mxu0 0.0
        %1166 = vmatprep.subr.mxu0 0.0
        %1167 = vmatpush1.msra.mxu0 0.0
        %1168 = vmatprep.subr.mxu0 0.0
        %1169 = vmatpush1.msra.mxu0 0.0
        %1170 = vmatprep.subr.mxu0 0.0
        %1171 = vmatpush1.msra.mxu0 0.0
        %1172 = vmatprep.subr.mxu0 0.0
        %1173 = vmatpush1.msra.mxu0 0.0
        %1174 = vmatprep.subr.mxu0 0.0
        %1175 = vmatpush1.msra.mxu0 0.0
        %1176 = vmatprep.subr.mxu0 0.0
        %1177 = vmatpush1.msra.mxu0 0.0
        %1178 = vmatprep.subr.mxu0 0.0
        %1179 = vmatpush1.msra.mxu0 0.0
        %1180 = vmatprep.subr.mxu0 0.0
        %1181 = vmatpush1.msra.mxu0 0.0
        %1182 = vmatprep.subr.mxu0 0.0
        %1183 = vmatpush1.msra.mxu0 0.0
        %1184 = vmatprep.subr.mxu0 0.0
        %1185 = vmatpush1.msra.mxu0 0.0
        %1186 = vmatprep.subr.mxu0 0.0
        %1187 = vmatpush1.msra.mxu0 0.0
        %1188 = vmatprep.subr.mxu0 0.0
        %1189 = vmatpush1.msra.mxu0 0.0
        %1190 = vmatprep.subr.mxu0 0.0
        %1191 = vmatpush1.msra.mxu0 0.0
        %1192 = vmatprep.subr.mxu0 0.0
        %1193 = vmatpush1.msra.mxu0 0.0
        %1194 = vmatprep.subr.mxu0 0.0
        %1195 = vmatpush1.msra.mxu0 0.0
        %1196 = vmatprep.subr.mxu0 0.0
        %1197 = vmatpush1.msra.mxu0 0.0
        %1198 = vmatprep.subr.mxu0 0.0
        %1199 = vmatpush1.msra.mxu0 0.0
        %1200 = vmatprep.subr.mxu0 0.0
        %1201 = vmatpush1.msra.mxu0 0.0
        %1202 = vmatprep.subr.mxu0 0.0
        %1203 = vmatpush1.msra.mxu0 0.0
        %1204 = vmatprep.subr.mxu0 0.0
        %1205 = vmatpush1.msra.mxu0 0.0
        %1206 = vmatprep.subr.mxu0 0.0
        %1207 = vmatpush1.msra.mxu0 0.0
        %1208 = vmatprep.subr.mxu0 0.0
        %1209 = vmatpush1.msra.mxu0 0.0
        %1210 = vmatprep.subr.mxu0 0.0
        %1211 = vmatpush1.msra.mxu0 0.0
        %1212 = vmatprep.subr.mxu0 0.0
        %1213 = vmatpush1.msra.mxu0 0.0
        %1214 = vmatprep.subr.mxu0 0.0
        %1215 = vmatpush1.msra.mxu0 0.0
        %1216 = vmatprep.subr.mxu0 0.0
        %1217 = vmatpush1.msra.mxu0 0.0
        %1218 = vmatprep.subr.mxu0 0.0
        %1219 = vmatpush1.msra.mxu0 0.0
        %1220 = vmatprep.subr.mxu0 0.0
        %1221 = vmatpush1.msra.mxu0 0.0
        %1222 = vmatprep.subr.mxu0 0.0
        %1223 = vmatpush1.msra.mxu0 0.0
        %1224 = vmatprep.mubr.f32.mxu0 0.0
        %1225 = vmatmul.mubr.f32.gmra.mrb[0].mxu0 %v1158
        %v1226 = vpop.f32.mrb[0].mxu0
        %v1227 = vadd.f32 0.0, %v1226
        %v1228 = vpop.f32.mrb[0].mxu0
        %1229 = vdwg.mxu0
        %v1231 = vsel %vm731, %v1095, 0
        %1233 = vmatprep.subr.mxu0 0.0
        %1234 = vmatpush1.msra.mxu0 %v728
        %1235 = vmatprep.subr.mxu0 0.0
        %1236 = vmatpush1.msra.mxu0 0.0
        %1237 = vmatprep.subr.mxu0 0.0
        %1238 = vmatpush1.msra.mxu0 0.0
        %1239 = vmatprep.subr.mxu0 0.0
        %1240 = vmatpush1.msra.mxu0 0.0
        %1241 = vmatprep.subr.mxu0 0.0
        %1242 = vmatpush1.msra.mxu0 0.0
        %1243 = vmatprep.subr.mxu0 0.0
        %1244 = vmatpush1.msra.mxu0 0.0
        %1245 = vmatprep.subr.mxu0 0.0
        %1246 = vmatpush1.msra.mxu0 0.0
        %1247 = vmatprep.subr.mxu0 0.0
        %1248 = vmatpush1.msra.mxu0 0.0
        %1249 = vmatprep.subr.mxu0 0.0
        %1250 = vmatpush1.msra.mxu0 0.0
        %1251 = vmatprep.subr.mxu0 0.0
        %1252 = vmatpush1.msra.mxu0 0.0
        %1253 = vmatprep.subr.mxu0 0.0
        %1254 = vmatpush1.msra.mxu0 0.0
        %1255 = vmatprep.subr.mxu0 0.0
        %1256 = vmatpush1.msra.mxu0 0.0
        %1257 = vmatprep.subr.mxu0 0.0
        %1258 = vmatpush1.msra.mxu0 0.0
        %1259 = vmatprep.subr.mxu0 0.0
        %1260 = vmatpush1.msra.mxu0 0.0
        %1261 = vmatprep.subr.mxu0 0.0
        %1262 = vmatpush1.msra.mxu0 0.0
        %1263 = vmatprep.subr.mxu0 0.0
        %1264 = vmatpush1.msra.mxu0 0.0
        %1265 = vmatprep.subr.mxu0 0.0
        %1266 = vmatpush1.msra.mxu0 0.0
        %1267 = vmatprep.subr.mxu0 0.0
        %1268 = vmatpush1.msra.mxu0 0.0
        %1269 = vmatprep.subr.mxu0 0.0
        %1270 = vmatpush1.msra.mxu0 0.0
        %1271 = vmatprep.subr.mxu0 0.0
        %1272 = vmatpush1.msra.mxu0 0.0
        %1273 = vmatprep.subr.mxu0 0.0
        %1274 = vmatpush1.msra.mxu0 0.0
        %1275 = vmatprep.subr.mxu0 0.0
        %1276 = vmatpush1.msra.mxu0 0.0
        %1277 = vmatprep.subr.mxu0 0.0
        %1278 = vmatpush1.msra.mxu0 0.0
        %1279 = vmatprep.subr.mxu0 0.0
        %1280 = vmatpush1.msra.mxu0 0.0
        %1281 = vmatprep.subr.mxu0 0.0
        %1282 = vmatpush1.msra.mxu0 0.0
        %1283 = vmatprep.subr.mxu0 0.0
        %1284 = vmatpush1.msra.mxu0 0.0
        %1285 = vmatprep.subr.mxu0 0.0
        %1286 = vmatpush1.msra.mxu0 0.0
        %1287 = vmatprep.subr.mxu0 0.0
        %1288 = vmatpush1.msra.mxu0 0.0
        %1289 = vmatprep.subr.mxu0 0.0
        %1290 = vmatpush1.msra.mxu0 0.0
        %1291 = vmatprep.subr.mxu0 0.0
        %1292 = vmatpush1.msra.mxu0 0.0
        %1293 = vmatprep.subr.mxu0 0.0
        %1294 = vmatpush1.msra.mxu0 0.0
        %1295 = vmatprep.subr.mxu0 0.0
        %1296 = vmatpush1.msra.mxu0 0.0
        %1297 = vmatprep.mubr.f32.mxu0 0.0
        %1298 = vmatmul.mubr.f32.gmra.mrb[0].mxu0 %v1231
        %v1299 = vpop.f32.mrb[0].mxu0
        %v1300 = vadd.f32 0.0, %v1299
        %v1301 = vpop.f32.mrb[0].mxu0
        %1302 = vdwg.mxu0
        %v1304 = vsel %vm731, %v1097, 0
        %1306 = vmatprep.subr.mxu0 0.0
        %1307 = vmatpush1.msra.mxu0 %v729
        %1308 = vmatprep.subr.mxu0 0.0
        %1309 = vmatpush1.msra.mxu0 0.0
        %1310 = vmatprep.subr.mxu0 0.0
        %1311 = vmatpush1.msra.mxu0 0.0
        %1312 = vmatprep.subr.mxu0 0.0
        %1313 = vmatpush1.msra.mxu0 0.0
        %1314 = vmatprep.subr.mxu0 0.0
        %1315 = vmatpush1.msra.mxu0 0.0
        %1316 = vmatprep.subr.mxu0 0.0
        %1317 = vmatpush1.msra.mxu0 0.0
        %1318 = vmatprep.subr.mxu0 0.0
        %1319 = vmatpush1.msra.mxu0 0.0
        %1320 = vmatprep.subr.mxu0 0.0
        %1321 = vmatpush1.msra.mxu0 0.0
        %1322 = vmatprep.subr.mxu0 0.0
        %1323 = vmatpush1.msra.mxu0 0.0
        %1324 = vmatprep.subr.mxu0 0.0
        %1325 = vmatpush1.msra.mxu0 0.0
        %1326 = vmatprep.subr.mxu0 0.0
        %1327 = vmatpush1.msra.mxu0 0.0
        %1328 = vmatprep.subr.mxu0 0.0
        %1329 = vmatpush1.msra.mxu0 0.0
        %1330 = vmatprep.subr.mxu0 0.0
        %1331 = vmatpush1.msra.mxu0 0.0
        %1332 = vmatprep.subr.mxu0 0.0
        %1333 = vmatpush1.msra.mxu0 0.0
        %1334 = vmatprep.subr.mxu0 0.0
        %1335 = vmatpush1.msra.mxu0 0.0
        %1336 = vmatprep.subr.mxu0 0.0
        %1337 = vmatpush1.msra.mxu0 0.0
        %1338 = vmatprep.subr.mxu0 0.0
        %1339 = vmatpush1.msra.mxu0 0.0
        %1340 = vmatprep.subr.mxu0 0.0
        %1341 = vmatpush1.msra.mxu0 0.0
        %1342 = vmatprep.subr.mxu0 0.0
        %1343 = vmatpush1.msra.mxu0 0.0
        %1344 = vmatprep.subr.mxu0 0.0
        %1345 = vmatpush1.msra.mxu0 0.0
        %1346 = vmatprep.subr.mxu0 0.0
        %1347 = vmatpush1.msra.mxu0 0.0
        %1348 = vmatprep.subr.mxu0 0.0
        %1349 = vmatpush1.msra.mxu0 0.0
        %1350 = vmatprep.subr.mxu0 0.0
        %1351 = vmatpush1.msra.mxu0 0.0
        %1352 = vmatprep.subr.mxu0 0.0
        %1353 = vmatpush1.msra.mxu0 0.0
        %1354 = vmatprep.subr.mxu0 0.0
        %1355 = vmatpush1.msra.mxu0 0.0
        %1356 = vmatprep.subr.mxu0 0.0
        %1357 = vmatpush1.msra.mxu0 0.0
        %1358 = vmatprep.subr.mxu0 0.0
        %1359 = vmatpush1.msra.mxu0 0.0
        %1360 = vmatprep.subr.mxu0 0.0
        %1361 = vmatpush1.msra.mxu0 0.0
        %1362 = vmatprep.subr.mxu0 0.0
        %1363 = vmatpush1.msra.mxu0 0.0
        %1364 = vmatprep.subr.mxu0 0.0
        %1365 = vmatpush1.msra.mxu0 0.0
        %1366 = vmatprep.subr.mxu0 0.0
        %1367 = vmatpush1.msra.mxu0 0.0
        %1368 = vmatprep.subr.mxu0 0.0
        %1369 = vmatpush1.msra.mxu0 0.0
        %1370 = vmatprep.mubr.f32.mxu0 0.0
        %1371 = vmatmul.mubr.f32.gmra.mrb[0].mxu0 %v1304
        %v1372 = vpop.f32.mrb[0].mxu0
        %v1373 = vadd.f32 0.0, %v1372
        %v1374 = vpop.f32.mrb[0].mxu0
        %1375 = vdwg.mxu0
        %v1377 = vsel %vm731, %v1099, 0
        %1379 = vmatprep.subr.mxu0 0.0
        %1380 = vmatpush1.msra.mxu0 %v730
        %1381 = vmatprep.subr.mxu0 0.0
        %1382 = vmatpush1.msra.mxu0 0.0
        %1383 = vmatprep.subr.mxu0 0.0
        %1384 = vmatpush1.msra.mxu0 0.0
        %1385 = vmatprep.subr.mxu0 0.0
        %1386 = vmatpush1.msra.mxu0 0.0
        %1387 = vmatprep.subr.mxu0 0.0
        %1388 = vmatpush1.msra.mxu0 0.0
        %1389 = vmatprep.subr.mxu0 0.0
        %1390 = vmatpush1.msra.mxu0 0.0
        %1391 = vmatprep.subr.mxu0 0.0
        %1392 = vmatpush1.msra.mxu0 0.0
        %1393 = vmatprep.subr.mxu0 0.0
        %1394 = vmatpush1.msra.mxu0 0.0
        %1395 = vmatprep.subr.mxu0 0.0
        %1396 = vmatpush1.msra.mxu0 0.0
        %1397 = vmatprep.subr.mxu0 0.0
        %1398 = vmatpush1.msra.mxu0 0.0
        %1399 = vmatprep.subr.mxu0 0.0
        %1400 = vmatpush1.msra.mxu0 0.0
        %1401 = vmatprep.subr.mxu0 0.0
        %1402 = vmatpush1.msra.mxu0 0.0
        %1403 = vmatprep.subr.mxu0 0.0
        %1404 = vmatpush1.msra.mxu0 0.0
        %1405 = vmatprep.subr.mxu0 0.0
        %1406 = vmatpush1.msra.mxu0 0.0
        %1407 = vmatprep.subr.mxu0 0.0
        %1408 = vmatpush1.msra.mxu0 0.0
        %1409 = vmatprep.subr.mxu0 0.0
        %1410 = vmatpush1.msra.mxu0 0.0
        %1411 = vmatprep.subr.mxu0 0.0
        %1412 = vmatpush1.msra.mxu0 0.0
        %1413 = vmatprep.subr.mxu0 0.0
        %1414 = vmatpush1.msra.mxu0 0.0
        %1415 = vmatprep.subr.mxu0 0.0
        %1416 = vmatpush1.msra.mxu0 0.0
        %1417 = vmatprep.subr.mxu0 0.0
        %1418 = vmatpush1.msra.mxu0 0.0
        %1419 = vmatprep.subr.mxu0 0.0
        %1420 = vmatpush1.msra.mxu0 0.0
        %1421 = vmatprep.subr.mxu0 0.0
        %1422 = vmatpush1.msra.mxu0 0.0
        %1423 = vmatprep.subr.mxu0 0.0
        %1424 = vmatpush1.msra.mxu0 0.0
        %1425 = vmatprep.subr.mxu0 0.0
        %1426 = vmatpush1.msra.mxu0 0.0
        %1427 = vmatprep.subr.mxu0 0.0
        %1428 = vmatpush1.msra.mxu0 0.0
        %1429 = vmatprep.subr.mxu0 0.0
        %1430 = vmatpush1.msra.mxu0 0.0
        %1431 = vmatprep.subr.mxu0 0.0
        %1432 = vmatpush1.msra.mxu0 0.0
        %1433 = vmatprep.subr.mxu0 0.0
        %1434 = vmatpush1.msra.mxu0 0.0
        %1435 = vmatprep.subr.mxu0 0.0
        %1436 = vmatpush1.msra.mxu0 0.0
        %1437 = vmatprep.subr.mxu0 0.0
        %1438 = vmatpush1.msra.mxu0 0.0
        %1439 = vmatprep.subr.mxu0 0.0
        %1440 = vmatpush1.msra.mxu0 0.0
        %1441 = vmatprep.subr.mxu0 0.0
        %1442 = vmatpush1.msra.mxu0 0.0
        %1443 = vmatprep.mubr.f32.mxu0 0.0
        %1444 = vmatmul.mubr.f32.gmra.mrb[0].mxu0 %v1377
        %v1445 = vpop.f32.mrb[0].mxu0
        %v1446 = vadd.f32 0.0, %v1445
        %v1447 = vpop.f32.mrb[0].mxu0
        %1448 = vdwg.mxu0
        %v1449 = vadd.f32 %v1153, %v1227
        %v1450 = vadd.f32 %v1154, %v1300
        %v1451 = vadd.f32 %v1155, %v1373
        %v1452 = vadd.f32 %v1156, %v1446
        %1453 = vst.msk [vmem:[#allocation5] sm:$0xff] %vm731, %v1449
        %1454 = vst.msk [vmem:[#allocation5 + $0x8] sm:$0xff] %vm731, %v1450
        %1455 = vst.msk [vmem:[#allocation5 + $0x10] sm:$0xff] %vm731, %v1451
        %1456 = vst.msk [vmem:[#allocation5 + $0x18] sm:$0xff] %vm731, %v1452
        %1457 = vst.msk [vmem:[#allocation3] sm:$0xff] %vm1124, %v1052
        %1458 = vst.msk [vmem:[#allocation3 + $0x8] sm:$0xff] %vm1124, %v1053
        %1459 = vst.msk [vmem:[#allocation3 + $0x10] sm:$0xff] %vm1124, %v1054
        %1460 = vst.msk [vmem:[#allocation3 + $0x18] sm:$0xff] %vm1124, %v1055
      $region56: #{mha_forward.4} parent=47 // pred_fallthru
        _
      %p1461 = scmp.eq.s32.totalorder %s25, %s24
      // Predicated region
      $region57: #{mha_forward.4} parent=47 // pred_check
        %p1462 = pneg %p1461
      $region58: #{mha_forward.4} parent=47 // pred_check_branch
        %1464 = sbr.rel (%p1462) target = $region60
      $region59: #{mha_forward.4} parent=47 // pred_region
        %v1465 = vld [vmem:[#allocation2] sm:$0xff]
        %v1466 = vld [vmem:[#allocation2 + $0x8] sm:$0xff]
        %v1467 = vld [vmem:[#allocation2 + $0x10] sm:$0xff]
        %v1468 = vld [vmem:[#allocation2 + $0x18] sm:$0xff]
        %v1469 = vld [vmem:[%s455] sm:$0xff]
        %v1470 = vld [vmem:[%s455 + $0x8] sm:$0xff]
        %v1471 = vld [vmem:[%s455 + $0x10] sm:$0xff]
        %v1472 = vld [vmem:[%s455 + $0x18] sm:$0xff]
        %v1473 = vld [vmem:[%s483] sm:$0xff]
        %v1474 = vld [vmem:[%s491] sm:$0xff]
        %v1475 = vmul.f32 %v1469, %v1473
        %v1476 = vmul.f32 %v1470, %v1473
        %v1477 = vmul.f32 %v1471, %v1473
        %v1478 = vmul.f32 %v1472, %v1473
        %1480 = vrot.lane.b32.xlu0 %v1474, 2
        %v1481 = vpop.permute.xlu0 %1480
        %v1483 = vmul.f32 %v1469, %v1481
        %v1484 = vmul.f32 %v1470, %v1481
        %v1485 = vmul.f32 %v1471, %v1481
        %v1486 = vmul.f32 %v1472, %v1481
        %1491 = vrot.lane.b32.xlu0 %v1483, 126
        %v1492 = vpop.permute.xlu0 %1491
        %1493 = vrot.lane.b32.xlu0 %v1484, 126
        %v1494 = vpop.permute.xlu0 %1493
        %1495 = vrot.lane.b32.xlu0 %v1485, 126
        %v1496 = vpop.permute.xlu0 %1495
        %1497 = vrot.lane.b32.xlu0 %v1486, 126
        %v1498 = vpop.permute.xlu0 %1497
        %v1503 = vsub.f32 %v1475, %v1492
        %v1504 = vsub.f32 %v1476, %v1494
        %v1505 = vsub.f32 %v1477, %v1496
        %v1506 = vsub.f32 %v1478, %v1498
        %v1507 = vmul.f32 %v1469, %v1474
        %v1508 = vmul.f32 %v1470, %v1474
        %v1509 = vmul.f32 %v1471, %v1474
        %v1510 = vmul.f32 %v1472, %v1474
        %1512 = vrot.lane.b32.xlu0 %v1473, 2
        %v1513 = vpop.permute.xlu0 %1512
        %v1515 = vmul.f32 %v1469, %v1513
        %v1516 = vmul.f32 %v1470, %v1513
        %v1517 = vmul.f32 %v1471, %v1513
        %v1518 = vmul.f32 %v1472, %v1513
        %1523 = vrot.lane.b32.xlu0 %v1515, 126
        %v1524 = vpop.permute.xlu0 %1523
        %1525 = vrot.lane.b32.xlu0 %v1516, 126
        %v1526 = vpop.permute.xlu0 %1525
        %1527 = vrot.lane.b32.xlu0 %v1517, 126
        %v1528 = vpop.permute.xlu0 %1527
        %1529 = vrot.lane.b32.xlu0 %v1518, 126
        %v1530 = vpop.permute.xlu0 %1529
        %v1535 = vadd.f32 %v1507, %v1524
        %v1536 = vadd.f32 %v1508, %v1526
        %v1537 = vadd.f32 %v1509, %v1528
        %v1538 = vadd.f32 %v1510, %v1530
        %1543 = vrot.lane.b32.xlu0 %v1535, 2
        %v1544 = vpop.permute.xlu0 %1543
        %1545 = vrot.lane.b32.xlu0 %v1536, 2
        %v1546 = vpop.permute.xlu0 %1545
        %1547 = vrot.lane.b32.xlu0 %v1537, 2
        %v1548 = vpop.permute.xlu0 %1547
        %1549 = vrot.lane.b32.xlu0 %v1538, 2
        %v1550 = vpop.permute.xlu0 %1549
        %vm1555 = vcmask 15360
        %v1556 = vsel %vm1555, %v1503, %v1544
        %v1557 = vsel %vm1555, %v1504, %v1546
        %v1558 = vsel %vm1555, %v1505, %v1548
        %v1559 = vsel %vm1555, %v1506, %v1550
        %vm1560 = vcmask 31744
        %v1561 = vsel %vm1560, %v1556, %v1469
        %v1562 = vsel %vm1560, %v1557, %v1470
        %v1563 = vsel %vm1560, %v1558, %v1471
        %v1564 = vsel %vm1560, %v1559, %v1472
        %v1565 = vld [vmem:[%s467] sm:$0xff]
        %v1566 = vld [vmem:[%s467 + $0x8] sm:$0xff]
        %v1567 = vld [vmem:[%s467 + $0x10] sm:$0xff]
        %v1568 = vld [vmem:[%s467 + $0x18] sm:$0xff]
        %s1569 = smul.u32 %s24, 8
        %v1570 = vlaneseq
        %v1571 = vshrl.u32 %v1570, 7
        %v1572 = vstv %s1569
        %v1573 = vadd.s32 %v1572, %v1571
        %s1574 = smul.u32 %s25, 8
        %v1575 = vlaneseq
        %v1576 = vand.u32 %v1575, 127
        %v1577 = vstv %s1574
        %v1578 = vadd.s32 %v1577, %v1576
        %vm1579 = vcmp.gt.s32.totalorder %v1578, %v1573
        %v1580 = vsel %vm1579, -10000.0, 0.0
        %vm1581 = vcmask 64512
        %v1583 = vsel %vm1581, %v1465, 0
        %v1586 = vsel %vm1581, %v1561, 0
        %1588 = vmatprep.subr.mxu0 0.0
        %1589 = vmatpush1.xpose.msra.mxu0 %v1586
        %1590 = vmatprep.subr.mxu0 0.0
        %1591 = vmatpush1.xpose.msra.mxu0 0.0
        %1592 = vmatprep.subr.mxu0 0.0
        %1593 = vmatpush1.xpose.msra.mxu0 0.0
        %1594 = vmatprep.subr.mxu0 0.0
        %1595 = vmatpush1.xpose.msra.mxu0 0.0
        %1596 = vmatprep.subr.mxu0 0.0
        %1597 = vmatpush1.xpose.msra.mxu0 0.0
        %1598 = vmatprep.subr.mxu0 0.0
        %1599 = vmatpush1.xpose.msra.mxu0 0.0
        %1600 = vmatprep.subr.mxu0 0.0
        %1601 = vmatpush1.xpose.msra.mxu0 0.0
        %1602 = vmatprep.subr.mxu0 0.0
        %1603 = vmatpush1.xpose.msra.mxu0 0.0
        %1604 = vmatprep.subr.mxu0 0.0
        %1605 = vmatpush1.xpose.msra.mxu0 0.0
        %1606 = vmatprep.subr.mxu0 0.0
        %1607 = vmatpush1.xpose.msra.mxu0 0.0
        %1608 = vmatprep.subr.mxu0 0.0
        %1609 = vmatpush1.xpose.msra.mxu0 0.0
        %1610 = vmatprep.subr.mxu0 0.0
        %1611 = vmatpush1.xpose.msra.mxu0 0.0
        %1612 = vmatprep.subr.mxu0 0.0
        %1613 = vmatpush1.xpose.msra.mxu0 0.0
        %1614 = vmatprep.subr.mxu0 0.0
        %1615 = vmatpush1.xpose.msra.mxu0 0.0
        %1616 = vmatprep.subr.mxu0 0.0
        %1617 = vmatpush1.xpose.msra.mxu0 0.0
        %1618 = vmatprep.subr.mxu0 0.0
        %1619 = vmatpush1.xpose.msra.mxu0 0.0
        %1620 = vmatprep.subr.mxu0 0.0
        %1621 = vmatpush1.xpose.msra.mxu0 0.0
        %1622 = vmatprep.subr.mxu0 0.0
        %1623 = vmatpush1.xpose.msra.mxu0 0.0
        %1624 = vmatprep.subr.mxu0 0.0
        %1625 = vmatpush1.xpose.msra.mxu0 0.0
        %1626 = vmatprep.subr.mxu0 0.0
        %1627 = vmatpush1.xpose.msra.mxu0 0.0
        %1628 = vmatprep.subr.mxu0 0.0
        %1629 = vmatpush1.xpose.msra.mxu0 0.0
        %1630 = vmatprep.subr.mxu0 0.0
        %1631 = vmatpush1.xpose.msra.mxu0 0.0
        %1632 = vmatprep.subr.mxu0 0.0
        %1633 = vmatpush1.xpose.msra.mxu0 0.0
        %1634 = vmatprep.subr.mxu0 0.0
        %1635 = vmatpush1.xpose.msra.mxu0 0.0
        %1636 = vmatprep.subr.mxu0 0.0
        %1637 = vmatpush1.xpose.msra.mxu0 0.0
        %1638 = vmatprep.subr.mxu0 0.0
        %1639 = vmatpush1.xpose.msra.mxu0 0.0
        %1640 = vmatprep.subr.mxu0 0.0
        %1641 = vmatpush1.xpose.msra.mxu0 0.0
        %1642 = vmatprep.subr.mxu0 0.0
        %1643 = vmatpush1.xpose.msra.mxu0 0.0
        %1644 = vmatprep.subr.mxu0 0.0
        %1645 = vmatpush1.xpose.msra.mxu0 0.0
        %1646 = vmatprep.subr.mxu0 0.0
        %1647 = vmatpush1.xpose.msra.mxu0 0.0
        %1648 = vmatprep.subr.mxu0 0.0
        %1649 = vmatpush1.xpose.msra.mxu0 0.0
        %1650 = vmatprep.subr.mxu0 0.0
        %1651 = vmatpush1.xpose.msra.mxu0 0.0
        %1652 = vmatprep.mubr.f32.mxu0 0.0
        %1653 = vmatmul.mubr.f32.gmra.mrb[0].mxu0 %v1583
        %v1654 = vpop.f32.mrb[0].mxu0
        %v1655 = vadd.f32 %v1580, %v1654
        %v1656 = vpop.f32.mrb[0].mxu0
        %1657 = vdwg.mxu0
        %v1659 = vsel %vm1581, %v1466, 0
        %v1662 = vsel %vm1581, %v1562, 0
        %1664 = vmatprep.subr.mxu0 0.0
        %1665 = vmatpush1.xpose.msra.mxu0 %v1662
        %1666 = vmatprep.subr.mxu0 0.0
        %1667 = vmatpush1.xpose.msra.mxu0 0.0
        %1668 = vmatprep.subr.mxu0 0.0
        %1669 = vmatpush1.xpose.msra.mxu0 0.0
        %1670 = vmatprep.subr.mxu0 0.0
        %1671 = vmatpush1.xpose.msra.mxu0 0.0
        %1672 = vmatprep.subr.mxu0 0.0
        %1673 = vmatpush1.xpose.msra.mxu0 0.0
        %1674 = vmatprep.subr.mxu0 0.0
        %1675 = vmatpush1.xpose.msra.mxu0 0.0
        %1676 = vmatprep.subr.mxu0 0.0
        %1677 = vmatpush1.xpose.msra.mxu0 0.0
        %1678 = vmatprep.subr.mxu0 0.0
        %1679 = vmatpush1.xpose.msra.mxu0 0.0
        %1680 = vmatprep.subr.mxu0 0.0
        %1681 = vmatpush1.xpose.msra.mxu0 0.0
        %1682 = vmatprep.subr.mxu0 0.0
        %1683 = vmatpush1.xpose.msra.mxu0 0.0
        %1684 = vmatprep.subr.mxu0 0.0
        %1685 = vmatpush1.xpose.msra.mxu0 0.0
        %1686 = vmatprep.subr.mxu0 0.0
        %1687 = vmatpush1.xpose.msra.mxu0 0.0
        %1688 = vmatprep.subr.mxu0 0.0
        %1689 = vmatpush1.xpose.msra.mxu0 0.0
        %1690 = vmatprep.subr.mxu0 0.0
        %1691 = vmatpush1.xpose.msra.mxu0 0.0
        %1692 = vmatprep.subr.mxu0 0.0
        %1693 = vmatpush1.xpose.msra.mxu0 0.0
        %1694 = vmatprep.subr.mxu0 0.0
        %1695 = vmatpush1.xpose.msra.mxu0 0.0
        %1696 = vmatprep.subr.mxu0 0.0
        %1697 = vmatpush1.xpose.msra.mxu0 0.0
        %1698 = vmatprep.subr.mxu0 0.0
        %1699 = vmatpush1.xpose.msra.mxu0 0.0
        %1700 = vmatprep.subr.mxu0 0.0
        %1701 = vmatpush1.xpose.msra.mxu0 0.0
        %1702 = vmatprep.subr.mxu0 0.0
        %1703 = vmatpush1.xpose.msra.mxu0 0.0
        %1704 = vmatprep.subr.mxu0 0.0
        %1705 = vmatpush1.xpose.msra.mxu0 0.0
        %1706 = vmatprep.subr.mxu0 0.0
        %1707 = vmatpush1.xpose.msra.mxu0 0.0
        %1708 = vmatprep.subr.mxu0 0.0
        %1709 = vmatpush1.xpose.msra.mxu0 0.0
        %1710 = vmatprep.subr.mxu0 0.0
        %1711 = vmatpush1.xpose.msra.mxu0 0.0
        %1712 = vmatprep.subr.mxu0 0.0
        %1713 = vmatpush1.xpose.msra.mxu0 0.0
        %1714 = vmatprep.subr.mxu0 0.0
        %1715 = vmatpush1.xpose.msra.mxu0 0.0
        %1716 = vmatprep.subr.mxu0 0.0
        %1717 = vmatpush1.xpose.msra.mxu0 0.0
        %1718 = vmatprep.subr.mxu0 0.0
        %1719 = vmatpush1.xpose.msra.mxu0 0.0
        %1720 = vmatprep.subr.mxu0 0.0
        %1721 = vmatpush1.xpose.msra.mxu0 0.0
        %1722 = vmatprep.subr.mxu0 0.0
        %1723 = vmatpush1.xpose.msra.mxu0 0.0
        %1724 = vmatprep.subr.mxu0 0.0
        %1725 = vmatpush1.xpose.msra.mxu0 0.0
        %1726 = vmatprep.subr.mxu0 0.0
        %1727 = vmatpush1.xpose.msra.mxu0 0.0
        %1728 = vmatprep.mubr.f32.mxu0 0.0
        %1729 = vmatmul.mubr.f32.gmra.mrb[0].mxu0 %v1659
        %v1730 = vpop.f32.mrb[0].mxu0
        %v1731 = vadd.f32 %v1580, %v1730
        %v1732 = vpop.f32.mrb[0].mxu0
        %1733 = vdwg.mxu0
        %v1735 = vsel %vm1581, %v1467, 0
        %v1738 = vsel %vm1581, %v1563, 0
        %1740 = vmatprep.subr.mxu0 0.0
        %1741 = vmatpush1.xpose.msra.mxu0 %v1738
        %1742 = vmatprep.subr.mxu0 0.0
        %1743 = vmatpush1.xpose.msra.mxu0 0.0
        %1744 = vmatprep.subr.mxu0 0.0
        %1745 = vmatpush1.xpose.msra.mxu0 0.0
        %1746 = vmatprep.subr.mxu0 0.0
        %1747 = vmatpush1.xpose.msra.mxu0 0.0
        %1748 = vmatprep.subr.mxu0 0.0
        %1749 = vmatpush1.xpose.msra.mxu0 0.0
        %1750 = vmatprep.subr.mxu0 0.0
        %1751 = vmatpush1.xpose.msra.mxu0 0.0
        %1752 = vmatprep.subr.mxu0 0.0
        %1753 = vmatpush1.xpose.msra.mxu0 0.0
        %1754 = vmatprep.subr.mxu0 0.0
        %1755 = vmatpush1.xpose.msra.mxu0 0.0
        %1756 = vmatprep.subr.mxu0 0.0
        %1757 = vmatpush1.xpose.msra.mxu0 0.0
        %1758 = vmatprep.subr.mxu0 0.0
        %1759 = vmatpush1.xpose.msra.mxu0 0.0
        %1760 = vmatprep.subr.mxu0 0.0
        %1761 = vmatpush1.xpose.msra.mxu0 0.0
        %1762 = vmatprep.subr.mxu0 0.0
        %1763 = vmatpush1.xpose.msra.mxu0 0.0
        %1764 = vmatprep.subr.mxu0 0.0
        %1765 = vmatpush1.xpose.msra.mxu0 0.0
        %1766 = vmatprep.subr.mxu0 0.0
        %1767 = vmatpush1.xpose.msra.mxu0 0.0
        %1768 = vmatprep.subr.mxu0 0.0
        %1769 = vmatpush1.xpose.msra.mxu0 0.0
        %1770 = vmatprep.subr.mxu0 0.0
        %1771 = vmatpush1.xpose.msra.mxu0 0.0
        %1772 = vmatprep.subr.mxu0 0.0
        %1773 = vmatpush1.xpose.msra.mxu0 0.0
        %1774 = vmatprep.subr.mxu0 0.0
        %1775 = vmatpush1.xpose.msra.mxu0 0.0
        %1776 = vmatprep.subr.mxu0 0.0
        %1777 = vmatpush1.xpose.msra.mxu0 0.0
        %1778 = vmatprep.subr.mxu0 0.0
        %1779 = vmatpush1.xpose.msra.mxu0 0.0
        %1780 = vmatprep.subr.mxu0 0.0
        %1781 = vmatpush1.xpose.msra.mxu0 0.0
        %1782 = vmatprep.subr.mxu0 0.0
        %1783 = vmatpush1.xpose.msra.mxu0 0.0
        %1784 = vmatprep.subr.mxu0 0.0
        %1785 = vmatpush1.xpose.msra.mxu0 0.0
        %1786 = vmatprep.subr.mxu0 0.0
        %1787 = vmatpush1.xpose.msra.mxu0 0.0
        %1788 = vmatprep.subr.mxu0 0.0
        %1789 = vmatpush1.xpose.msra.mxu0 0.0
        %1790 = vmatprep.subr.mxu0 0.0
        %1791 = vmatpush1.xpose.msra.mxu0 0.0
        %1792 = vmatprep.subr.mxu0 0.0
        %1793 = vmatpush1.xpose.msra.mxu0 0.0
        %1794 = vmatprep.subr.mxu0 0.0
        %1795 = vmatpush1.xpose.msra.mxu0 0.0
        %1796 = vmatprep.subr.mxu0 0.0
        %1797 = vmatpush1.xpose.msra.mxu0 0.0
        %1798 = vmatprep.subr.mxu0 0.0
        %1799 = vmatpush1.xpose.msra.mxu0 0.0
        %1800 = vmatprep.subr.mxu0 0.0
        %1801 = vmatpush1.xpose.msra.mxu0 0.0
        %1802 = vmatprep.subr.mxu0 0.0
        %1803 = vmatpush1.xpose.msra.mxu0 0.0
        %1804 = vmatprep.mubr.f32.mxu0 0.0
        %1805 = vmatmul.mubr.f32.gmra.mrb[0].mxu0 %v1735
        %v1806 = vpop.f32.mrb[0].mxu0
        %v1807 = vadd.f32 %v1580, %v1806
        %v1808 = vpop.f32.mrb[0].mxu0
        %1809 = vdwg.mxu0
        %v1811 = vsel %vm1581, %v1468, 0
        %v1814 = vsel %vm1581, %v1564, 0
        %1816 = vmatprep.subr.mxu0 0.0
        %1817 = vmatpush1.xpose.msra.mxu0 %v1814
        %1818 = vmatprep.subr.mxu0 0.0
        %1819 = vmatpush1.xpose.msra.mxu0 0.0
        %1820 = vmatprep.subr.mxu0 0.0
        %1821 = vmatpush1.xpose.msra.mxu0 0.0
        %1822 = vmatprep.subr.mxu0 0.0
        %1823 = vmatpush1.xpose.msra.mxu0 0.0
        %1824 = vmatprep.subr.mxu0 0.0
        %1825 = vmatpush1.xpose.msra.mxu0 0.0
        %1826 = vmatprep.subr.mxu0 0.0
        %1827 = vmatpush1.xpose.msra.mxu0 0.0
        %1828 = vmatprep.subr.mxu0 0.0
        %1829 = vmatpush1.xpose.msra.mxu0 0.0
        %1830 = vmatprep.subr.mxu0 0.0
        %1831 = vmatpush1.xpose.msra.mxu0 0.0
        %1832 = vmatprep.subr.mxu0 0.0
        %1833 = vmatpush1.xpose.msra.mxu0 0.0
        %1834 = vmatprep.subr.mxu0 0.0
        %1835 = vmatpush1.xpose.msra.mxu0 0.0
        %1836 = vmatprep.subr.mxu0 0.0
        %1837 = vmatpush1.xpose.msra.mxu0 0.0
        %1838 = vmatprep.subr.mxu0 0.0
        %1839 = vmatpush1.xpose.msra.mxu0 0.0
        %1840 = vmatprep.subr.mxu0 0.0
        %1841 = vmatpush1.xpose.msra.mxu0 0.0
        %1842 = vmatprep.subr.mxu0 0.0
        %1843 = vmatpush1.xpose.msra.mxu0 0.0
        %1844 = vmatprep.subr.mxu0 0.0
        %1845 = vmatpush1.xpose.msra.mxu0 0.0
        %1846 = vmatprep.subr.mxu0 0.0
        %1847 = vmatpush1.xpose.msra.mxu0 0.0
        %1848 = vmatprep.subr.mxu0 0.0
        %1849 = vmatpush1.xpose.msra.mxu0 0.0
        %1850 = vmatprep.subr.mxu0 0.0
        %1851 = vmatpush1.xpose.msra.mxu0 0.0
        %1852 = vmatprep.subr.mxu0 0.0
        %1853 = vmatpush1.xpose.msra.mxu0 0.0
        %1854 = vmatprep.subr.mxu0 0.0
        %1855 = vmatpush1.xpose.msra.mxu0 0.0
        %1856 = vmatprep.subr.mxu0 0.0
        %1857 = vmatpush1.xpose.msra.mxu0 0.0
        %1858 = vmatprep.subr.mxu0 0.0
        %1859 = vmatpush1.xpose.msra.mxu0 0.0
        %1860 = vmatprep.subr.mxu0 0.0
        %1861 = vmatpush1.xpose.msra.mxu0 0.0
        %1862 = vmatprep.subr.mxu0 0.0
        %1863 = vmatpush1.xpose.msra.mxu0 0.0
        %1864 = vmatprep.subr.mxu0 0.0
        %1865 = vmatpush1.xpose.msra.mxu0 0.0
        %1866 = vmatprep.subr.mxu0 0.0
        %1867 = vmatpush1.xpose.msra.mxu0 0.0
        %1868 = vmatprep.subr.mxu0 0.0
        %1869 = vmatpush1.xpose.msra.mxu0 0.0
        %1870 = vmatprep.subr.mxu0 0.0
        %1871 = vmatpush1.xpose.msra.mxu0 0.0
        %1872 = vmatprep.subr.mxu0 0.0
        %1873 = vmatpush1.xpose.msra.mxu0 0.0
        %1874 = vmatprep.subr.mxu0 0.0
        %1875 = vmatpush1.xpose.msra.mxu0 0.0
        %1876 = vmatprep.subr.mxu0 0.0
        %1877 = vmatpush1.xpose.msra.mxu0 0.0
        %1878 = vmatprep.subr.mxu0 0.0
        %1879 = vmatpush1.xpose.msra.mxu0 0.0
        %1880 = vmatprep.mubr.f32.mxu0 0.0
        %1881 = vmatmul.mubr.f32.gmra.mrb[0].mxu0 %v1811
        %v1882 = vpop.f32.mrb[0].mxu0
        %v1883 = vadd.f32 %v1580, %v1882
        %v1884 = vpop.f32.mrb[0].mxu0
        %1885 = vdwg.mxu0
        %v1886 = vld [vmem:[#allocation3] sm:$0xff]
        %v1887 = vld [vmem:[#allocation3 + $0x8] sm:$0xff]
        %v1888 = vld [vmem:[#allocation3 + $0x10] sm:$0xff]
        %v1889 = vld [vmem:[#allocation3 + $0x18] sm:$0xff]
        %v1890 = vsel %vm1581, %v1655, -inf
        %1891 = vmax.xlane.f32.xlu0 %v1890
        %v1892 = vpop.xlane.xlu0 %1891
        %v1893 = vsel %vm1581, %v1731, -inf
        %1894 = vmax.xlane.f32.xlu0 %v1893
        %v1895 = vpop.xlane.xlu0 %1894
        %v1896 = vsel %vm1581, %v1807, -inf
        %1897 = vmax.xlane.f32.xlu0 %v1896
        %v1898 = vpop.xlane.xlu0 %1897
        %v1899 = vsel %vm1581, %v1883, -inf
        %1900 = vmax.xlane.f32.xlu0 %v1899
        %v1901 = vpop.xlane.xlu0 %1900
        %v1902 = vmax.f32 %v1886, %v1892
        %v1903 = vmax.f32 %v1887, %v1895
        %v1904 = vmax.f32 %v1888, %v1898
        %v1905 = vmax.f32 %v1889, %v1901
        %v1906 = vsub.f32 %v1886, %v1902
        %v1907 = vsub.f32 %v1887, %v1903
        %v1908 = vsub.f32 %v1888, %v1904
        %v1909 = vsub.f32 %v1889, %v1905
        %v1910 = vmul.f32 %v1906, 1.442695
        %v1911 = vpow.pop %v1910
        %v1912 = vmul.f32 %v1907, 1.442695
        %v1913 = vpow.pop %v1912
        %v1914 = vmul.f32 %v1908, 1.442695
        %v1915 = vpow.pop %v1914
        %v1916 = vmul.f32 %v1909, 1.442695
        %v1917 = vpow.pop %v1916
        %1919 = vset.pattern.permute.xlu0 0
        %1920 = vperm.xlu0 %1919, %v1902
        %v1921 = vpop.permute.xlu0 %1920
        %1924 = vset.pattern.permute.xlu0 0
        %1925 = vperm.xlu0 %1924, %v1903
        %v1926 = vpop.permute.xlu0 %1925
        %1929 = vset.pattern.permute.xlu0 0
        %1930 = vperm.xlu0 %1929, %v1904
        %v1931 = vpop.permute.xlu0 %1930
        %1934 = vset.pattern.permute.xlu0 0
        %1935 = vperm.xlu0 %1934, %v1905
        %v1936 = vpop.permute.xlu0 %1935
        %v1938 = vsub.f32 %v1655, %v1921
        %v1939 = vsub.f32 %v1731, %v1926
        %v1940 = vsub.f32 %v1807, %v1931
        %v1941 = vsub.f32 %v1883, %v1936
        %v1942 = vmul.f32 %v1938, 1.442695
        %v1943 = vpow.pop %v1942
        %v1944 = vmul.f32 %v1939, 1.442695
        %v1945 = vpow.pop %v1944
        %v1946 = vmul.f32 %v1940, 1.442695
        %v1947 = vpow.pop %v1946
        %v1948 = vmul.f32 %v1941, 1.442695
        %v1949 = vpow.pop %v1948
        %v1950 = vld [vmem:[#allocation4] sm:$0xff]
        %v1951 = vld [vmem:[#allocation4 + $0x8] sm:$0xff]
        %v1952 = vld [vmem:[#allocation4 + $0x10] sm:$0xff]
        %v1953 = vld [vmem:[#allocation4 + $0x18] sm:$0xff]
        %v1954 = vmul.f32 %v1911, %v1950
        %v1955 = vmul.f32 %v1913, %v1951
        %v1956 = vmul.f32 %v1915, %v1952
        %v1957 = vmul.f32 %v1917, %v1953
        %v1958 = vsel %vm1581, %v1943, 0.0
        %1959 = vadd.xlane.f32.xlu0 %v1958
        %v1960 = vpop.xlane.xlu0 %1959
        %v1961 = vsel %vm1581, %v1945, 0.0
        %1962 = vadd.xlane.f32.xlu0 %v1961
        %v1963 = vpop.xlane.xlu0 %1962
        %v1964 = vsel %vm1581, %v1947, 0.0
        %1965 = vadd.xlane.f32.xlu0 %v1964
        %v1966 = vpop.xlane.xlu0 %1965
        %v1967 = vsel %vm1581, %v1949, 0.0
        %1968 = vadd.xlane.f32.xlu0 %v1967
        %v1969 = vpop.xlane.xlu0 %1968
        %v1970 = vadd.f32 %v1954, %v1960
        %v1971 = vadd.f32 %v1955, %v1963
        %v1972 = vadd.f32 %v1956, %v1966
        %v1973 = vadd.f32 %v1957, %v1969
        %vm1974 = vcmask 7168
        %1975 = vst.msk [vmem:[#allocation4] sm:$0xff] %vm1974, %v1970
        %1976 = vst.msk [vmem:[#allocation4 + $0x8] sm:$0xff] %vm1974, %v1971
        %1977 = vst.msk [vmem:[#allocation4 + $0x10] sm:$0xff] %vm1974, %v1972
        %1978 = vst.msk [vmem:[#allocation4 + $0x18] sm:$0xff] %vm1974, %v1973
        %v1979 = vld [vmem:[#allocation5] sm:$0xff]
        %v1980 = vld [vmem:[#allocation5 + $0x8] sm:$0xff]
        %v1981 = vld [vmem:[#allocation5 + $0x10] sm:$0xff]
        %v1982 = vld [vmem:[#allocation5 + $0x18] sm:$0xff]
        %1984 = vset.pattern.permute.xlu0 0
        %1985 = vperm.xlu0 %1984, %v1911
        %v1986 = vpop.permute.xlu0 %1985
        %1989 = vset.pattern.permute.xlu0 0
        %1990 = vperm.xlu0 %1989, %v1913
        %v1991 = vpop.permute.xlu0 %1990
        %1994 = vset.pattern.permute.xlu0 0
        %1995 = vperm.xlu0 %1994, %v1915
        %v1996 = vpop.permute.xlu0 %1995
        %1999 = vset.pattern.permute.xlu0 0
        %2000 = vperm.xlu0 %1999, %v1917
        %v2001 = vpop.permute.xlu0 %2000
        %v2003 = vmul.f32 %v1986, %v1979
        %v2004 = vmul.f32 %v1991, %v1980
        %v2005 = vmul.f32 %v1996, %v1981
        %v2006 = vmul.f32 %v2001, %v1982
        %v2008 = vsel %vm1581, %v1943, 0
        %2010 = vmatprep.subr.mxu0 0.0
        %2011 = vmatpush1.msra.mxu0 %v1565
        %2012 = vmatprep.subr.mxu0 0.0
        %2013 = vmatpush1.msra.mxu0 0.0
        %2014 = vmatprep.subr.mxu0 0.0
        %2015 = vmatpush1.msra.mxu0 0.0
        %2016 = vmatprep.subr.mxu0 0.0
        %2017 = vmatpush1.msra.mxu0 0.0
        %2018 = vmatprep.subr.mxu0 0.0
        %2019 = vmatpush1.msra.mxu0 0.0
        %2020 = vmatprep.subr.mxu0 0.0
        %2021 = vmatpush1.msra.mxu0 0.0
        %2022 = vmatprep.subr.mxu0 0.0
        %2023 = vmatpush1.msra.mxu0 0.0
        %2024 = vmatprep.subr.mxu0 0.0
        %2025 = vmatpush1.msra.mxu0 0.0
        %2026 = vmatprep.subr.mxu0 0.0
        %2027 = vmatpush1.msra.mxu0 0.0
        %2028 = vmatprep.subr.mxu0 0.0
        %2029 = vmatpush1.msra.mxu0 0.0
        %2030 = vmatprep.subr.mxu0 0.0
        %2031 = vmatpush1.msra.mxu0 0.0
        %2032 = vmatprep.subr.mxu0 0.0
        %2033 = vmatpush1.msra.mxu0 0.0
        %2034 = vmatprep.subr.mxu0 0.0
        %2035 = vmatpush1.msra.mxu0 0.0
        %2036 = vmatprep.subr.mxu0 0.0
        %2037 = vmatpush1.msra.mxu0 0.0
        %2038 = vmatprep.subr.mxu0 0.0
        %2039 = vmatpush1.msra.mxu0 0.0
        %2040 = vmatprep.subr.mxu0 0.0
        %2041 = vmatpush1.msra.mxu0 0.0
        %2042 = vmatprep.subr.mxu0 0.0
        %2043 = vmatpush1.msra.mxu0 0.0
        %2044 = vmatprep.subr.mxu0 0.0
        %2045 = vmatpush1.msra.mxu0 0.0
        %2046 = vmatprep.subr.mxu0 0.0
        %2047 = vmatpush1.msra.mxu0 0.0
        %2048 = vmatprep.subr.mxu0 0.0
        %2049 = vmatpush1.msra.mxu0 0.0
        %2050 = vmatprep.subr.mxu0 0.0
        %2051 = vmatpush1.msra.mxu0 0.0
        %2052 = vmatprep.subr.mxu0 0.0
        %2053 = vmatpush1.msra.mxu0 0.0
        %2054 = vmatprep.subr.mxu0 0.0
        %2055 = vmatpush1.msra.mxu0 0.0
        %2056 = vmatprep.subr.mxu0 0.0
        %2057 = vmatpush1.msra.mxu0 0.0
        %2058 = vmatprep.subr.mxu0 0.0
        %2059 = vmatpush1.msra.mxu0 0.0
        %2060 = vmatprep.subr.mxu0 0.0
        %2061 = vmatpush1.msra.mxu0 0.0
        %2062 = vmatprep.subr.mxu0 0.0
        %2063 = vmatpush1.msra.mxu0 0.0
        %2064 = vmatprep.subr.mxu0 0.0
        %2065 = vmatpush1.msra.mxu0 0.0
        %2066 = vmatprep.subr.mxu0 0.0
        %2067 = vmatpush1.msra.mxu0 0.0
        %2068 = vmatprep.subr.mxu0 0.0
        %2069 = vmatpush1.msra.mxu0 0.0
        %2070 = vmatprep.subr.mxu0 0.0
        %2071 = vmatpush1.msra.mxu0 0.0
        %2072 = vmatprep.subr.mxu0 0.0
        %2073 = vmatpush1.msra.mxu0 0.0
        %2074 = vmatprep.mubr.f32.mxu0 0.0
        %2075 = vmatmul.mubr.f32.gmra.mrb[0].mxu0 %v2008
        %v2076 = vpop.f32.mrb[0].mxu0
        %v2077 = vadd.f32 0.0, %v2076
        %v2078 = vpop.f32.mrb[0].mxu0
        %2079 = vdwg.mxu0
        %v2081 = vsel %vm1581, %v1945, 0
        %2083 = vmatprep.subr.mxu0 0.0
        %2084 = vmatpush1.msra.mxu0 %v1566
        %2085 = vmatprep.subr.mxu0 0.0
        %2086 = vmatpush1.msra.mxu0 0.0
        %2087 = vmatprep.subr.mxu0 0.0
        %2088 = vmatpush1.msra.mxu0 0.0
        %2089 = vmatprep.subr.mxu0 0.0
        %2090 = vmatpush1.msra.mxu0 0.0
        %2091 = vmatprep.subr.mxu0 0.0
        %2092 = vmatpush1.msra.mxu0 0.0
        %2093 = vmatprep.subr.mxu0 0.0
        %2094 = vmatpush1.msra.mxu0 0.0
        %2095 = vmatprep.subr.mxu0 0.0
        %2096 = vmatpush1.msra.mxu0 0.0
        %2097 = vmatprep.subr.mxu0 0.0
        %2098 = vmatpush1.msra.mxu0 0.0
        %2099 = vmatprep.subr.mxu0 0.0
        %2100 = vmatpush1.msra.mxu0 0.0
        %2101 = vmatprep.subr.mxu0 0.0
        %2102 = vmatpush1.msra.mxu0 0.0
        %2103 = vmatprep.subr.mxu0 0.0
        %2104 = vmatpush1.msra.mxu0 0.0
        %2105 = vmatprep.subr.mxu0 0.0
        %2106 = vmatpush1.msra.mxu0 0.0
        %2107 = vmatprep.subr.mxu0 0.0
        %2108 = vmatpush1.msra.mxu0 0.0
        %2109 = vmatprep.subr.mxu0 0.0
        %2110 = vmatpush1.msra.mxu0 0.0
        %2111 = vmatprep.subr.mxu0 0.0
        %2112 = vmatpush1.msra.mxu0 0.0
        %2113 = vmatprep.subr.mxu0 0.0
        %2114 = vmatpush1.msra.mxu0 0.0
        %2115 = vmatprep.subr.mxu0 0.0
        %2116 = vmatpush1.msra.mxu0 0.0
        %2117 = vmatprep.subr.mxu0 0.0
        %2118 = vmatpush1.msra.mxu0 0.0
        %2119 = vmatprep.subr.mxu0 0.0
        %2120 = vmatpush1.msra.mxu0 0.0
        %2121 = vmatprep.subr.mxu0 0.0
        %2122 = vmatpush1.msra.mxu0 0.0
        %2123 = vmatprep.subr.mxu0 0.0
        %2124 = vmatpush1.msra.mxu0 0.0
        %2125 = vmatprep.subr.mxu0 0.0
        %2126 = vmatpush1.msra.mxu0 0.0
        %2127 = vmatprep.subr.mxu0 0.0
        %2128 = vmatpush1.msra.mxu0 0.0
        %2129 = vmatprep.subr.mxu0 0.0
        %2130 = vmatpush1.msra.mxu0 0.0
        %2131 = vmatprep.subr.mxu0 0.0
        %2132 = vmatpush1.msra.mxu0 0.0
        %2133 = vmatprep.subr.mxu0 0.0
        %2134 = vmatpush1.msra.mxu0 0.0
        %2135 = vmatprep.subr.mxu0 0.0
        %2136 = vmatpush1.msra.mxu0 0.0
        %2137 = vmatprep.subr.mxu0 0.0
        %2138 = vmatpush1.msra.mxu0 0.0
        %2139 = vmatprep.subr.mxu0 0.0
        %2140 = vmatpush1.msra.mxu0 0.0
        %2141 = vmatprep.subr.mxu0 0.0
        %2142 = vmatpush1.msra.mxu0 0.0
        %2143 = vmatprep.subr.mxu0 0.0
        %2144 = vmatpush1.msra.mxu0 0.0
        %2145 = vmatprep.subr.mxu0 0.0
        %2146 = vmatpush1.msra.mxu0 0.0
        %2147 = vmatprep.mubr.f32.mxu0 0.0
        %2148 = vmatmul.mubr.f32.gmra.mrb[0].mxu0 %v2081
        %v2149 = vpop.f32.mrb[0].mxu0
        %v2150 = vadd.f32 0.0, %v2149
        %v2151 = vpop.f32.mrb[0].mxu0
        %2152 = vdwg.mxu0
        %v2154 = vsel %vm1581, %v1947, 0
        %2156 = vmatprep.subr.mxu0 0.0
        %2157 = vmatpush1.msra.mxu0 %v1567
        %2158 = vmatprep.subr.mxu0 0.0
        %2159 = vmatpush1.msra.mxu0 0.0
        %2160 = vmatprep.subr.mxu0 0.0
        %2161 = vmatpush1.msra.mxu0 0.0
        %2162 = vmatprep.subr.mxu0 0.0
        %2163 = vmatpush1.msra.mxu0 0.0
        %2164 = vmatprep.subr.mxu0 0.0
        %2165 = vmatpush1.msra.mxu0 0.0
        %2166 = vmatprep.subr.mxu0 0.0
        %2167 = vmatpush1.msra.mxu0 0.0
        %2168 = vmatprep.subr.mxu0 0.0
        %2169 = vmatpush1.msra.mxu0 0.0
        %2170 = vmatprep.subr.mxu0 0.0
        %2171 = vmatpush1.msra.mxu0 0.0
        %2172 = vmatprep.subr.mxu0 0.0
        %2173 = vmatpush1.msra.mxu0 0.0
        %2174 = vmatprep.subr.mxu0 0.0
        %2175 = vmatpush1.msra.mxu0 0.0
        %2176 = vmatprep.subr.mxu0 0.0
        %2177 = vmatpush1.msra.mxu0 0.0
        %2178 = vmatprep.subr.mxu0 0.0
        %2179 = vmatpush1.msra.mxu0 0.0
        %2180 = vmatprep.subr.mxu0 0.0
        %2181 = vmatpush1.msra.mxu0 0.0
        %2182 = vmatprep.subr.mxu0 0.0
        %2183 = vmatpush1.msra.mxu0 0.0
        %2184 = vmatprep.subr.mxu0 0.0
        %2185 = vmatpush1.msra.mxu0 0.0
        %2186 = vmatprep.subr.mxu0 0.0
        %2187 = vmatpush1.msra.mxu0 0.0
        %2188 = vmatprep.subr.mxu0 0.0
        %2189 = vmatpush1.msra.mxu0 0.0
        %2190 = vmatprep.subr.mxu0 0.0
        %2191 = vmatpush1.msra.mxu0 0.0
        %2192 = vmatprep.subr.mxu0 0.0
        %2193 = vmatpush1.msra.mxu0 0.0
        %2194 = vmatprep.subr.mxu0 0.0
        %2195 = vmatpush1.msra.mxu0 0.0
        %2196 = vmatprep.subr.mxu0 0.0
        %2197 = vmatpush1.msra.mxu0 0.0
        %2198 = vmatprep.subr.mxu0 0.0
        %2199 = vmatpush1.msra.mxu0 0.0
        %2200 = vmatprep.subr.mxu0 0.0
        %2201 = vmatpush1.msra.mxu0 0.0
        %2202 = vmatprep.subr.mxu0 0.0
        %2203 = vmatpush1.msra.mxu0 0.0
        %2204 = vmatprep.subr.mxu0 0.0
        %2205 = vmatpush1.msra.mxu0 0.0
        %2206 = vmatprep.subr.mxu0 0.0
        %2207 = vmatpush1.msra.mxu0 0.0
        %2208 = vmatprep.subr.mxu0 0.0
        %2209 = vmatpush1.msra.mxu0 0.0
        %2210 = vmatprep.subr.mxu0 0.0
        %2211 = vmatpush1.msra.mxu0 0.0
        %2212 = vmatprep.subr.mxu0 0.0
        %2213 = vmatpush1.msra.mxu0 0.0
        %2214 = vmatprep.subr.mxu0 0.0
        %2215 = vmatpush1.msra.mxu0 0.0
        %2216 = vmatprep.subr.mxu0 0.0
        %2217 = vmatpush1.msra.mxu0 0.0
        %2218 = vmatprep.subr.mxu0 0.0
        %2219 = vmatpush1.msra.mxu0 0.0
        %2220 = vmatprep.mubr.f32.mxu0 0.0
        %2221 = vmatmul.mubr.f32.gmra.mrb[0].mxu0 %v2154
        %v2222 = vpop.f32.mrb[0].mxu0
        %v2223 = vadd.f32 0.0, %v2222
        %v2224 = vpop.f32.mrb[0].mxu0
        %2225 = vdwg.mxu0
        %v2227 = vsel %vm1581, %v1949, 0
        %2229 = vmatprep.subr.mxu0 0.0
        %2230 = vmatpush1.msra.mxu0 %v1568
        %2231 = vmatprep.subr.mxu0 0.0
        %2232 = vmatpush1.msra.mxu0 0.0
        %2233 = vmatprep.subr.mxu0 0.0
        %2234 = vmatpush1.msra.mxu0 0.0
        %2235 = vmatprep.subr.mxu0 0.0
        %2236 = vmatpush1.msra.mxu0 0.0
        %2237 = vmatprep.subr.mxu0 0.0
        %2238 = vmatpush1.msra.mxu0 0.0
        %2239 = vmatprep.subr.mxu0 0.0
        %2240 = vmatpush1.msra.mxu0 0.0
        %2241 = vmatprep.subr.mxu0 0.0
        %2242 = vmatpush1.msra.mxu0 0.0
        %2243 = vmatprep.subr.mxu0 0.0
        %2244 = vmatpush1.msra.mxu0 0.0
        %2245 = vmatprep.subr.mxu0 0.0
        %2246 = vmatpush1.msra.mxu0 0.0
        %2247 = vmatprep.subr.mxu0 0.0
        %2248 = vmatpush1.msra.mxu0 0.0
        %2249 = vmatprep.subr.mxu0 0.0
        %2250 = vmatpush1.msra.mxu0 0.0
        %2251 = vmatprep.subr.mxu0 0.0
        %2252 = vmatpush1.msra.mxu0 0.0
        %2253 = vmatprep.subr.mxu0 0.0
        %2254 = vmatpush1.msra.mxu0 0.0
        %2255 = vmatprep.subr.mxu0 0.0
        %2256 = vmatpush1.msra.mxu0 0.0
        %2257 = vmatprep.subr.mxu0 0.0
        %2258 = vmatpush1.msra.mxu0 0.0
        %2259 = vmatprep.subr.mxu0 0.0
        %2260 = vmatpush1.msra.mxu0 0.0
        %2261 = vmatprep.subr.mxu0 0.0
        %2262 = vmatpush1.msra.mxu0 0.0
        %2263 = vmatprep.subr.mxu0 0.0
        %2264 = vmatpush1.msra.mxu0 0.0
        %2265 = vmatprep.subr.mxu0 0.0
        %2266 = vmatpush1.msra.mxu0 0.0
        %2267 = vmatprep.subr.mxu0 0.0
        %2268 = vmatpush1.msra.mxu0 0.0
        %2269 = vmatprep.subr.mxu0 0.0
        %2270 = vmatpush1.msra.mxu0 0.0
        %2271 = vmatprep.subr.mxu0 0.0
        %2272 = vmatpush1.msra.mxu0 0.0
        %2273 = vmatprep.subr.mxu0 0.0
        %2274 = vmatpush1.msra.mxu0 0.0
        %2275 = vmatprep.subr.mxu0 0.0
        %2276 = vmatpush1.msra.mxu0 0.0
        %2277 = vmatprep.subr.mxu0 0.0
        %2278 = vmatpush1.msra.mxu0 0.0
        %2279 = vmatprep.subr.mxu0 0.0
        %2280 = vmatpush1.msra.mxu0 0.0
        %2281 = vmatprep.subr.mxu0 0.0
        %2282 = vmatpush1.msra.mxu0 0.0
        %2283 = vmatprep.subr.mxu0 0.0
        %2284 = vmatpush1.msra.mxu0 0.0
        %2285 = vmatprep.subr.mxu0 0.0
        %2286 = vmatpush1.msra.mxu0 0.0
        %2287 = vmatprep.subr.mxu0 0.0
        %2288 = vmatpush1.msra.mxu0 0.0
        %2289 = vmatprep.subr.mxu0 0.0
        %2290 = vmatpush1.msra.mxu0 0.0
        %2291 = vmatprep.subr.mxu0 0.0
        %2292 = vmatpush1.msra.mxu0 0.0
        %2293 = vmatprep.mubr.f32.mxu0 0.0
        %2294 = vmatmul.mubr.f32.gmra.mrb[0].mxu0 %v2227
        %v2295 = vpop.f32.mrb[0].mxu0
        %v2296 = vadd.f32 0.0, %v2295
        %v2297 = vpop.f32.mrb[0].mxu0
        %2298 = vdwg.mxu0
        %v2299 = vadd.f32 %v2003, %v2077
        %v2300 = vadd.f32 %v2004, %v2150
        %v2301 = vadd.f32 %v2005, %v2223
        %v2302 = vadd.f32 %v2006, %v2296
        %2303 = vst.msk [vmem:[#allocation5] sm:$0xff] %vm1581, %v2299
        %2304 = vst.msk [vmem:[#allocation5 + $0x8] sm:$0xff] %vm1581, %v2300
        %2305 = vst.msk [vmem:[#allocation5 + $0x10] sm:$0xff] %vm1581, %v2301
        %2306 = vst.msk [vmem:[#allocation5 + $0x18] sm:$0xff] %vm1581, %v2302
        %2307 = vst.msk [vmem:[#allocation3] sm:$0xff] %vm1974, %v1902
        %2308 = vst.msk [vmem:[#allocation3 + $0x8] sm:$0xff] %vm1974, %v1903
        %2309 = vst.msk [vmem:[#allocation3 + $0x10] sm:$0xff] %vm1974, %v1904
        %2310 = vst.msk [vmem:[#allocation3 + $0x18] sm:$0xff] %vm1974, %v1905
        %v2311 = vld [vmem:[#allocation4] sm:$0xff]
        %v2312 = vld [vmem:[#allocation4 + $0x8] sm:$0xff]
        %v2313 = vld [vmem:[#allocation4 + $0x10] sm:$0xff]
        %v2314 = vld [vmem:[#allocation4 + $0x18] sm:$0xff]
        %v2315 = vrcp.pop %v2311
        %v2316 = vrcp.pop %v2312
        %v2317 = vrcp.pop %v2313
        %v2318 = vrcp.pop %v2314
        %v2319 = vmul.f32 %v2311, %v2315
        %v2320 = vmul.f32 %v2312, %v2316
        %v2321 = vmul.f32 %v2313, %v2317
        %v2322 = vmul.f32 %v2314, %v2318
        %v2323 = vsub.f32 2.0, %v2319
        %v2324 = vsub.f32 2.0, %v2320
        %v2325 = vsub.f32 2.0, %v2321
        %v2326 = vsub.f32 2.0, %v2322
        %v2327 = vmul.f32 %v2315, %v2323
        %v2328 = vmul.f32 %v2316, %v2324
        %v2329 = vmul.f32 %v2317, %v2325
        %v2330 = vmul.f32 %v2318, %v2326
        %v2331 = vld [vmem:[#allocation5] sm:$0xff]
        %v2332 = vld [vmem:[#allocation5 + $0x8] sm:$0xff]
        %v2333 = vld [vmem:[#allocation5 + $0x10] sm:$0xff]
        %v2334 = vld [vmem:[#allocation5 + $0x18] sm:$0xff]
        %2336 = vset.pattern.permute.xlu0 0
        %2337 = vperm.xlu0 %2336, %v2327
        %v2338 = vpop.permute.xlu0 %2337
        %2341 = vset.pattern.permute.xlu0 0
        %2342 = vperm.xlu0 %2341, %v2328
        %v2343 = vpop.permute.xlu0 %2342
        %2346 = vset.pattern.permute.xlu0 0
        %2347 = vperm.xlu0 %2346, %v2329
        %v2348 = vpop.permute.xlu0 %2347
        %2351 = vset.pattern.permute.xlu0 0
        %2352 = vperm.xlu0 %2351, %v2330
        %v2353 = vpop.permute.xlu0 %2352
        %v2355 = vmul.f32 %v2331, %v2338
        %v2356 = vmul.f32 %v2332, %v2343
        %v2357 = vmul.f32 %v2333, %v2348
        %v2358 = vmul.f32 %v2334, %v2353
        %2360 = vrot.lane.b32.xlu0 %v2356, 8
        %v2361 = vpop.permute.xlu0 %2360
        %2364 = vrot.lane.b32.xlu0 %v2357, 16
        %v2365 = vpop.permute.xlu0 %2364
        %2368 = vrot.lane.b32.xlu0 %v2358, 24
        %v2369 = vpop.permute.xlu0 %2368
        %v2371 = vsel %vm1581, %v2355, %v2361
        %vm2372 = vcmask 130048
        %v2373 = vsel %vm2372, %v2371, %v2365
        %vm2374 = vcmask 195584
        %v2375 = vsel %vm2374, %v2373, %v2369
        %vm2376 = vcmask 261120
        %2377 = vst.msk [vmem:[%s500] sm:$0xff] %vm2376, %v2375
      $region60: #{mha_forward.4} parent=47 // pred_fallthru
        _
      %p2378 = scmp.lt.s32.totalorder %s23, 1
      %s2379 = scalar_select %p2378, %s23, 1
      %p2380 = scmp.lt.s32.totalorder %s24, 0
      %s2381 = scalar_select %p2380, %s24, 0
      %s2382 = sadd.s32 %s2381, %s2379
      %s2383 = smul.addr %s2382, 8
      %s2384 = scalar_lea.vmem %s7, %s2383
      // Predicated region
      $region61: #{mha_forward.4} parent=47 // pred_check
        %p2385 = pneg %p261
      $region62: #{mha_forward.4} parent=47 // pred_check_branch
        %2387 = sbr.rel (%p2385) target = $region64
      $region63: #{mha_forward.4} parent=47 // pred_region
        _
      $region64: #{mha_forward.4} parent=47 // pred_fallthru
        _
    $region48: #{mha_forward.4} parent=5 // pred_fallthru
      _
    %p2388 = scmp.le.s32.totalorder 2, %s13
    // Predicated region
    $region65: #{mha_forward.4} parent=5 // pred_check
      %p2389 = pneg %p2388
    $region66: #{mha_forward.4} parent=5 // pred_check_branch
      %2391 = sbr.rel (%p2389) target = $region68
    $region67: #{mha_forward.4} parent=5 // pred_region
      %s2392 = ssub.s32 %s13, 2
      // Predicated region
      $region69: #{mha_forward.4} parent=67 // pred_check
        %p2393 = pneg %p267
      $region70: #{mha_forward.4} parent=67 // pred_check_branch
        %2395 = sbr.rel (%p2393) target = $region72
      $region71: #{mha_forward.4} parent=67 // pred_region
        %p2396 = scmp.lt.s32.totalorder %s26, 1
        %s2397 = scalar_select %p2396, %s26, 1
        %p2398 = scmp.lt.s32.totalorder %s27, 0
        %s2399 = scalar_select %p2398, %s27, 0
        %s2400 = sadd.s32 %s2399, %s2397
        %s2401 = smul.addr %s2400, 8
        %s2402 = scalar_lea.vmem %s7, %s2401
      $region72: #{mha_forward.4} parent=67 // pred_fallthru
        _
    $region68: #{mha_forward.4} parent=5 // pred_fallthru
      _
  $region6: #{mha_forward.4} parent=0 // loop_footer
    %s17 = sadd.s32 1, %s13
  $region7: #{mha_forward.4} parent=0 // loop_footer_branch
    %12 = sbr.rel target = $region3
  $region8: #{mha_forward.4} parent=0 // loop_exit
    _

</llo_original>
